<compile_context>
chip_gen: v7x
topology: tpu7x:2x2x1
jax: 0.10.0
libtpu: 0.0.40
codegen_flags: <defaults>
</compile_context>

<pallas_src>
import functools

import jax
import jax.numpy as jnp
import numpy as np
from jax import lax
from jax.experimental import pallas as pl
from jax.experimental.pallas import tpu as pltpu


# ------------------------------ Fused kernel ------------------------------- #

def _mha_kernel(q_in_ref, k_in_ref, v_in_ref,
                wq_ref, bq_ref, wk_ref, bk_ref, wv_ref, bv_ref,
                wo_ref, bo_ref, o_ref,
                *, num_heads, batch_tile, len_q, len_k, len_v, scale):
    """One grid step = `batch_tile` packed sequences, flattened to 2-D slabs.

    Ref shapes:
      q_in_ref: (batch_tile*len_q, D)   k_in_ref: (batch_tile*len_k, D)
      v_in_ref: (batch_tile*len_v, D)   w*_ref:   (D, D) bf16
      b*_ref:   (1, D) f32              o_ref:    (batch_tile*len_q, D)
    """
    D = q_in_ref.shape[-1]
    d_head = D // num_heads

    # ---- Input projections: bf16 operands, f32 accumulation on the MXU.
    # M dimension = batch_tile * len (all packed sequences in one pass).
    xq = q_in_ref[...].astype(jnp.bfloat16)
    xk = k_in_ref[...].astype(jnp.bfloat16)
    xv = v_in_ref[...].astype(jnp.bfloat16)

    q = jnp.dot(xq, wq_ref[...], preferred_element_type=jnp.float32) + bq_ref[...]
    k = jnp.dot(xk, wk_ref[...], preferred_element_type=jnp.float32) + bk_ref[...]
    v = jnp.dot(xv, wv_ref[...], preferred_element_type=jnp.float32) + bv_ref[...]

    # Fold the softmax scale into q (rows*D mults, not rows*len_k scores), then
    # drop the attention-matmul operands to bf16.
    q = (q * scale).astype(jnp.bfloat16)
    k = k.astype(jnp.bfloat16)
    v = v.astype(jnp.bfloat16)

    bo = bo_ref[...]                                     # (1, D) f32

    # Static loops over packed sequences and heads; every matmul stays 2-D.
    for b in range(batch_tile):
        q_b = q[b * len_q:(b + 1) * len_q, :]            # (len_q, D)
        k_b = k[b * len_k:(b + 1) * len_k, :]            # (len_k, D)
        v_b = v[b * len_v:(b + 1) * len_v, :]            # (len_v, D)

        # f32 accumulator for Concat(head_1..head_h) @ W_o — no concat needed:
        # each head contributes through its (d_head, D) row-slab of W_o.
        out_b = jnp.zeros((len_q, D), jnp.float32)

        for h in range(num_heads):
            lo = h * d_head
            qh = q_b[:, lo:lo + d_head]                  # (len_q, d_head)
            kh = k_b[:, lo:lo + d_head]                  # (len_k, d_head)
            vh = v_b[:, lo:lo + d_head]                  # (len_v, d_head)

            # scores = qh @ kh^T, expressed as a contraction on the feature
            # axis (no explicit transpose of kh); f32 accumulation.
            s = lax.dot_general(qh, kh, (((1,), (1,)), ((), ())),
                                preferred_element_type=jnp.float32)  # (len_q, len_k)

            # Numerically-stable softmax; statistics stay in f32.
            s = s - jnp.max(s, axis=-1, keepdims=True)
            p = jnp.exp(s)
            denom = jnp.sum(p, axis=-1, keepdims=True)                # (len_q, 1)

            ctx = jnp.dot(p.astype(jnp.bfloat16), vh,
                          preferred_element_type=jnp.float32)         # (len_q, d_head)
            ctx = ctx * pl.reciprocal(denom)   # exact: one tiny reciprocal per head

            # Accumulate this head's share of the output projection.
            out_b = out_b + jnp.dot(ctx.astype(jnp.bfloat16),
                                    wo_ref[lo:lo + d_head, :],
                                    preferred_element_type=jnp.float32)

        # Single lane-dense store per packed sequence.
        o_ref[b * len_q:(b + 1) * len_q, :] = (out_b + bo).astype(o_ref.dtype)


# --------------------------------- Wrapper ---------------------------------- #

def multi_head_attention(params, query, key, value, num_heads, *, batch_tile=None):
    """Mirrors MultiHeadAttention.forward with mask=None.

    query: (B, Lq, D), key: (B, Lk, D), value: (B, Lv, D) -> (B, Lq, D).
    Weights are stored pre-transposed as (in, out) bf16 so the kernel computes
    x @ W + b (== PyTorch x @ W_pt.T + b).
    """
    # TODO(synk): the optional `mask` path (masked_fill with -inf before softmax)
    # is not implemented; only the mask=None path of the module is covered.
    # TODO(synk): for long sequences / large D (esp. v7x, 64 MiB VMEM) add an Lq
    # tile grid axis plus a flash-style online-softmax loop over Lk blocks.
    B, Lq, D = query.shape
    Lk = key.shape[1]
    Lv = value.shape[1]
    assert D % num_heads == 0

    # openspeech DotProductAttention(dim, scale=True): divide by sqrt(model dim).
    scale = 1.0 / float(np.sqrt(D))

    if batch_tile is None:
        # Pack enough sequences per grid step that the projection matmuls see
        # ~128 rows (MXU M dim); at the toy shapes this is the whole batch.
        batch_tile = max(1, min(B, 128 // max(Lq, 1)))
        while B % batch_tile:
            batch_tile -= 1
    grid = (B // batch_tile,)

    # bf16 weights (MXU-rate operands, half the VMEM); f32 biases (added to the
    # f32 accumulators).
    wq = params["query_proj"]["w"].astype(jnp.bfloat16)
    wk = params["key_proj"]["w"].astype(jnp.bfloat16)
    wv = params["value_proj"]["w"].astype(jnp.bfloat16)
    wo = params["output_proj"]["w"].astype(jnp.bfloat16)
    bq = params["query_proj"]["b"].astype(jnp.float32).reshape(1, D)
    bk = params["key_proj"]["b"].astype(jnp.float32).reshape(1, D)
    bv = params["value_proj"]["b"].astype(jnp.float32).reshape(1, D)
    bo = params["output_proj"]["b"].astype(jnp.float32).reshape(1, D)

    # Present the activations as 2-D (B*L, D) slabs (free XLA reshape): the
    # kernel then needs no in-kernel reshapes and every store is lane-dense.
    q2d = query.reshape(B * Lq, D)
    k2d = key.reshape(B * Lk, D)
    v2d = value.reshape(B * Lv, D)

    kernel = functools.partial(_mha_kernel, num_heads=num_heads,
                               batch_tile=batch_tile, len_q=Lq, len_k=Lk,
                               len_v=Lv, scale=scale)

    # Advisory cost estimate so XLA can schedule surrounding ops around the call.
    f32b, bf16b = 4, 2
    proj_flops = 2 * D * D * B * (2 * Lq + Lk + Lv)
    attn_flops = 4 * B * Lq * Lk * D
    cost = pl.CostEstimate(
        flops=proj_flops + attn_flops,
        transcendentals=B * num_heads * Lq * Lk,
        bytes_accessed=f32b * B * D * (2 * Lq + Lk + Lv)
        + bf16b * 4 * D * D + f32b * 4 * D)

    # Explicit scoped-VMEM limit: per-program footprint estimate + 2x headroom,
    # clamped to [16 MiB, 56 MiB] (stay under v7x's 64 MiB physical VMEM).
    io_blocks = 2 * f32b * batch_tile * D * (2 * Lq + Lk + Lv)   # double-buffered data blocks
    weight_blocks = 2 * (bf16b * 4 * D * D + f32b * 4 * D)       # <=2 copies of W / b
    activations = (f32b + bf16b) * batch_tile * D * (Lq + Lk + Lv)
    scores = 2 * f32b * Lq * Lk
    acc = f32b * Lq * D
    vmem_limit = int(min(max(2 * (io_blocks + weight_blocks + activations
                                  + scores + acc),
                             16 * 1024 * 1024),
                         56 * 1024 * 1024))

    def build_and_call(single_buffer_weights):
        if single_buffer_weights:
            # Weight/bias blocks are constant across the grid: one buffer only.
            weight_spec = pl.BlockSpec((D, D), lambda b: (0, 0),
                                       pipeline_mode=pl.Buffered(1))
            bias_spec = pl.BlockSpec((1, D), lambda b: (0, 0),
                                     pipeline_mode=pl.Buffered(1))
        else:
            weight_spec = pl.BlockSpec((D, D), lambda b: (0, 0))
            bias_spec = pl.BlockSpec((1, D), lambda b: (0, 0))

        out2d = pl.pallas_call(
            kernel,
            out_shape=jax.ShapeDtypeStruct((B * Lq, D), query.dtype),
            grid=grid,
            in_specs=[
                pl.BlockSpec((batch_tile * Lq, D), lambda b: (b, 0)),   # query
                pl.BlockSpec((batch_tile * Lk, D), lambda b: (b, 0)),   # key
                pl.BlockSpec((batch_tile * Lv, D), lambda b: (b, 0)),   # value
                weight_spec, bias_spec,                                 # query_proj
                weight_spec, bias_spec,                                 # key_proj
                weight_spec, bias_spec,                                 # value_proj
                weight_spec, bias_spec,                                 # output_proj
            ],
            out_specs=pl.BlockSpec((batch_tile * Lq, D), lambda b: (b, 0)),
            compiler_params=pltpu.CompilerParams(
                dimension_semantics=("parallel",),
                vmem_limit_bytes=vmem_limit),
            cost_estimate=cost,
        )(q2d, k2d, v2d, wq, bq, wk, bk, wv, bv, wo, bo)
        return out2d.reshape(B, Lq, D)

    try:
        return build_and_call(True)
    except Exception:
        # pipeline_mode=pl.Buffered(1) unsupported on this JAX build — fall back
        # to the default (double-buffered) constant weight blocks.
        return build_and_call(False)


# ------------------------------- Parameters -------------------------------- #

def init_multi_head_attention_params(key, dim):
    """Xavier-uniform weights stored as (in, out) bf16; zero f32 biases."""
    keys = jax.random.split(key, 4)

    def xavier(k, fan_in, fan_out):
        bound = float(np.sqrt(6.0 / (fan_in + fan_out)))
        w = jax.random.uniform(k, (fan_in, fan_out), jnp.float32, -bound, bound)
        return w.astype(jnp.bfloat16)   # bf16 MXU operands (perf review item 1)

    names = ["query_proj", "key_proj", "value_proj", "output_proj"]
    return {name: {"w": xavier(k, dim, dim), "b": jnp.zeros((dim,), jnp.float32)}
            for name, k in zip(names, keys)}


# --------------------------- Pure-JAX reference ----------------------------- #

def _reference(params, query, key, value, num_heads):
    B, Lq, D = query.shape
    d_head = D // num_heads

    def lin(x, p):
        return x @ p["w"].astype(jnp.float32) + p["b"]

    q = lin(query, params["query_proj"]).reshape(B, Lq, num_heads, d_head)
    k = lin(key, params["key_proj"]).reshape(B, key.shape[1], num_heads, d_head)
    v = lin(value, params["value_proj"]).reshape(B, value.shape[1], num_heads, d_head)
    q = jnp.transpose(q, (2, 0, 1, 3))
    k = jnp.transpose(k, (2, 0, 1, 3))
    v = jnp.transpose(v, (2, 0, 1, 3))
    s = jnp.einsum("hbqd,hbkd->hbqk", q, k) / np.sqrt(D)
    p = jax.nn.softmax(s, axis=-1)
    ctx = jnp.einsum("hbqk,hbkd->hbqd", p, v)
    ctx = jnp.transpose(ctx, (1, 2, 0, 3)).reshape(B, Lq, D)
    return lin(ctx, params["output_proj"])


if __name__ == "__main__":
    # Small shapes consistent with the module: dim=32, heads=4, batch=2, seq=8.
    dim, num_heads = 32, 4
    batch, len_q, len_kv = 2, 8, 8

    root = jax.random.PRNGKey(0)
    kp, kq, kk, kv = jax.random.split(root, 4)
    params = init_multi_head_attention_params(kp, dim)
    query = jax.random.normal(kq, (batch, len_q, dim), jnp.float32)
    key = jax.random.normal(kk, (batch, len_kv, dim), jnp.float32)
    value = jax.random.normal(kv, (batch, len_kv, dim), jnp.float32)

    out = multi_head_attention(params, query, key, value, num_heads)
    out = jax.block_until_ready(out)

    ref = _reference(params, query, key, value, num_heads)
    assert out.shape == (batch, len_q, dim)
    # Kernel uses bf16 MXU operands with f32 accumulation; reference is pure f32
    # (sharing the same bf16 weights), so allow a modest tolerance.
    assert jnp.allclose(out, ref, atol=5e-2, rtol=5e-2), "mismatch vs reference"

    print("KERNEL_OK")
</pallas_src>

<mosaic_0001>
module attributes {stable_mosaic.version = 11 : i64} {
  func.func @_mha_kernel(%arg0: i32, %arg1: memref<16x32xf32, #tpu.memory_space<vmem>>, %arg2: memref<16x32xf32, #tpu.memory_space<vmem>>, %arg3: memref<16x32xf32, #tpu.memory_space<vmem>>, %arg4: memref<32x32xbf16, #tpu.memory_space<vmem>>, %arg5: memref<1x32xf32, #tpu.memory_space<vmem>>, %arg6: memref<32x32xbf16, #tpu.memory_space<vmem>>, %arg7: memref<1x32xf32, #tpu.memory_space<vmem>>, %arg8: memref<32x32xbf16, #tpu.memory_space<vmem>>, %arg9: memref<1x32xf32, #tpu.memory_space<vmem>>, %arg10: memref<32x32xbf16, #tpu.memory_space<vmem>>, %arg11: memref<1x32xf32, #tpu.memory_space<vmem>>, %arg12: memref<16x32xf32, #tpu.memory_space<vmem>>) attributes {dimension_semantics = [#tpu.dimension_semantics<parallel>], iteration_bounds = array<i64: 1>, scalar_prefetch = 0 : i64, scratch_operands = 0 : i64, tpu.core_type = #tpu.core_type<tc>, window_params = [{transform_indices = @transform_0, window_bounds = array<i64: 16, 32>}, {transform_indices = @transform_1, window_bounds = array<i64: 16, 32>}, {transform_indices = @transform_2, window_bounds = array<i64: 16, 32>}, {pipeline_mode = #tpu.pipeline_mode<synchronous>, transform_indices = @transform_3, window_bounds = array<i64: 32, 32>}, {pipeline_mode = #tpu.pipeline_mode<synchronous>, transform_indices = @transform_4, window_bounds = array<i64: 1, 32>}, {pipeline_mode = #tpu.pipeline_mode<synchronous>, transform_indices = @transform_5, window_bounds = array<i64: 32, 32>}, {pipeline_mode = #tpu.pipeline_mode<synchronous>, transform_indices = @transform_6, window_bounds = array<i64: 1, 32>}, {pipeline_mode = #tpu.pipeline_mode<synchronous>, transform_indices = @transform_7, window_bounds = array<i64: 32, 32>}, {pipeline_mode = #tpu.pipeline_mode<synchronous>, transform_indices = @transform_8, window_bounds = array<i64: 1, 32>}, {pipeline_mode = #tpu.pipeline_mode<synchronous>, transform_indices = @transform_9, window_bounds = array<i64: 32, 32>}, {pipeline_mode = #tpu.pipeline_mode<synchronous>, transform_indices = @transform_10, window_bounds = array<i64: 1, 32>}, {transform_indices = @transform_11, window_bounds = array<i64: 16, 32>}]} {
    %c0 = arith.constant 0 : index
    %c0_0 = arith.constant 0 : index
    %0 = vector.load %arg1[%c0, %c0_0] : memref<16x32xf32, #tpu.memory_space<vmem>>, vector<16x32xf32>
    %1 = arith.truncf %0 : vector<16x32xf32> to vector<16x32xbf16>
    %c0_1 = arith.constant 0 : index
    %c0_2 = arith.constant 0 : index
    %2 = vector.load %arg2[%c0_1, %c0_2] : memref<16x32xf32, #tpu.memory_space<vmem>>, vector<16x32xf32>
    %3 = arith.truncf %2 : vector<16x32xf32> to vector<16x32xbf16>
    %c0_3 = arith.constant 0 : index
    %c0_4 = arith.constant 0 : index
    %4 = vector.load %arg3[%c0_3, %c0_4] : memref<16x32xf32, #tpu.memory_space<vmem>>, vector<16x32xf32>
    %5 = arith.truncf %4 : vector<16x32xf32> to vector<16x32xbf16>
    %c0_5 = arith.constant 0 : index
    %c0_6 = arith.constant 0 : index
    %6 = vector.load %arg4[%c0_5, %c0_6] : memref<32x32xbf16, #tpu.memory_space<vmem>>, vector<32x32xbf16>
    %cst = arith.constant dense<0.000000e+00> : vector<16x32xf32>
    %7 = tpu.matmul %1, %6, %cst {dimension_numbers = #tpu.dot_dimension_numbers<[1], [0], [0], [1], [0, 0, 1, 1], [], []>} : vector<16x32xbf16>, vector<32x32xbf16>, vector<16x32xf32> -> vector<16x32xf32>
    %c0_7 = arith.constant 0 : index
    %c0_8 = arith.constant 0 : index
    %8 = vector.load %arg5[%c0_7, %c0_8] : memref<1x32xf32, #tpu.memory_space<vmem>>, vector<1x32xf32>
    %9 = vector.broadcast %8 : vector<1x32xf32> to vector<16x32xf32>
    %10 = arith.addf %7, %9 : vector<16x32xf32>
    %c0_9 = arith.constant 0 : index
    %c0_10 = arith.constant 0 : index
    %11 = vector.load %arg6[%c0_9, %c0_10] : memref<32x32xbf16, #tpu.memory_space<vmem>>, vector<32x32xbf16>
    %cst_11 = arith.constant dense<0.000000e+00> : vector<16x32xf32>
    %12 = tpu.matmul %3, %11, %cst_11 {dimension_numbers = #tpu.dot_dimension_numbers<[1], [0], [0], [1], [0, 0, 1, 1], [], []>} : vector<16x32xbf16>, vector<32x32xbf16>, vector<16x32xf32> -> vector<16x32xf32>
    %c0_12 = arith.constant 0 : index
    %c0_13 = arith.constant 0 : index
    %13 = vector.load %arg7[%c0_12, %c0_13] : memref<1x32xf32, #tpu.memory_space<vmem>>, vector<1x32xf32>
    %14 = vector.broadcast %13 : vector<1x32xf32> to vector<16x32xf32>
    %15 = arith.addf %12, %14 : vector<16x32xf32>
    %c0_14 = arith.constant 0 : index
    %c0_15 = arith.constant 0 : index
    %16 = vector.load %arg8[%c0_14, %c0_15] : memref<32x32xbf16, #tpu.memory_space<vmem>>, vector<32x32xbf16>
    %cst_16 = arith.constant dense<0.000000e+00> : vector<16x32xf32>
    %17 = tpu.matmul %5, %16, %cst_16 {dimension_numbers = #tpu.dot_dimension_numbers<[1], [0], [0], [1], [0, 0, 1, 1], [], []>} : vector<16x32xbf16>, vector<32x32xbf16>, vector<16x32xf32> -> vector<16x32xf32>
    %c0_17 = arith.constant 0 : index
    %c0_18 = arith.constant 0 : index
    %18 = vector.load %arg9[%c0_17, %c0_18] : memref<1x32xf32, #tpu.memory_space<vmem>>, vector<1x32xf32>
    %19 = vector.broadcast %18 : vector<1x32xf32> to vector<16x32xf32>
    %20 = arith.addf %17, %19 : vector<16x32xf32>
    %cst_19 = arith.constant 0.176776692 : f32
    %21 = vector.broadcast %cst_19 : f32 to vector<16x32xf32>
    %22 = arith.mulf %10, %21 : vector<16x32xf32>
    %23 = arith.truncf %22 : vector<16x32xf32> to vector<16x32xbf16>
    %24 = arith.truncf %15 : vector<16x32xf32> to vector<16x32xbf16>
    %25 = arith.truncf %20 : vector<16x32xf32> to vector<16x32xbf16>
    %c0_20 = arith.constant 0 : index
    %c0_21 = arith.constant 0 : index
    %26 = vector.load %arg11[%c0_20, %c0_21] : memref<1x32xf32, #tpu.memory_space<vmem>>, vector<1x32xf32>
    %27 = vector.extract_strided_slice %23 {offsets = [0, 0], sizes = [8, 32], strides = [1, 1]} : vector<16x32xbf16> to vector<8x32xbf16>
    %28 = vector.extract_strided_slice %24 {offsets = [0, 0], sizes = [8, 32], strides = [1, 1]} : vector<16x32xbf16> to vector<8x32xbf16>
    %29 = vector.extract_strided_slice %25 {offsets = [0, 0], sizes = [8, 32], strides = [1, 1]} : vector<16x32xbf16> to vector<8x32xbf16>
    %cst_22 = arith.constant 0.000000e+00 : f32
    %30 = vector.broadcast %cst_22 : f32 to vector<8x32xf32>
    %31 = vector.extract_strided_slice %27 {offsets = [0, 0], sizes = [8, 8], strides = [1, 1]} : vector<8x32xbf16> to vector<8x8xbf16>
    %32 = vector.extract_strided_slice %28 {offsets = [0, 0], sizes = [8, 8], strides = [1, 1]} : vector<8x32xbf16> to vector<8x8xbf16>
    %33 = vector.extract_strided_slice %29 {offsets = [0, 0], sizes = [8, 8], strides = [1, 1]} : vector<8x32xbf16> to vector<8x8xbf16>
    %cst_23 = arith.constant dense<0.000000e+00> : vector<8x8xf32>
    %34 = tpu.matmul %31, %32, %cst_23 {dimension_numbers = #tpu.dot_dimension_numbers<[1], [1], [0], [0], [0, 0, 1, 0], [], []>} : vector<8x8xbf16>, vector<8x8xbf16>, vector<8x8xf32> -> vector<8x8xf32>
    %cst_24 = arith.constant dense<0xFF800000> : vector<8xf32>
    %35 = vector.multi_reduction <maximumf>, %34, %cst_24 [1] : vector<8x8xf32> to vector<8xf32>
    %36 = vector.shape_cast %35 : vector<8xf32> to vector<8x1xf32>
    %37 = vector.broadcast %36 : vector<8x1xf32> to vector<8x8xf32>
    %38 = arith.subf %34, %37 : vector<8x8xf32>
    %39 = math.exp %38 : vector<8x8xf32>
    %cst_25 = arith.constant dense<0.000000e+00> : vector<8xf32>
    %40 = vector.multi_reduction <add>, %39, %cst_25 [1] : vector<8x8xf32> to vector<8xf32>
    %41 = vector.shape_cast %40 : vector<8xf32> to vector<8x1xf32>
    %42 = arith.truncf %39 : vector<8x8xf32> to vector<8x8xbf16>
    %cst_26 = arith.constant dense<0.000000e+00> : vector<8x8xf32>
    %43 = tpu.matmul %42, %33, %cst_26 {dimension_numbers = #tpu.dot_dimension_numbers<[1], [0], [0], [1], [0, 0, 1, 1], [], []>} : vector<8x8xbf16>, vector<8x8xbf16>, vector<8x8xf32> -> vector<8x8xf32>
    %44 = tpu.reciprocal %41 : vector<8x1xf32> -> vector<8x1xf32>
    %45 = vector.broadcast %44 : vector<8x1xf32> to vector<8x8xf32>
    %46 = arith.mulf %43, %45 : vector<8x8xf32>
    %47 = arith.truncf %46 : vector<8x8xf32> to vector<8x8xbf16>
    %c0_27 = arith.constant 0 : index
    %c0_28 = arith.constant 0 : index
    %48 = vector.load %arg10[%c0_27, %c0_28] : memref<32x32xbf16, #tpu.memory_space<vmem>>, vector<8x32xbf16>
    %cst_29 = arith.constant dense<0.000000e+00> : vector<8x32xf32>
    %49 = tpu.matmul %47, %48, %cst_29 {dimension_numbers = #tpu.dot_dimension_numbers<[1], [0], [0], [1], [0, 0, 1, 1], [], []>} : vector<8x8xbf16>, vector<8x32xbf16>, vector<8x32xf32> -> vector<8x32xf32>
    %50 = arith.addf %30, %49 : vector<8x32xf32>
    %51 = vector.extract_strided_slice %27 {offsets = [0, 8], sizes = [8, 8], strides = [1, 1]} : vector<8x32xbf16> to vector<8x8xbf16>
    %52 = vector.extract_strided_slice %28 {offsets = [0, 8], sizes = [8, 8], strides = [1, 1]} : vector<8x32xbf16> to vector<8x8xbf16>
    %53 = vector.extract_strided_slice %29 {offsets = [0, 8], sizes = [8, 8], strides = [1, 1]} : vector<8x32xbf16> to vector<8x8xbf16>
    %cst_30 = arith.constant dense<0.000000e+00> : vector<8x8xf32>
    %54 = tpu.matmul %51, %52, %cst_30 {dimension_numbers = #tpu.dot_dimension_numbers<[1], [1], [0], [0], [0, 0, 1, 0], [], []>} : vector<8x8xbf16>, vector<8x8xbf16>, vector<8x8xf32> -> vector<8x8xf32>
    %cst_31 = arith.constant dense<0xFF800000> : vector<8xf32>
    %55 = vector.multi_reduction <maximumf>, %54, %cst_31 [1] : vector<8x8xf32> to vector<8xf32>
    %56 = vector.shape_cast %55 : vector<8xf32> to vector<8x1xf32>
    %57 = vector.broadcast %56 : vector<8x1xf32> to vector<8x8xf32>
    %58 = arith.subf %54, %57 : vector<8x8xf32>
    %59 = math.exp %58 : vector<8x8xf32>
    %cst_32 = arith.constant dense<0.000000e+00> : vector<8xf32>
    %60 = vector.multi_reduction <add>, %59, %cst_32 [1] : vector<8x8xf32> to vector<8xf32>
    %61 = vector.shape_cast %60 : vector<8xf32> to vector<8x1xf32>
    %62 = arith.truncf %59 : vector<8x8xf32> to vector<8x8xbf16>
    %cst_33 = arith.constant dense<0.000000e+00> : vector<8x8xf32>
    %63 = tpu.matmul %62, %53, %cst_33 {dimension_numbers = #tpu.dot_dimension_numbers<[1], [0], [0], [1], [0, 0, 1, 1], [], []>} : vector<8x8xbf16>, vector<8x8xbf16>, vector<8x8xf32> -> vector<8x8xf32>
    %64 = tpu.reciprocal %61 : vector<8x1xf32> -> vector<8x1xf32>
    %65 = vector.broadcast %64 : vector<8x1xf32> to vector<8x8xf32>
    %66 = arith.mulf %63, %65 : vector<8x8xf32>
    %67 = arith.truncf %66 : vector<8x8xf32> to vector<8x8xbf16>
    %c8 = arith.constant 8 : index
    %c0_34 = arith.constant 0 : index
    %68 = vector.load %arg10[%c8, %c0_34] : memref<32x32xbf16, #tpu.memory_space<vmem>>, vector<8x32xbf16>
    %cst_35 = arith.constant dense<0.000000e+00> : vector<8x32xf32>
    %69 = tpu.matmul %67, %68, %cst_35 {dimension_numbers = #tpu.dot_dimension_numbers<[1], [0], [0], [1], [0, 0, 1, 1], [], []>} : vector<8x8xbf16>, vector<8x32xbf16>, vector<8x32xf32> -> vector<8x32xf32>
    %70 = arith.addf %50, %69 : vector<8x32xf32>
    %71 = vector.extract_strided_slice %27 {offsets = [0, 16], sizes = [8, 8], strides = [1, 1]} : vector<8x32xbf16> to vector<8x8xbf16>
    %72 = vector.extract_strided_slice %28 {offsets = [0, 16], sizes = [8, 8], strides = [1, 1]} : vector<8x32xbf16> to vector<8x8xbf16>
    %73 = vector.extract_strided_slice %29 {offsets = [0, 16], sizes = [8, 8], strides = [1, 1]} : vector<8x32xbf16> to vector<8x8xbf16>
    %cst_36 = arith.constant dense<0.000000e+00> : vector<8x8xf32>
    %74 = tpu.matmul %71, %72, %cst_36 {dimension_numbers = #tpu.dot_dimension_numbers<[1], [1], [0], [0], [0, 0, 1, 0], [], []>} : vector<8x8xbf16>, vector<8x8xbf16>, vector<8x8xf32> -> vector<8x8xf32>
    %cst_37 = arith.constant dense<0xFF800000> : vector<8xf32>
    %75 = vector.multi_reduction <maximumf>, %74, %cst_37 [1] : vector<8x8xf32> to vector<8xf32>
    %76 = vector.shape_cast %75 : vector<8xf32> to vector<8x1xf32>
    %77 = vector.broadcast %76 : vector<8x1xf32> to vector<8x8xf32>
    %78 = arith.subf %74, %77 : vector<8x8xf32>
    %79 = math.exp %78 : vector<8x8xf32>
    %cst_38 = arith.constant dense<0.000000e+00> : vector<8xf32>
    %80 = vector.multi_reduction <add>, %79, %cst_38 [1] : vector<8x8xf32> to vector<8xf32>
    %81 = vector.shape_cast %80 : vector<8xf32> to vector<8x1xf32>
    %82 = arith.truncf %79 : vector<8x8xf32> to vector<8x8xbf16>
    %cst_39 = arith.constant dense<0.000000e+00> : vector<8x8xf32>
    %83 = tpu.matmul %82, %73, %cst_39 {dimension_numbers = #tpu.dot_dimension_numbers<[1], [0], [0], [1], [0, 0, 1, 1], [], []>} : vector<8x8xbf16>, vector<8x8xbf16>, vector<8x8xf32> -> vector<8x8xf32>
    %84 = tpu.reciprocal %81 : vector<8x1xf32> -> vector<8x1xf32>
    %85 = vector.broadcast %84 : vector<8x1xf32> to vector<8x8xf32>
    %86 = arith.mulf %83, %85 : vector<8x8xf32>
    %87 = arith.truncf %86 : vector<8x8xf32> to vector<8x8xbf16>
    %c16 = arith.constant 16 : index
    %c0_40 = arith.constant 0 : index
    %88 = vector.load %arg10[%c16, %c0_40] : memref<32x32xbf16, #tpu.memory_space<vmem>>, vector<8x32xbf16>
    %cst_41 = arith.constant dense<0.000000e+00> : vector<8x32xf32>
    %89 = tpu.matmul %87, %88, %cst_41 {dimension_numbers = #tpu.dot_dimension_numbers<[1], [0], [0], [1], [0, 0, 1, 1], [], []>} : vector<8x8xbf16>, vector<8x32xbf16>, vector<8x32xf32> -> vector<8x32xf32>
    %90 = arith.addf %70, %89 : vector<8x32xf32>
    %91 = vector.extract_strided_slice %27 {offsets = [0, 24], sizes = [8, 8], strides = [1, 1]} : vector<8x32xbf16> to vector<8x8xbf16>
    %92 = vector.extract_strided_slice %28 {offsets = [0, 24], sizes = [8, 8], strides = [1, 1]} : vector<8x32xbf16> to vector<8x8xbf16>
    %93 = vector.extract_strided_slice %29 {offsets = [0, 24], sizes = [8, 8], strides = [1, 1]} : vector<8x32xbf16> to vector<8x8xbf16>
    %cst_42 = arith.constant dense<0.000000e+00> : vector<8x8xf32>
    %94 = tpu.matmul %91, %92, %cst_42 {dimension_numbers = #tpu.dot_dimension_numbers<[1], [1], [0], [0], [0, 0, 1, 0], [], []>} : vector<8x8xbf16>, vector<8x8xbf16>, vector<8x8xf32> -> vector<8x8xf32>
    %cst_43 = arith.constant dense<0xFF800000> : vector<8xf32>
    %95 = vector.multi_reduction <maximumf>, %94, %cst_43 [1] : vector<8x8xf32> to vector<8xf32>
    %96 = vector.shape_cast %95 : vector<8xf32> to vector<8x1xf32>
    %97 = vector.broadcast %96 : vector<8x1xf32> to vector<8x8xf32>
    %98 = arith.subf %94, %97 : vector<8x8xf32>
    %99 = math.exp %98 : vector<8x8xf32>
    %cst_44 = arith.constant dense<0.000000e+00> : vector<8xf32>
    %100 = vector.multi_reduction <add>, %99, %cst_44 [1] : vector<8x8xf32> to vector<8xf32>
    %101 = vector.shape_cast %100 : vector<8xf32> to vector<8x1xf32>
    %102 = arith.truncf %99 : vector<8x8xf32> to vector<8x8xbf16>
    %cst_45 = arith.constant dense<0.000000e+00> : vector<8x8xf32>
    %103 = tpu.matmul %102, %93, %cst_45 {dimension_numbers = #tpu.dot_dimension_numbers<[1], [0], [0], [1], [0, 0, 1, 1], [], []>} : vector<8x8xbf16>, vector<8x8xbf16>, vector<8x8xf32> -> vector<8x8xf32>
    %104 = tpu.reciprocal %101 : vector<8x1xf32> -> vector<8x1xf32>
    %105 = vector.broadcast %104 : vector<8x1xf32> to vector<8x8xf32>
    %106 = arith.mulf %103, %105 : vector<8x8xf32>
    %107 = arith.truncf %106 : vector<8x8xf32> to vector<8x8xbf16>
    %c24 = arith.constant 24 : index
    %c0_46 = arith.constant 0 : index
    %108 = vector.load %arg10[%c24, %c0_46] : memref<32x32xbf16, #tpu.memory_space<vmem>>, vector<8x32xbf16>
    %cst_47 = arith.constant dense<0.000000e+00> : vector<8x32xf32>
    %109 = tpu.matmul %107, %108, %cst_47 {dimension_numbers = #tpu.dot_dimension_numbers<[1], [0], [0], [1], [0, 0, 1, 1], [], []>} : vector<8x8xbf16>, vector<8x32xbf16>, vector<8x32xf32> -> vector<8x32xf32>
    %110 = arith.addf %90, %109 : vector<8x32xf32>
    %111 = vector.broadcast %26 : vector<1x32xf32> to vector<8x32xf32>
    %112 = arith.addf %110, %111 : vector<8x32xf32>
    %c0_48 = arith.constant 0 : index
    %c0_49 = arith.constant 0 : index
    %113 = vector.load %arg12[%c0_48, %c0_49] : memref<16x32xf32, #tpu.memory_space<vmem>>, vector<8x32xf32>
    tpu.vector_store %arg12[%c0_48, %c0_49], %112 {strides = array<i32>} : memref<16x32xf32, #tpu.memory_space<vmem>>, vector<8x32xf32>,
    %114 = vector.extract_strided_slice %23 {offsets = [8, 0], sizes = [8, 32], strides = [1, 1]} : vector<16x32xbf16> to vector<8x32xbf16>
    %115 = vector.extract_strided_slice %24 {offsets = [8, 0], sizes = [8, 32], strides = [1, 1]} : vector<16x32xbf16> to vector<8x32xbf16>
    %116 = vector.extract_strided_slice %25 {offsets = [8, 0], sizes = [8, 32], strides = [1, 1]} : vector<16x32xbf16> to vector<8x32xbf16>
    %cst_50 = arith.constant 0.000000e+00 : f32
    %117 = vector.broadcast %cst_50 : f32 to vector<8x32xf32>
    %118 = vector.extract_strided_slice %114 {offsets = [0, 0], sizes = [8, 8], strides = [1, 1]} : vector<8x32xbf16> to vector<8x8xbf16>
    %119 = vector.extract_strided_slice %115 {offsets = [0, 0], sizes = [8, 8], strides = [1, 1]} : vector<8x32xbf16> to vector<8x8xbf16>
    %120 = vector.extract_strided_slice %116 {offsets = [0, 0], sizes = [8, 8], strides = [1, 1]} : vector<8x32xbf16> to vector<8x8xbf16>
    %cst_51 = arith.constant dense<0.000000e+00> : vector<8x8xf32>
    %121 = tpu.matmul %118, %119, %cst_51 {dimension_numbers = #tpu.dot_dimension_numbers<[1], [1], [0], [0], [0, 0, 1, 0], [], []>} : vector<8x8xbf16>, vector<8x8xbf16>, vector<8x8xf32> -> vector<8x8xf32>
    %cst_52 = arith.constant dense<0xFF800000> : vector<8xf32>
    %122 = vector.multi_reduction <maximumf>, %121, %cst_52 [1] : vector<8x8xf32> to vector<8xf32>
    %123 = vector.shape_cast %122 : vector<8xf32> to vector<8x1xf32>
    %124 = vector.broadcast %123 : vector<8x1xf32> to vector<8x8xf32>
    %125 = arith.subf %121, %124 : vector<8x8xf32>
    %126 = math.exp %125 : vector<8x8xf32>
    %cst_53 = arith.constant dense<0.000000e+00> : vector<8xf32>
    %127 = vector.multi_reduction <add>, %126, %cst_53 [1] : vector<8x8xf32> to vector<8xf32>
    %128 = vector.shape_cast %127 : vector<8xf32> to vector<8x1xf32>
    %129 = arith.truncf %126 : vector<8x8xf32> to vector<8x8xbf16>
    %cst_54 = arith.constant dense<0.000000e+00> : vector<8x8xf32>
    %130 = tpu.matmul %129, %120, %cst_54 {dimension_numbers = #tpu.dot_dimension_numbers<[1], [0], [0], [1], [0, 0, 1, 1], [], []>} : vector<8x8xbf16>, vector<8x8xbf16>, vector<8x8xf32> -> vector<8x8xf32>
    %131 = tpu.reciprocal %128 : vector<8x1xf32> -> vector<8x1xf32>
    %132 = vector.broadcast %131 : vector<8x1xf32> to vector<8x8xf32>
    %133 = arith.mulf %130, %132 : vector<8x8xf32>
    %134 = arith.truncf %133 : vector<8x8xf32> to vector<8x8xbf16>
    %c0_55 = arith.constant 0 : index
    %c0_56 = arith.constant 0 : index
    %135 = vector.load %arg10[%c0_55, %c0_56] : memref<32x32xbf16, #tpu.memory_space<vmem>>, vector<8x32xbf16>
    %cst_57 = arith.constant dense<0.000000e+00> : vector<8x32xf32>
    %136 = tpu.matmul %134, %135, %cst_57 {dimension_numbers = #tpu.dot_dimension_numbers<[1], [0], [0], [1], [0, 0, 1, 1], [], []>} : vector<8x8xbf16>, vector<8x32xbf16>, vector<8x32xf32> -> vector<8x32xf32>
    %137 = arith.addf %117, %136 : vector<8x32xf32>
    %138 = vector.extract_strided_slice %114 {offsets = [0, 8], sizes = [8, 8], strides = [1, 1]} : vector<8x32xbf16> to vector<8x8xbf16>
    %139 = vector.extract_strided_slice %115 {offsets = [0, 8], sizes = [8, 8], strides = [1, 1]} : vector<8x32xbf16> to vector<8x8xbf16>
    %140 = vector.extract_strided_slice %116 {offsets = [0, 8], sizes = [8, 8], strides = [1, 1]} : vector<8x32xbf16> to vector<8x8xbf16>
    %cst_58 = arith.constant dense<0.000000e+00> : vector<8x8xf32>
    %141 = tpu.matmul %138, %139, %cst_58 {dimension_numbers = #tpu.dot_dimension_numbers<[1], [1], [0], [0], [0, 0, 1, 0], [], []>} : vector<8x8xbf16>, vector<8x8xbf16>, vector<8x8xf32> -> vector<8x8xf32>
    %cst_59 = arith.constant dense<0xFF800000> : vector<8xf32>
    %142 = vector.multi_reduction <maximumf>, %141, %cst_59 [1] : vector<8x8xf32> to vector<8xf32>
    %143 = vector.shape_cast %142 : vector<8xf32> to vector<8x1xf32>
    %144 = vector.broadcast %143 : vector<8x1xf32> to vector<8x8xf32>
    %145 = arith.subf %141, %144 : vector<8x8xf32>
    %146 = math.exp %145 : vector<8x8xf32>
    %cst_60 = arith.constant dense<0.000000e+00> : vector<8xf32>
    %147 = vector.multi_reduction <add>, %146, %cst_60 [1] : vector<8x8xf32> to vector<8xf32>
    %148 = vector.shape_cast %147 : vector<8xf32> to vector<8x1xf32>
    %149 = arith.truncf %146 : vector<8x8xf32> to vector<8x8xbf16>
    %cst_61 = arith.constant dense<0.000000e+00> : vector<8x8xf32>
    %150 = tpu.matmul %149, %140, %cst_61 {dimension_numbers = #tpu.dot_dimension_numbers<[1], [0], [0], [1], [0, 0, 1, 1], [], []>} : vector<8x8xbf16>, vector<8x8xbf16>, vector<8x8xf32> -> vector<8x8xf32>
    %151 = tpu.reciprocal %148 : vector<8x1xf32> -> vector<8x1xf32>
    %152 = vector.broadcast %151 : vector<8x1xf32> to vector<8x8xf32>
    %153 = arith.mulf %150, %152 : vector<8x8xf32>
    %154 = arith.truncf %153 : vector<8x8xf32> to vector<8x8xbf16>
    %c8_62 = arith.constant 8 : index
    %c0_63 = arith.constant 0 : index
    %155 = vector.load %arg10[%c8_62, %c0_63] : memref<32x32xbf16, #tpu.memory_space<vmem>>, vector<8x32xbf16>
    %cst_64 = arith.constant dense<0.000000e+00> : vector<8x32xf32>
    %156 = tpu.matmul %154, %155, %cst_64 {dimension_numbers = #tpu.dot_dimension_numbers<[1], [0], [0], [1], [0, 0, 1, 1], [], []>} : vector<8x8xbf16>, vector<8x32xbf16>, vector<8x32xf32> -> vector<8x32xf32>
    %157 = arith.addf %137, %156 : vector<8x32xf32>
    %158 = vector.extract_strided_slice %114 {offsets = [0, 16], sizes = [8, 8], strides = [1, 1]} : vector<8x32xbf16> to vector<8x8xbf16>
    %159 = vector.extract_strided_slice %115 {offsets = [0, 16], sizes = [8, 8], strides = [1, 1]} : vector<8x32xbf16> to vector<8x8xbf16>
    %160 = vector.extract_strided_slice %116 {offsets = [0, 16], sizes = [8, 8], strides = [1, 1]} : vector<8x32xbf16> to vector<8x8xbf16>
    %cst_65 = arith.constant dense<0.000000e+00> : vector<8x8xf32>
    %161 = tpu.matmul %158, %159, %cst_65 {dimension_numbers = #tpu.dot_dimension_numbers<[1], [1], [0], [0], [0, 0, 1, 0], [], []>} : vector<8x8xbf16>, vector<8x8xbf16>, vector<8x8xf32> -> vector<8x8xf32>
    %cst_66 = arith.constant dense<0xFF800000> : vector<8xf32>
    %162 = vector.multi_reduction <maximumf>, %161, %cst_66 [1] : vector<8x8xf32> to vector<8xf32>
    %163 = vector.shape_cast %162 : vector<8xf32> to vector<8x1xf32>
    %164 = vector.broadcast %163 : vector<8x1xf32> to vector<8x8xf32>
    %165 = arith.subf %161, %164 : vector<8x8xf32>
    %166 = math.exp %165 : vector<8x8xf32>
    %cst_67 = arith.constant dense<0.000000e+00> : vector<8xf32>
    %167 = vector.multi_reduction <add>, %166, %cst_67 [1] : vector<8x8xf32> to vector<8xf32>
    %168 = vector.shape_cast %167 : vector<8xf32> to vector<8x1xf32>
    %169 = arith.truncf %166 : vector<8x8xf32> to vector<8x8xbf16>
    %cst_68 = arith.constant dense<0.000000e+00> : vector<8x8xf32>
    %170 = tpu.matmul %169, %160, %cst_68 {dimension_numbers = #tpu.dot_dimension_numbers<[1], [0], [0], [1], [0, 0, 1, 1], [], []>} : vector<8x8xbf16>, vector<8x8xbf16>, vector<8x8xf32> -> vector<8x8xf32>
    %171 = tpu.reciprocal %168 : vector<8x1xf32> -> vector<8x1xf32>
    %172 = vector.broadcast %171 : vector<8x1xf32> to vector<8x8xf32>
    %173 = arith.mulf %170, %172 : vector<8x8xf32>
    %174 = arith.truncf %173 : vector<8x8xf32> to vector<8x8xbf16>
    %c16_69 = arith.constant 16 : index
    %c0_70 = arith.constant 0 : index
    %175 = vector.load %arg10[%c16_69, %c0_70] : memref<32x32xbf16, #tpu.memory_space<vmem>>, vector<8x32xbf16>
    %cst_71 = arith.constant dense<0.000000e+00> : vector<8x32xf32>
    %176 = tpu.matmul %174, %175, %cst_71 {dimension_numbers = #tpu.dot_dimension_numbers<[1], [0], [0], [1], [0, 0, 1, 1], [], []>} : vector<8x8xbf16>, vector<8x32xbf16>, vector<8x32xf32> -> vector<8x32xf32>
    %177 = arith.addf %157, %176 : vector<8x32xf32>
    %178 = vector.extract_strided_slice %114 {offsets = [0, 24], sizes = [8, 8], strides = [1, 1]} : vector<8x32xbf16> to vector<8x8xbf16>
    %179 = vector.extract_strided_slice %115 {offsets = [0, 24], sizes = [8, 8], strides = [1, 1]} : vector<8x32xbf16> to vector<8x8xbf16>
    %180 = vector.extract_strided_slice %116 {offsets = [0, 24], sizes = [8, 8], strides = [1, 1]} : vector<8x32xbf16> to vector<8x8xbf16>
    %cst_72 = arith.constant dense<0.000000e+00> : vector<8x8xf32>
    %181 = tpu.matmul %178, %179, %cst_72 {dimension_numbers = #tpu.dot_dimension_numbers<[1], [1], [0], [0], [0, 0, 1, 0], [], []>} : vector<8x8xbf16>, vector<8x8xbf16>, vector<8x8xf32> -> vector<8x8xf32>
    %cst_73 = arith.constant dense<0xFF800000> : vector<8xf32>
    %182 = vector.multi_reduction <maximumf>, %181, %cst_73 [1] : vector<8x8xf32> to vector<8xf32>
    %183 = vector.shape_cast %182 : vector<8xf32> to vector<8x1xf32>
    %184 = vector.broadcast %183 : vector<8x1xf32> to vector<8x8xf32>
    %185 = arith.subf %181, %184 : vector<8x8xf32>
    %186 = math.exp %185 : vector<8x8xf32>
    %cst_74 = arith.constant dense<0.000000e+00> : vector<8xf32>
    %187 = vector.multi_reduction <add>, %186, %cst_74 [1] : vector<8x8xf32> to vector<8xf32>
    %188 = vector.shape_cast %187 : vector<8xf32> to vector<8x1xf32>
    %189 = arith.truncf %186 : vector<8x8xf32> to vector<8x8xbf16>
    %cst_75 = arith.constant dense<0.000000e+00> : vector<8x8xf32>
    %190 = tpu.matmul %189, %180, %cst_75 {dimension_numbers = #tpu.dot_dimension_numbers<[1], [0], [0], [1], [0, 0, 1, 1], [], []>} : vector<8x8xbf16>, vector<8x8xbf16>, vector<8x8xf32> -> vector<8x8xf32>
    %191 = tpu.reciprocal %188 : vector<8x1xf32> -> vector<8x1xf32>
    %192 = vector.broadcast %191 : vector<8x1xf32> to vector<8x8xf32>
    %193 = arith.mulf %190, %192 : vector<8x8xf32>
    %194 = arith.truncf %193 : vector<8x8xf32> to vector<8x8xbf16>
    %c24_76 = arith.constant 24 : index
    %c0_77 = arith.constant 0 : index
    %195 = vector.load %arg10[%c24_76, %c0_77] : memref<32x32xbf16, #tpu.memory_space<vmem>>, vector<8x32xbf16>
    %cst_78 = arith.constant dense<0.000000e+00> : vector<8x32xf32>
    %196 = tpu.matmul %194, %195, %cst_78 {dimension_numbers = #tpu.dot_dimension_numbers<[1], [0], [0], [1], [0, 0, 1, 1], [], []>} : vector<8x8xbf16>, vector<8x32xbf16>, vector<8x32xf32> -> vector<8x32xf32>
    %197 = arith.addf %177, %196 : vector<8x32xf32>
    %198 = vector.broadcast %26 : vector<1x32xf32> to vector<8x32xf32>
    %199 = arith.addf %197, %198 : vector<8x32xf32>
    %c8_79 = arith.constant 8 : index
    %c0_80 = arith.constant 0 : index
    %200 = vector.load %arg12[%c8_79, %c0_80] : memref<16x32xf32, #tpu.memory_space<vmem>>, vector<8x32xf32>
    tpu.vector_store %arg12[%c8_79, %c0_80], %199 {strides = array<i32>} : memref<16x32xf32, #tpu.memory_space<vmem>>, vector<8x32xf32>,
    return
  }
  func.func @transform_0(%arg0: i32) -> (i32, i32) {
    %c0_i32 = arith.constant 0 : i32
    %c0_i32_0 = arith.constant 0 : i32
    return %arg0, %c0_i32 : i32, i32
  }
  func.func @transform_1(%arg0: i32) -> (i32, i32) {
    %c0_i32 = arith.constant 0 : i32
    %c0_i32_0 = arith.constant 0 : i32
    return %arg0, %c0_i32 : i32, i32
  }
  func.func @transform_2(%arg0: i32) -> (i32, i32) {
    %c0_i32 = arith.constant 0 : i32
    %c0_i32_0 = arith.constant 0 : i32
    return %arg0, %c0_i32 : i32, i32
  }
  func.func @transform_3(%arg0: i32) -> (i32, i32) {
    %c0_i32 = arith.constant 0 : i32
    %c0_i32_0 = arith.constant 0 : i32
    %c0_i32_1 = arith.constant 0 : i32
    return %c0_i32, %c0_i32_0 : i32, i32
  }
  func.func @transform_4(%arg0: i32) -> (i32, i32) {
    %c0_i32 = arith.constant 0 : i32
    %c0_i32_0 = arith.constant 0 : i32
    %c0_i32_1 = arith.constant 0 : i32
    return %c0_i32, %c0_i32_0 : i32, i32
  }
  func.func @transform_5(%arg0: i32) -> (i32, i32) {
    %c0_i32 = arith.constant 0 : i32
    %c0_i32_0 = arith.constant 0 : i32
    %c0_i32_1 = arith.constant 0 : i32
    return %c0_i32, %c0_i32_0 : i32, i32
  }
  func.func @transform_6(%arg0: i32) -> (i32, i32) {
    %c0_i32 = arith.constant 0 : i32
    %c0_i32_0 = arith.constant 0 : i32
    %c0_i32_1 = arith.constant 0 : i32
    return %c0_i32, %c0_i32_0 : i32, i32
  }
  func.func @transform_7(%arg0: i32) -> (i32, i32) {
    %c0_i32 = arith.constant 0 : i32
    %c0_i32_0 = arith.constant 0 : i32
    %c0_i32_1 = arith.constant 0 : i32
    return %c0_i32, %c0_i32_0 : i32, i32
  }
  func.func @transform_8(%arg0: i32) -> (i32, i32) {
    %c0_i32 = arith.constant 0 : i32
    %c0_i32_0 = arith.constant 0 : i32
    %c0_i32_1 = arith.constant 0 : i32
    return %c0_i32, %c0_i32_0 : i32, i32
  }
  func.func @transform_9(%arg0: i32) -> (i32, i32) {
    %c0_i32 = arith.constant 0 : i32
    %c0_i32_0 = arith.constant 0 : i32
    %c0_i32_1 = arith.constant 0 : i32
    return %c0_i32, %c0_i32_0 : i32, i32
  }
  func.func @transform_10(%arg0: i32) -> (i32, i32) {
    %c0_i32 = arith.constant 0 : i32
    %c0_i32_0 = arith.constant 0 : i32
    %c0_i32_1 = arith.constant 0 : i32
    return %c0_i32, %c0_i32_0 : i32, i32
  }
  func.func @transform_11(%arg0: i32) -> (i32, i32) {
    %c0_i32 = arith.constant 0 : i32
    %c0_i32_0 = arith.constant 0 : i32
    return %arg0, %c0_i32 : i32, i32
  }
}

module attributes {stable_mosaic.version = 11 : i64} {
  func.func @_mha_kernel(%arg0: i32, %arg1: memref<16x32xf32, #tpu.memory_space<vmem>>, %arg2: memref<16x32xf32, #tpu.memory_space<vmem>>, %arg3: memref<16x32xf32, #tpu.memory_space<vmem>>, %arg4: memref<32x32xbf16, #tpu.memory_space<vmem>>, %arg5: memref<1x32xf32, #tpu.memory_space<vmem>>, %arg6: memref<32x32xbf16, #tpu.memory_space<vmem>>, %arg7: memref<1x32xf32, #tpu.memory_space<vmem>>, %arg8: memref<32x32xbf16, #tpu.memory_space<vmem>>, %arg9: memref<1x32xf32, #tpu.memory_space<vmem>>, %arg10: memref<32x32xbf16, #tpu.memory_space<vmem>>, %arg11: memref<1x32xf32, #tpu.memory_space<vmem>>, %arg12: memref<16x32xf32, #tpu.memory_space<vmem>>) attributes {dimension_semantics = [#tpu.dimension_semantics<parallel>], iteration_bounds = array<i64: 1>, scalar_prefetch = 0 : i64, scratch_operands = 0 : i64, tpu.core_type = #tpu.core_type<tc>, window_params = [{transform_indices = @transform_0, window_bounds = array<i64: 16, 32>}, {transform_indices = @transform_1, window_bounds = array<i64: 16, 32>}, {transform_indices = @transform_2, window_bounds = array<i64: 16, 32>}, {pipeline_mode = #tpu.pipeline_mode<synchronous>, transform_indices = @transform_3, window_bounds = array<i64: 32, 32>}, {pipeline_mode = #tpu.pipeline_mode<synchronous>, transform_indices = @transform_4, window_bounds = array<i64: 1, 32>}, {pipeline_mode = #tpu.pipeline_mode<synchronous>, transform_indices = @transform_5, window_bounds = array<i64: 32, 32>}, {pipeline_mode = #tpu.pipeline_mode<synchronous>, transform_indices = @transform_6, window_bounds = array<i64: 1, 32>}, {pipeline_mode = #tpu.pipeline_mode<synchronous>, transform_indices = @transform_7, window_bounds = array<i64: 32, 32>}, {pipeline_mode = #tpu.pipeline_mode<synchronous>, transform_indices = @transform_8, window_bounds = array<i64: 1, 32>}, {pipeline_mode = #tpu.pipeline_mode<synchronous>, transform_indices = @transform_9, window_bounds = array<i64: 32, 32>}, {pipeline_mode = #tpu.pipeline_mode<synchronous>, transform_indices = @transform_10, window_bounds = array<i64: 1, 32>}, {transform_indices = @transform_11, window_bounds = array<i64: 16, 32>}]} {
    %c0 = arith.constant 0 : index
    %c0_0 = arith.constant 0 : index
    %0 = vector.load %arg1[%c0, %c0_0] : memref<16x32xf32, #tpu.memory_space<vmem>>, vector<16x32xf32>
    %1 = arith.truncf %0 : vector<16x32xf32> to vector<16x32xbf16>
    %c0_1 = arith.constant 0 : index
    %c0_2 = arith.constant 0 : index
    %2 = vector.load %arg2[%c0_1, %c0_2] : memref<16x32xf32, #tpu.memory_space<vmem>>, vector<16x32xf32>
    %3 = arith.truncf %2 : vector<16x32xf32> to vector<16x32xbf16>
    %c0_3 = arith.constant 0 : index
    %c0_4 = arith.constant 0 : index
    %4 = vector.load %arg3[%c0_3, %c0_4] : memref<16x32xf32, #tpu.memory_space<vmem>>, vector<16x32xf32>
    %5 = arith.truncf %4 : vector<16x32xf32> to vector<16x32xbf16>
    %c0_5 = arith.constant 0 : index
    %c0_6 = arith.constant 0 : index
    %6 = vector.load %arg4[%c0_5, %c0_6] : memref<32x32xbf16, #tpu.memory_space<vmem>>, vector<32x32xbf16>
    %cst = arith.constant dense<0.000000e+00> : vector<16x32xf32>
    %7 = tpu.matmul %1, %6, %cst {dimension_numbers = #tpu.dot_dimension_numbers<[1], [0], [0], [1], [0, 0, 1, 1], [], []>} : vector<16x32xbf16>, vector<32x32xbf16>, vector<16x32xf32> -> vector<16x32xf32>
    %c0_7 = arith.constant 0 : index
    %c0_8 = arith.constant 0 : index
    %8 = vector.load %arg5[%c0_7, %c0_8] : memref<1x32xf32, #tpu.memory_space<vmem>>, vector<1x32xf32>
    %9 = vector.broadcast %8 : vector<1x32xf32> to vector<16x32xf32>
    %10 = arith.addf %7, %9 : vector<16x32xf32>
    %c0_9 = arith.constant 0 : index
    %c0_10 = arith.constant 0 : index
    %11 = vector.load %arg6[%c0_9, %c0_10] : memref<32x32xbf16, #tpu.memory_space<vmem>>, vector<32x32xbf16>
    %cst_11 = arith.constant dense<0.000000e+00> : vector<16x32xf32>
    %12 = tpu.matmul %3, %11, %cst_11 {dimension_numbers = #tpu.dot_dimension_numbers<[1], [0], [0], [1], [0, 0, 1, 1], [], []>} : vector<16x32xbf16>, vector<32x32xbf16>, vector<16x32xf32> -> vector<16x32xf32>
    %c0_12 = arith.constant 0 : index
    %c0_13 = arith.constant 0 : index
    %13 = vector.load %arg7[%c0_12, %c0_13] : memref<1x32xf32, #tpu.memory_space<vmem>>, vector<1x32xf32>
    %14 = vector.broadcast %13 : vector<1x32xf32> to vector<16x32xf32>
    %15 = arith.addf %12, %14 : vector<16x32xf32>
    %c0_14 = arith.constant 0 : index
    %c0_15 = arith.constant 0 : index
    %16 = vector.load %arg8[%c0_14, %c0_15] : memref<32x32xbf16, #tpu.memory_space<vmem>>, vector<32x32xbf16>
    %cst_16 = arith.constant dense<0.000000e+00> : vector<16x32xf32>
    %17 = tpu.matmul %5, %16, %cst_16 {dimension_numbers = #tpu.dot_dimension_numbers<[1], [0], [0], [1], [0, 0, 1, 1], [], []>} : vector<16x32xbf16>, vector<32x32xbf16>, vector<16x32xf32> -> vector<16x32xf32>
    %c0_17 = arith.constant 0 : index
    %c0_18 = arith.constant 0 : index
    %18 = vector.load %arg9[%c0_17, %c0_18] : memref<1x32xf32, #tpu.memory_space<vmem>>, vector<1x32xf32>
    %19 = vector.broadcast %18 : vector<1x32xf32> to vector<16x32xf32>
    %20 = arith.addf %17, %19 : vector<16x32xf32>
    %cst_19 = arith.constant 0.176776692 : f32
    %21 = vector.broadcast %cst_19 : f32 to vector<16x32xf32>
    %22 = arith.mulf %10, %21 : vector<16x32xf32>
    %23 = arith.truncf %22 : vector<16x32xf32> to vector<16x32xbf16>
    %24 = arith.truncf %15 : vector<16x32xf32> to vector<16x32xbf16>
    %25 = arith.truncf %20 : vector<16x32xf32> to vector<16x32xbf16>
    %c0_20 = arith.constant 0 : index
    %c0_21 = arith.constant 0 : index
    %26 = vector.load %arg11[%c0_20, %c0_21] : memref<1x32xf32, #tpu.memory_space<vmem>>, vector<1x32xf32>
    %27 = vector.extract_strided_slice %23 {offsets = [0, 0], sizes = [8, 32], strides = [1, 1]} : vector<16x32xbf16> to vector<8x32xbf16>
    %28 = vector.extract_strided_slice %24 {offsets = [0, 0], sizes = [8, 32], strides = [1, 1]} : vector<16x32xbf16> to vector<8x32xbf16>
    %29 = vector.extract_strided_slice %25 {offsets = [0, 0], sizes = [8, 32], strides = [1, 1]} : vector<16x32xbf16> to vector<8x32xbf16>
    %cst_22 = arith.constant 0.000000e+00 : f32
    %30 = vector.broadcast %cst_22 : f32 to vector<8x32xf32>
    %31 = vector.extract_strided_slice %27 {offsets = [0, 0], sizes = [8, 8], strides = [1, 1]} : vector<8x32xbf16> to vector<8x8xbf16>
    %32 = vector.extract_strided_slice %28 {offsets = [0, 0], sizes = [8, 8], strides = [1, 1]} : vector<8x32xbf16> to vector<8x8xbf16>
    %33 = vector.extract_strided_slice %29 {offsets = [0, 0], sizes = [8, 8], strides = [1, 1]} : vector<8x32xbf16> to vector<8x8xbf16>
    %cst_23 = arith.constant dense<0.000000e+00> : vector<8x8xf32>
    %34 = tpu.matmul %31, %32, %cst_23 {dimension_numbers = #tpu.dot_dimension_numbers<[1], [1], [0], [0], [0, 0, 1, 0], [], []>} : vector<8x8xbf16>, vector<8x8xbf16>, vector<8x8xf32> -> vector<8x8xf32>
    %cst_24 = arith.constant dense<0xFF800000> : vector<8xf32>
    %35 = vector.multi_reduction <maximumf>, %34, %cst_24 [1] : vector<8x8xf32> to vector<8xf32>
    %36 = vector.shape_cast %35 : vector<8xf32> to vector<8x1xf32>
    %37 = vector.broadcast %36 : vector<8x1xf32> to vector<8x8xf32>
    %38 = arith.subf %34, %37 : vector<8x8xf32>
    %39 = math.exp %38 : vector<8x8xf32>
    %cst_25 = arith.constant dense<0.000000e+00> : vector<8xf32>
    %40 = vector.multi_reduction <add>, %39, %cst_25 [1] : vector<8x8xf32> to vector<8xf32>
    %41 = vector.shape_cast %40 : vector<8xf32> to vector<8x1xf32>
    %42 = arith.truncf %39 : vector<8x8xf32> to vector<8x8xbf16>
    %cst_26 = arith.constant dense<0.000000e+00> : vector<8x8xf32>
    %43 = tpu.matmul %42, %33, %cst_26 {dimension_numbers = #tpu.dot_dimension_numbers<[1], [0], [0], [1], [0, 0, 1, 1], [], []>} : vector<8x8xbf16>, vector<8x8xbf16>, vector<8x8xf32> -> vector<8x8xf32>
    %44 = tpu.reciprocal %41 : vector<8x1xf32> -> vector<8x1xf32>
    %45 = vector.broadcast %44 : vector<8x1xf32> to vector<8x8xf32>
    %46 = arith.mulf %43, %45 : vector<8x8xf32>
    %47 = arith.truncf %46 : vector<8x8xf32> to vector<8x8xbf16>
    %c0_27 = arith.constant 0 : index
    %c0_28 = arith.constant 0 : index
    %48 = vector.load %arg10[%c0_27, %c0_28] : memref<32x32xbf16, #tpu.memory_space<vmem>>, vector<8x32xbf16>
    %cst_29 = arith.constant dense<0.000000e+00> : vector<8x32xf32>
    %49 = tpu.matmul %47, %48, %cst_29 {dimension_numbers = #tpu.dot_dimension_numbers<[1], [0], [0], [1], [0, 0, 1, 1], [], []>} : vector<8x8xbf16>, vector<8x32xbf16>, vector<8x32xf32> -> vector<8x32xf32>
    %50 = arith.addf %30, %49 : vector<8x32xf32>
    %51 = vector.extract_strided_slice %27 {offsets = [0, 8], sizes = [8, 8], strides = [1, 1]} : vector<8x32xbf16> to vector<8x8xbf16>
    %52 = vector.extract_strided_slice %28 {offsets = [0, 8], sizes = [8, 8], strides = [1, 1]} : vector<8x32xbf16> to vector<8x8xbf16>
    %53 = vector.extract_strided_slice %29 {offsets = [0, 8], sizes = [8, 8], strides = [1, 1]} : vector<8x32xbf16> to vector<8x8xbf16>
    %cst_30 = arith.constant dense<0.000000e+00> : vector<8x8xf32>
    %54 = tpu.matmul %51, %52, %cst_30 {dimension_numbers = #tpu.dot_dimension_numbers<[1], [1], [0], [0], [0, 0, 1, 0], [], []>} : vector<8x8xbf16>, vector<8x8xbf16>, vector<8x8xf32> -> vector<8x8xf32>
    %cst_31 = arith.constant dense<0xFF800000> : vector<8xf32>
    %55 = vector.multi_reduction <maximumf>, %54, %cst_31 [1] : vector<8x8xf32> to vector<8xf32>
    %56 = vector.shape_cast %55 : vector<8xf32> to vector<8x1xf32>
    %57 = vector.broadcast %56 : vector<8x1xf32> to vector<8x8xf32>
    %58 = arith.subf %54, %57 : vector<8x8xf32>
    %59 = math.exp %58 : vector<8x8xf32>
    %cst_32 = arith.constant dense<0.000000e+00> : vector<8xf32>
    %60 = vector.multi_reduction <add>, %59, %cst_32 [1] : vector<8x8xf32> to vector<8xf32>
    %61 = vector.shape_cast %60 : vector<8xf32> to vector<8x1xf32>
    %62 = arith.truncf %59 : vector<8x8xf32> to vector<8x8xbf16>
    %cst_33 = arith.constant dense<0.000000e+00> : vector<8x8xf32>
    %63 = tpu.matmul %62, %53, %cst_33 {dimension_numbers = #tpu.dot_dimension_numbers<[1], [0], [0], [1], [0, 0, 1, 1], [], []>} : vector<8x8xbf16>, vector<8x8xbf16>, vector<8x8xf32> -> vector<8x8xf32>
    %64 = tpu.reciprocal %61 : vector<8x1xf32> -> vector<8x1xf32>
    %65 = vector.broadcast %64 : vector<8x1xf32> to vector<8x8xf32>
    %66 = arith.mulf %63, %65 : vector<8x8xf32>
    %67 = arith.truncf %66 : vector<8x8xf32> to vector<8x8xbf16>
    %c8 = arith.constant 8 : index
    %c0_34 = arith.constant 0 : index
    %68 = vector.load %arg10[%c8, %c0_34] : memref<32x32xbf16, #tpu.memory_space<vmem>>, vector<8x32xbf16>
    %cst_35 = arith.constant dense<0.000000e+00> : vector<8x32xf32>
    %69 = tpu.matmul %67, %68, %cst_35 {dimension_numbers = #tpu.dot_dimension_numbers<[1], [0], [0], [1], [0, 0, 1, 1], [], []>} : vector<8x8xbf16>, vector<8x32xbf16>, vector<8x32xf32> -> vector<8x32xf32>
    %70 = arith.addf %50, %69 : vector<8x32xf32>
    %71 = vector.extract_strided_slice %27 {offsets = [0, 16], sizes = [8, 8], strides = [1, 1]} : vector<8x32xbf16> to vector<8x8xbf16>
    %72 = vector.extract_strided_slice %28 {offsets = [0, 16], sizes = [8, 8], strides = [1, 1]} : vector<8x32xbf16> to vector<8x8xbf16>
    %73 = vector.extract_strided_slice %29 {offsets = [0, 16], sizes = [8, 8], strides = [1, 1]} : vector<8x32xbf16> to vector<8x8xbf16>
    %cst_36 = arith.constant dense<0.000000e+00> : vector<8x8xf32>
    %74 = tpu.matmul %71, %72, %cst_36 {dimension_numbers = #tpu.dot_dimension_numbers<[1], [1], [0], [0], [0, 0, 1, 0], [], []>} : vector<8x8xbf16>, vector<8x8xbf16>, vector<8x8xf32> -> vector<8x8xf32>
    %cst_37 = arith.constant dense<0xFF800000> : vector<8xf32>
    %75 = vector.multi_reduction <maximumf>, %74, %cst_37 [1] : vector<8x8xf32> to vector<8xf32>
    %76 = vector.shape_cast %75 : vector<8xf32> to vector<8x1xf32>
    %77 = vector.broadcast %76 : vector<8x1xf32> to vector<8x8xf32>
    %78 = arith.subf %74, %77 : vector<8x8xf32>
    %79 = math.exp %78 : vector<8x8xf32>
    %cst_38 = arith.constant dense<0.000000e+00> : vector<8xf32>
    %80 = vector.multi_reduction <add>, %79, %cst_38 [1] : vector<8x8xf32> to vector<8xf32>
    %81 = vector.shape_cast %80 : vector<8xf32> to vector<8x1xf32>
    %82 = arith.truncf %79 : vector<8x8xf32> to vector<8x8xbf16>
    %cst_39 = arith.constant dense<0.000000e+00> : vector<8x8xf32>
    %83 = tpu.matmul %82, %73, %cst_39 {dimension_numbers = #tpu.dot_dimension_numbers<[1], [0], [0], [1], [0, 0, 1, 1], [], []>} : vector<8x8xbf16>, vector<8x8xbf16>, vector<8x8xf32> -> vector<8x8xf32>
    %84 = tpu.reciprocal %81 : vector<8x1xf32> -> vector<8x1xf32>
    %85 = vector.broadcast %84 : vector<8x1xf32> to vector<8x8xf32>
    %86 = arith.mulf %83, %85 : vector<8x8xf32>
    %87 = arith.truncf %86 : vector<8x8xf32> to vector<8x8xbf16>
    %c16 = arith.constant 16 : index
    %c0_40 = arith.constant 0 : index
    %88 = vector.load %arg10[%c16, %c0_40] : memref<32x32xbf16, #tpu.memory_space<vmem>>, vector<8x32xbf16>
    %cst_41 = arith.constant dense<0.000000e+00> : vector<8x32xf32>
    %89 = tpu.matmul %87, %88, %cst_41 {dimension_numbers = #tpu.dot_dimension_numbers<[1], [0], [0], [1], [0, 0, 1, 1], [], []>} : vector<8x8xbf16>, vector<8x32xbf16>, vector<8x32xf32> -> vector<8x32xf32>
    %90 = arith.addf %70, %89 : vector<8x32xf32>
    %91 = vector.extract_strided_slice %27 {offsets = [0, 24], sizes = [8, 8], strides = [1, 1]} : vector<8x32xbf16> to vector<8x8xbf16>
    %92 = vector.extract_strided_slice %28 {offsets = [0, 24], sizes = [8, 8], strides = [1, 1]} : vector<8x32xbf16> to vector<8x8xbf16>
    %93 = vector.extract_strided_slice %29 {offsets = [0, 24], sizes = [8, 8], strides = [1, 1]} : vector<8x32xbf16> to vector<8x8xbf16>
    %cst_42 = arith.constant dense<0.000000e+00> : vector<8x8xf32>
    %94 = tpu.matmul %91, %92, %cst_42 {dimension_numbers = #tpu.dot_dimension_numbers<[1], [1], [0], [0], [0, 0, 1, 0], [], []>} : vector<8x8xbf16>, vector<8x8xbf16>, vector<8x8xf32> -> vector<8x8xf32>
    %cst_43 = arith.constant dense<0xFF800000> : vector<8xf32>
    %95 = vector.multi_reduction <maximumf>, %94, %cst_43 [1] : vector<8x8xf32> to vector<8xf32>
    %96 = vector.shape_cast %95 : vector<8xf32> to vector<8x1xf32>
    %97 = vector.broadcast %96 : vector<8x1xf32> to vector<8x8xf32>
    %98 = arith.subf %94, %97 : vector<8x8xf32>
    %99 = math.exp %98 : vector<8x8xf32>
    %cst_44 = arith.constant dense<0.000000e+00> : vector<8xf32>
    %100 = vector.multi_reduction <add>, %99, %cst_44 [1] : vector<8x8xf32> to vector<8xf32>
    %101 = vector.shape_cast %100 : vector<8xf32> to vector<8x1xf32>
    %102 = arith.truncf %99 : vector<8x8xf32> to vector<8x8xbf16>
    %cst_45 = arith.constant dense<0.000000e+00> : vector<8x8xf32>
    %103 = tpu.matmul %102, %93, %cst_45 {dimension_numbers = #tpu.dot_dimension_numbers<[1], [0], [0], [1], [0, 0, 1, 1], [], []>} : vector<8x8xbf16>, vector<8x8xbf16>, vector<8x8xf32> -> vector<8x8xf32>
    %104 = tpu.reciprocal %101 : vector<8x1xf32> -> vector<8x1xf32>
    %105 = vector.broadcast %104 : vector<8x1xf32> to vector<8x8xf32>
    %106 = arith.mulf %103, %105 : vector<8x8xf32>
    %107 = arith.truncf %106 : vector<8x8xf32> to vector<8x8xbf16>
    %c24 = arith.constant 24 : index
    %c0_46 = arith.constant 0 : index
    %108 = vector.load %arg10[%c24, %c0_46] : memref<32x32xbf16, #tpu.memory_space<vmem>>, vector<8x32xbf16>
    %cst_47 = arith.constant dense<0.000000e+00> : vector<8x32xf32>
    %109 = tpu.matmul %107, %108, %cst_47 {dimension_numbers = #tpu.dot_dimension_numbers<[1], [0], [0], [1], [0, 0, 1, 1], [], []>} : vector<8x8xbf16>, vector<8x32xbf16>, vector<8x32xf32> -> vector<8x32xf32>
    %110 = arith.addf %90, %109 : vector<8x32xf32>
    %111 = vector.broadcast %26 : vector<1x32xf32> to vector<8x32xf32>
    %112 = arith.addf %110, %111 : vector<8x32xf32>
    %c0_48 = arith.constant 0 : index
    %c0_49 = arith.constant 0 : index
    %113 = vector.load %arg12[%c0_48, %c0_49] : memref<16x32xf32, #tpu.memory_space<vmem>>, vector<8x32xf32>
    tpu.vector_store %arg12[%c0_48, %c0_49], %112 {strides = array<i32>} : memref<16x32xf32, #tpu.memory_space<vmem>>, vector<8x32xf32>,
    %114 = vector.extract_strided_slice %23 {offsets = [8, 0], sizes = [8, 32], strides = [1, 1]} : vector<16x32xbf16> to vector<8x32xbf16>
    %115 = vector.extract_strided_slice %24 {offsets = [8, 0], sizes = [8, 32], strides = [1, 1]} : vector<16x32xbf16> to vector<8x32xbf16>
    %116 = vector.extract_strided_slice %25 {offsets = [8, 0], sizes = [8, 32], strides = [1, 1]} : vector<16x32xbf16> to vector<8x32xbf16>
    %cst_50 = arith.constant 0.000000e+00 : f32
    %117 = vector.broadcast %cst_50 : f32 to vector<8x32xf32>
    %118 = vector.extract_strided_slice %114 {offsets = [0, 0], sizes = [8, 8], strides = [1, 1]} : vector<8x32xbf16> to vector<8x8xbf16>
    %119 = vector.extract_strided_slice %115 {offsets = [0, 0], sizes = [8, 8], strides = [1, 1]} : vector<8x32xbf16> to vector<8x8xbf16>
    %120 = vector.extract_strided_slice %116 {offsets = [0, 0], sizes = [8, 8], strides = [1, 1]} : vector<8x32xbf16> to vector<8x8xbf16>
    %cst_51 = arith.constant dense<0.000000e+00> : vector<8x8xf32>
    %121 = tpu.matmul %118, %119, %cst_51 {dimension_numbers = #tpu.dot_dimension_numbers<[1], [1], [0], [0], [0, 0, 1, 0], [], []>} : vector<8x8xbf16>, vector<8x8xbf16>, vector<8x8xf32> -> vector<8x8xf32>
    %cst_52 = arith.constant dense<0xFF800000> : vector<8xf32>
    %122 = vector.multi_reduction <maximumf>, %121, %cst_52 [1] : vector<8x8xf32> to vector<8xf32>
    %123 = vector.shape_cast %122 : vector<8xf32> to vector<8x1xf32>
    %124 = vector.broadcast %123 : vector<8x1xf32> to vector<8x8xf32>
    %125 = arith.subf %121, %124 : vector<8x8xf32>
    %126 = math.exp %125 : vector<8x8xf32>
    %cst_53 = arith.constant dense<0.000000e+00> : vector<8xf32>
    %127 = vector.multi_reduction <add>, %126, %cst_53 [1] : vector<8x8xf32> to vector<8xf32>
    %128 = vector.shape_cast %127 : vector<8xf32> to vector<8x1xf32>
    %129 = arith.truncf %126 : vector<8x8xf32> to vector<8x8xbf16>
    %cst_54 = arith.constant dense<0.000000e+00> : vector<8x8xf32>
    %130 = tpu.matmul %129, %120, %cst_54 {dimension_numbers = #tpu.dot_dimension_numbers<[1], [0], [0], [1], [0, 0, 1, 1], [], []>} : vector<8x8xbf16>, vector<8x8xbf16>, vector<8x8xf32> -> vector<8x8xf32>
    %131 = tpu.reciprocal %128 : vector<8x1xf32> -> vector<8x1xf32>
    %132 = vector.broadcast %131 : vector<8x1xf32> to vector<8x8xf32>
    %133 = arith.mulf %130, %132 : vector<8x8xf32>
    %134 = arith.truncf %133 : vector<8x8xf32> to vector<8x8xbf16>
    %c0_55 = arith.constant 0 : index
    %c0_56 = arith.constant 0 : index
    %135 = vector.load %arg10[%c0_55, %c0_56] : memref<32x32xbf16, #tpu.memory_space<vmem>>, vector<8x32xbf16>
    %cst_57 = arith.constant dense<0.000000e+00> : vector<8x32xf32>
    %136 = tpu.matmul %134, %135, %cst_57 {dimension_numbers = #tpu.dot_dimension_numbers<[1], [0], [0], [1], [0, 0, 1, 1], [], []>} : vector<8x8xbf16>, vector<8x32xbf16>, vector<8x32xf32> -> vector<8x32xf32>
    %137 = arith.addf %117, %136 : vector<8x32xf32>
    %138 = vector.extract_strided_slice %114 {offsets = [0, 8], sizes = [8, 8], strides = [1, 1]} : vector<8x32xbf16> to vector<8x8xbf16>
    %139 = vector.extract_strided_slice %115 {offsets = [0, 8], sizes = [8, 8], strides = [1, 1]} : vector<8x32xbf16> to vector<8x8xbf16>
    %140 = vector.extract_strided_slice %116 {offsets = [0, 8], sizes = [8, 8], strides = [1, 1]} : vector<8x32xbf16> to vector<8x8xbf16>
    %cst_58 = arith.constant dense<0.000000e+00> : vector<8x8xf32>
    %141 = tpu.matmul %138, %139, %cst_58 {dimension_numbers = #tpu.dot_dimension_numbers<[1], [1], [0], [0], [0, 0, 1, 0], [], []>} : vector<8x8xbf16>, vector<8x8xbf16>, vector<8x8xf32> -> vector<8x8xf32>
    %cst_59 = arith.constant dense<0xFF800000> : vector<8xf32>
    %142 = vector.multi_reduction <maximumf>, %141, %cst_59 [1] : vector<8x8xf32> to vector<8xf32>
    %143 = vector.shape_cast %142 : vector<8xf32> to vector<8x1xf32>
    %144 = vector.broadcast %143 : vector<8x1xf32> to vector<8x8xf32>
    %145 = arith.subf %141, %144 : vector<8x8xf32>
    %146 = math.exp %145 : vector<8x8xf32>
    %cst_60 = arith.constant dense<0.000000e+00> : vector<8xf32>
    %147 = vector.multi_reduction <add>, %146, %cst_60 [1] : vector<8x8xf32> to vector<8xf32>
    %148 = vector.shape_cast %147 : vector<8xf32> to vector<8x1xf32>
    %149 = arith.truncf %146 : vector<8x8xf32> to vector<8x8xbf16>
    %cst_61 = arith.constant dense<0.000000e+00> : vector<8x8xf32>
    %150 = tpu.matmul %149, %140, %cst_61 {dimension_numbers = #tpu.dot_dimension_numbers<[1], [0], [0], [1], [0, 0, 1, 1], [], []>} : vector<8x8xbf16>, vector<8x8xbf16>, vector<8x8xf32> -> vector<8x8xf32>
    %151 = tpu.reciprocal %148 : vector<8x1xf32> -> vector<8x1xf32>
    %152 = vector.broadcast %151 : vector<8x1xf32> to vector<8x8xf32>
    %153 = arith.mulf %150, %152 : vector<8x8xf32>
    %154 = arith.truncf %153 : vector<8x8xf32> to vector<8x8xbf16>
    %c8_62 = arith.constant 8 : index
    %c0_63 = arith.constant 0 : index
    %155 = vector.load %arg10[%c8_62, %c0_63] : memref<32x32xbf16, #tpu.memory_space<vmem>>, vector<8x32xbf16>
    %cst_64 = arith.constant dense<0.000000e+00> : vector<8x32xf32>
    %156 = tpu.matmul %154, %155, %cst_64 {dimension_numbers = #tpu.dot_dimension_numbers<[1], [0], [0], [1], [0, 0, 1, 1], [], []>} : vector<8x8xbf16>, vector<8x32xbf16>, vector<8x32xf32> -> vector<8x32xf32>
    %157 = arith.addf %137, %156 : vector<8x32xf32>
    %158 = vector.extract_strided_slice %114 {offsets = [0, 16], sizes = [8, 8], strides = [1, 1]} : vector<8x32xbf16> to vector<8x8xbf16>
    %159 = vector.extract_strided_slice %115 {offsets = [0, 16], sizes = [8, 8], strides = [1, 1]} : vector<8x32xbf16> to vector<8x8xbf16>
    %160 = vector.extract_strided_slice %116 {offsets = [0, 16], sizes = [8, 8], strides = [1, 1]} : vector<8x32xbf16> to vector<8x8xbf16>
    %cst_65 = arith.constant dense<0.000000e+00> : vector<8x8xf32>
    %161 = tpu.matmul %158, %159, %cst_65 {dimension_numbers = #tpu.dot_dimension_numbers<[1], [1], [0], [0], [0, 0, 1, 0], [], []>} : vector<8x8xbf16>, vector<8x8xbf16>, vector<8x8xf32> -> vector<8x8xf32>
    %cst_66 = arith.constant dense<0xFF800000> : vector<8xf32>
    %162 = vector.multi_reduction <maximumf>, %161, %cst_66 [1] : vector<8x8xf32> to vector<8xf32>
    %163 = vector.shape_cast %162 : vector<8xf32> to vector<8x1xf32>
    %164 = vector.broadcast %163 : vector<8x1xf32> to vector<8x8xf32>
    %165 = arith.subf %161, %164 : vector<8x8xf32>
    %166 = math.exp %165 : vector<8x8xf32>
    %cst_67 = arith.constant dense<0.000000e+00> : vector<8xf32>
    %167 = vector.multi_reduction <add>, %166, %cst_67 [1] : vector<8x8xf32> to vector<8xf32>
    %168 = vector.shape_cast %167 : vector<8xf32> to vector<8x1xf32>
    %169 = arith.truncf %166 : vector<8x8xf32> to vector<8x8xbf16>
    %cst_68 = arith.constant dense<0.000000e+00> : vector<8x8xf32>
    %170 = tpu.matmul %169, %160, %cst_68 {dimension_numbers = #tpu.dot_dimension_numbers<[1], [0], [0], [1], [0, 0, 1, 1], [], []>} : vector<8x8xbf16>, vector<8x8xbf16>, vector<8x8xf32> -> vector<8x8xf32>
    %171 = tpu.reciprocal %168 : vector<8x1xf32> -> vector<8x1xf32>
    %172 = vector.broadcast %171 : vector<8x1xf32> to vector<8x8xf32>
    %173 = arith.mulf %170, %172 : vector<8x8xf32>
    %174 = arith.truncf %173 : vector<8x8xf32> to vector<8x8xbf16>
    %c16_69 = arith.constant 16 : index
    %c0_70 = arith.constant 0 : index
    %175 = vector.load %arg10[%c16_69, %c0_70] : memref<32x32xbf16, #tpu.memory_space<vmem>>, vector<8x32xbf16>
    %cst_71 = arith.constant dense<0.000000e+00> : vector<8x32xf32>
    %176 = tpu.matmul %174, %175, %cst_71 {dimension_numbers = #tpu.dot_dimension_numbers<[1], [0], [0], [1], [0, 0, 1, 1], [], []>} : vector<8x8xbf16>, vector<8x32xbf16>, vector<8x32xf32> -> vector<8x32xf32>
    %177 = arith.addf %157, %176 : vector<8x32xf32>
    %178 = vector.extract_strided_slice %114 {offsets = [0, 24], sizes = [8, 8], strides = [1, 1]} : vector<8x32xbf16> to vector<8x8xbf16>
    %179 = vector.extract_strided_slice %115 {offsets = [0, 24], sizes = [8, 8], strides = [1, 1]} : vector<8x32xbf16> to vector<8x8xbf16>
    %180 = vector.extract_strided_slice %116 {offsets = [0, 24], sizes = [8, 8], strides = [1, 1]} : vector<8x32xbf16> to vector<8x8xbf16>
    %cst_72 = arith.constant dense<0.000000e+00> : vector<8x8xf32>
    %181 = tpu.matmul %178, %179, %cst_72 {dimension_numbers = #tpu.dot_dimension_numbers<[1], [1], [0], [0], [0, 0, 1, 0], [], []>} : vector<8x8xbf16>, vector<8x8xbf16>, vector<8x8xf32> -> vector<8x8xf32>
    %cst_73 = arith.constant dense<0xFF800000> : vector<8xf32>
    %182 = vector.multi_reduction <maximumf>, %181, %cst_73 [1] : vector<8x8xf32> to vector<8xf32>
    %183 = vector.shape_cast %182 : vector<8xf32> to vector<8x1xf32>
    %184 = vector.broadcast %183 : vector<8x1xf32> to vector<8x8xf32>
    %185 = arith.subf %181, %184 : vector<8x8xf32>
    %186 = math.exp %185 : vector<8x8xf32>
    %cst_74 = arith.constant dense<0.000000e+00> : vector<8xf32>
    %187 = vector.multi_reduction <add>, %186, %cst_74 [1] : vector<8x8xf32> to vector<8xf32>
    %188 = vector.shape_cast %187 : vector<8xf32> to vector<8x1xf32>
    %189 = arith.truncf %186 : vector<8x8xf32> to vector<8x8xbf16>
    %cst_75 = arith.constant dense<0.000000e+00> : vector<8x8xf32>
    %190 = tpu.matmul %189, %180, %cst_75 {dimension_numbers = #tpu.dot_dimension_numbers<[1], [0], [0], [1], [0, 0, 1, 1], [], []>} : vector<8x8xbf16>, vector<8x8xbf16>, vector<8x8xf32> -> vector<8x8xf32>
    %191 = tpu.reciprocal %188 : vector<8x1xf32> -> vector<8x1xf32>
    %192 = vector.broadcast %191 : vector<8x1xf32> to vector<8x8xf32>
    %193 = arith.mulf %190, %192 : vector<8x8xf32>
    %194 = arith.truncf %193 : vector<8x8xf32> to vector<8x8xbf16>
    %c24_76 = arith.constant 24 : index
    %c0_77 = arith.constant 0 : index
    %195 = vector.load %arg10[%c24_76, %c0_77] : memref<32x32xbf16, #tpu.memory_space<vmem>>, vector<8x32xbf16>
    %cst_78 = arith.constant dense<0.000000e+00> : vector<8x32xf32>
    %196 = tpu.matmul %194, %195, %cst_78 {dimension_numbers = #tpu.dot_dimension_numbers<[1], [0], [0], [1], [0, 0, 1, 1], [], []>} : vector<8x8xbf16>, vector<8x32xbf16>, vector<8x32xf32> -> vector<8x32xf32>
    %197 = arith.addf %177, %196 : vector<8x32xf32>
    %198 = vector.broadcast %26 : vector<1x32xf32> to vector<8x32xf32>
    %199 = arith.addf %197, %198 : vector<8x32xf32>
    %c8_79 = arith.constant 8 : index
    %c0_80 = arith.constant 0 : index
    %200 = vector.load %arg12[%c8_79, %c0_80] : memref<16x32xf32, #tpu.memory_space<vmem>>, vector<8x32xf32>
    tpu.vector_store %arg12[%c8_79, %c0_80], %199 {strides = array<i32>} : memref<16x32xf32, #tpu.memory_space<vmem>>, vector<8x32xf32>,
    return
  }
  func.func @transform_0(%arg0: i32) -> (i32, i32) {
    %c0_i32 = arith.constant 0 : i32
    %c0_i32_0 = arith.constant 0 : i32
    return %arg0, %c0_i32 : i32, i32
  }
  func.func @transform_1(%arg0: i32) -> (i32, i32) {
    %c0_i32 = arith.constant 0 : i32
    %c0_i32_0 = arith.constant 0 : i32
    return %arg0, %c0_i32 : i32, i32
  }
  func.func @transform_2(%arg0: i32) -> (i32, i32) {
    %c0_i32 = arith.constant 0 : i32
    %c0_i32_0 = arith.constant 0 : i32
    return %arg0, %c0_i32 : i32, i32
  }
  func.func @transform_3(%arg0: i32) -> (i32, i32) {
    %c0_i32 = arith.constant 0 : i32
    %c0_i32_0 = arith.constant 0 : i32
    %c0_i32_1 = arith.constant 0 : i32
    return %c0_i32, %c0_i32_0 : i32, i32
  }
  func.func @transform_4(%arg0: i32) -> (i32, i32) {
    %c0_i32 = arith.constant 0 : i32
    %c0_i32_0 = arith.constant 0 : i32
    %c0_i32_1 = arith.constant 0 : i32
    return %c0_i32, %c0_i32_0 : i32, i32
  }
  func.func @transform_5(%arg0: i32) -> (i32, i32) {
    %c0_i32 = arith.constant 0 : i32
    %c0_i32_0 = arith.constant 0 : i32
    %c0_i32_1 = arith.constant 0 : i32
    return %c0_i32, %c0_i32_0 : i32, i32
  }
  func.func @transform_6(%arg0: i32) -> (i32, i32) {
    %c0_i32 = arith.constant 0 : i32
    %c0_i32_0 = arith.constant 0 : i32
    %c0_i32_1 = arith.constant 0 : i32
    return %c0_i32, %c0_i32_0 : i32, i32
  }
  func.func @transform_7(%arg0: i32) -> (i32, i32) {
    %c0_i32 = arith.constant 0 : i32
    %c0_i32_0 = arith.constant 0 : i32
    %c0_i32_1 = arith.constant 0 : i32
    return %c0_i32, %c0_i32_0 : i32, i32
  }
  func.func @transform_8(%arg0: i32) -> (i32, i32) {
    %c0_i32 = arith.constant 0 : i32
    %c0_i32_0 = arith.constant 0 : i32
    %c0_i32_1 = arith.constant 0 : i32
    return %c0_i32, %c0_i32_0 : i32, i32
  }
  func.func @transform_9(%arg0: i32) -> (i32, i32) {
    %c0_i32 = arith.constant 0 : i32
    %c0_i32_0 = arith.constant 0 : i32
    %c0_i32_1 = arith.constant 0 : i32
    return %c0_i32, %c0_i32_0 : i32, i32
  }
  func.func @transform_10(%arg0: i32) -> (i32, i32) {
    %c0_i32 = arith.constant 0 : i32
    %c0_i32_0 = arith.constant 0 : i32
    %c0_i32_1 = arith.constant 0 : i32
    return %c0_i32, %c0_i32_0 : i32, i32
  }
  func.func @transform_11(%arg0: i32) -> (i32, i32) {
    %c0_i32 = arith.constant 0 : i32
    %c0_i32_0 = arith.constant 0 : i32
    return %arg0, %c0_i32 : i32, i32
  }
}

</mosaic_0001>

<llo_original>
// kernel: tpu_custom_call.1
$region0: #{tpu_custom_call.1}
  #allocation0 [shape = 'u32[]', space=smem, size = 0x4, offset = 0x4, fixed_abs, tag = 'smem constant byte address 0x4 - core index']
  #allocation1 [shape = 'u32[144,128]{1,0:T(1,128)}', space=vmem, size = 0x12000, scoped, tag = 'internal scratch']
  %s0 = inlined_call_operand.hbm [shape: f32[16,32], index: 0, kind: input, shape index: {}]
  %s1 = inlined_call_operand.hbm [shape: f32[16,32], index: 1, kind: input, shape index: {}]
  %s2 = inlined_call_operand.hbm [shape: f32[16,32], index: 2, kind: input, shape index: {}]
  %s3 = inlined_call_operand.hbm [shape: bf16[32,32], index: 3, kind: input, shape index: {}]
  %s4 = inlined_call_operand.vmem [shape: f32[1,32], index: 4, kind: input, shape index: {}]
  %s5 = inlined_call_operand.vmem [shape: bf16[32,32], index: 5, kind: input, shape index: {}]
  %s6 = inlined_call_operand.vmem [shape: f32[1,32], index: 6, kind: input, shape index: {}]
  %s7 = inlined_call_operand.hbm [shape: bf16[32,32], index: 7, kind: input, shape index: {}]
  %s8 = inlined_call_operand.hbm [shape: f32[1,32], index: 8, kind: input, shape index: {}]
  %s9 = inlined_call_operand.vmem [shape: bf16[32,32], index: 9, kind: input, shape index: {}]
  %s10 = inlined_call_operand.vmem [shape: f32[1,32], index: 10, kind: input, shape index: {}]
  %s11 = inlined_call_operand.hbm [shape: f32[16,32], index: 11, kind: output, shape index: {}]
  %s12 = sld [smem:[#allocation0]]
  $region78: #{tpu_custom_call.1} parent=0
    _
  %s14 = ssub.s32 1, %s12
  %s15 = scalar_select 0, %s14, %s12
  $region1: #{tpu_custom_call.1} parent=0
    #allocation2 [shape = 'u8[8192]{0}', space=vmem, size = 0x2000, scoped, tag = 'input window, operand 0, single buffered']
    #allocation3 [shape = 's32[1]{0}', space=sflag, size = 0x4, scoped, tag = 'scoped memory for tpu_custom_call.1']
    #allocation4 [shape = 's32[1]{0}', space=sflag, size = 0x4, scoped, tag = 'scoped memory for tpu_custom_call.1']
    #allocation5 [shape = 'u8[8192]{0}', space=vmem, size = 0x2000, scoped, tag = 'input window, operand 1, single buffered']
    #allocation6 [shape = 's32[1]{0}', space=sflag, size = 0x4, scoped, tag = 'scoped memory for tpu_custom_call.1']
    #allocation7 [shape = 'u8[8192]{0}', space=vmem, size = 0x2000, scoped, tag = 'input window, operand 2, single buffered']
    #allocation8 [shape = 'u8[8192]{0}', space=vmem, size = 0x2000, scoped, tag = 'input window, operand 3, single buffered']
    #allocation9 [shape = 's32[1]{0}', space=sflag, size = 0x4, scoped, tag = 'scoped memory for tpu_custom_call.1']
    #allocation10 [shape = 'u8[8192]{0}', space=vmem, size = 0x2000, scoped, tag = 'input window, operand 7, single buffered']
    #allocation11 [shape = 'u8[512]{0}', space=vmem, size = 0x400, scoped, tag = 'input window, operand 8, single buffered']
    #allocation12 [shape = 's32[1]{0}', space=sflag, size = 0x4, scoped, tag = 'scoped memory for tpu_custom_call.1']
    #allocation13 [shape = 'u8[8192]{0}', space=vmem, size = 0x2000, scoped, tag = 'output window, operand 0, single buffered']
    %16 = vsyncpa [#allocation3], 0
    %17 = vsyncpa [#allocation6], 0
    %18 = vsyncpa [#allocation9], 0
    %19 = vsyncpa [#allocation12], 0
    %20 = vsyncpa [#allocation4], 0
    // Predicated region
    $region2: #{tpu_custom_call.1} parent=1 // pred_check
      _
    $region3: #{tpu_custom_call.1} parent=1 // pred_check_branch
      %22 = sbr.rel (0) target = $region5
    $region4: #{tpu_custom_call.1} parent=1 // pred_region
      %s24 = ssub.s32 256, 256
      %25 = vsyncadd [#allocation3], %s24
      %s26 = sshll.u32 [#allocation2], 4
      %s27 = int_to_ptr.vmem [resolvable:$true] %s26
      %32 = dma.hbm_to_vmem [thread:$0]  %s0, 256, %s27, [#allocation3], 128, 128, 8
    $region5: #{tpu_custom_call.1} parent=1 // pred_fallthru
      _
    // Predicated region
    $region6: #{tpu_custom_call.1} parent=1 // pred_check
      _
    $region7: #{tpu_custom_call.1} parent=1 // pred_check_branch
      %34 = sbr.rel (0) target = $region9
    $region8: #{tpu_custom_call.1} parent=1 // pred_region
      %s36 = ssub.s32 256, 256
      %37 = vsyncadd [#allocation6], %s36
      %s38 = sshll.u32 [#allocation5], 4
      %s39 = int_to_ptr.vmem [resolvable:$true] %s38
      %44 = dma.hbm_to_vmem [thread:$0]  %s1, 256, %s39, [#allocation6], 128, 128, 8
    $region9: #{tpu_custom_call.1} parent=1 // pred_fallthru
      _
    // Predicated region
    $region10: #{tpu_custom_call.1} parent=1 // pred_check
      _
    $region11: #{tpu_custom_call.1} parent=1 // pred_check_branch
      %46 = sbr.rel (0) target = $region13
    $region12: #{tpu_custom_call.1} parent=1 // pred_region
      %s48 = ssub.s32 256, 256
      %49 = vsyncadd [#allocation6], %s48
      %s50 = sshll.u32 [#allocation7], 4
      %s51 = int_to_ptr.vmem [resolvable:$true] %s50
      %56 = dma.hbm_to_vmem [thread:$0]  %s2, 256, %s51, [#allocation6], 128, 128, 8
    $region13: #{tpu_custom_call.1} parent=1 // pred_fallthru
      _
    // Predicated region
    $region14: #{tpu_custom_call.1} parent=1 // pred_check
      _
    $region15: #{tpu_custom_call.1} parent=1 // pred_check_branch
      %58 = sbr.rel (0) target = $region17
    $region16: #{tpu_custom_call.1} parent=1 // pred_region
      %s60 = ssub.s32 256, 256
      %61 = vsyncadd [#allocation9], %s60
      %s62 = sshll.u32 [#allocation8], 4
      %s63 = int_to_ptr.vmem [resolvable:$true] %s62
      %68 = dma.hbm_to_vmem [thread:$0]  %s3, 256, %s63, [#allocation9], 64, 64, 4
    $region17: #{tpu_custom_call.1} parent=1 // pred_fallthru
      _
    // Predicated region
    $region18: #{tpu_custom_call.1} parent=1 // pred_check
      _
    $region19: #{tpu_custom_call.1} parent=1 // pred_check_branch
      %70 = sbr.rel (0) target = $region21
    $region20: #{tpu_custom_call.1} parent=1 // pred_region
      _
    $region21: #{tpu_custom_call.1} parent=1 // pred_fallthru
      _
    // Predicated region
    $region22: #{tpu_custom_call.1} parent=1 // pred_check
      _
    $region23: #{tpu_custom_call.1} parent=1 // pred_check_branch
      %72 = sbr.rel (0) target = $region25
    $region24: #{tpu_custom_call.1} parent=1 // pred_region
      _
    $region25: #{tpu_custom_call.1} parent=1 // pred_fallthru
      _
    // Predicated region
    $region26: #{tpu_custom_call.1} parent=1 // pred_check
      _
    $region27: #{tpu_custom_call.1} parent=1 // pred_check_branch
      %74 = sbr.rel (0) target = $region29
    $region28: #{tpu_custom_call.1} parent=1 // pred_region
      _
    $region29: #{tpu_custom_call.1} parent=1 // pred_fallthru
      _
    // Predicated region
    $region30: #{tpu_custom_call.1} parent=1 // pred_check
      _
    $region31: #{tpu_custom_call.1} parent=1 // pred_check_branch
      %76 = sbr.rel (0) target = $region33
    $region32: #{tpu_custom_call.1} parent=1 // pred_region
      %s78 = ssub.s32 256, 256
      %79 = vsyncadd [#allocation9], %s78
      %s80 = sshll.u32 [#allocation10], 4
      %s81 = int_to_ptr.vmem [resolvable:$true] %s80
      %86 = dma.hbm_to_vmem [thread:$0]  %s7, 256, %s81, [#allocation9], 64, 64, 4
    $region33: #{tpu_custom_call.1} parent=1 // pred_fallthru
      _
    // Predicated region
    $region34: #{tpu_custom_call.1} parent=1 // pred_check
      _
    $region35: #{tpu_custom_call.1} parent=1 // pred_check_branch
      %88 = sbr.rel (0) target = $region37
    $region36: #{tpu_custom_call.1} parent=1 // pred_region
      %s90 = ssub.s32 16, 16
      %91 = vsyncadd [#allocation12], %s90
      %s93 = sshll.u32 [#allocation11], 4
      %s94 = int_to_ptr.vmem [resolvable:$true] %s93
      %96 = dma.hbm_to_vmem [thread:$0]  %s8, 16, %s94, [#allocation12]
    $region37: #{tpu_custom_call.1} parent=1 // pred_fallthru
      _
    // Predicated region
    $region38: #{tpu_custom_call.1} parent=1 // pred_check
      _
    $region39: #{tpu_custom_call.1} parent=1 // pred_check_branch
      %98 = sbr.rel (0) target = $region41
    $region40: #{tpu_custom_call.1} parent=1 // pred_region
      _
    $region41: #{tpu_custom_call.1} parent=1 // pred_fallthru
      _
    // Predicated region
    $region42: #{tpu_custom_call.1} parent=1 // pred_check
      _
    $region43: #{tpu_custom_call.1} parent=1 // pred_check_branch
      %100 = sbr.rel (0) target = $region45
    $region44: #{tpu_custom_call.1} parent=1 // pred_region
      _
    $region45: #{tpu_custom_call.1} parent=1 // pred_fallthru
      _
    // Predicated region
    $region46: #{tpu_custom_call.1} parent=1 // pred_check
      _
    $region47: #{tpu_custom_call.1} parent=1 // pred_check_branch
      %102 = sbr.rel (0) target = $region49
    $region48: #{tpu_custom_call.1} parent=1 // pred_region
      %103 = dma.done [#allocation3], 256
    $region49: #{tpu_custom_call.1} parent=1 // pred_fallthru
      _
    // Predicated region
    $region50: #{tpu_custom_call.1} parent=1 // pred_check
      _
    $region51: #{tpu_custom_call.1} parent=1 // pred_check_branch
      %105 = sbr.rel (0) target = $region53
    $region52: #{tpu_custom_call.1} parent=1 // pred_region
      %106 = dma.done [#allocation6], 256
    $region53: #{tpu_custom_call.1} parent=1 // pred_fallthru
      _
    // Predicated region
    $region54: #{tpu_custom_call.1} parent=1 // pred_check
      _
    $region55: #{tpu_custom_call.1} parent=1 // pred_check_branch
      %108 = sbr.rel (0) target = $region57
    $region56: #{tpu_custom_call.1} parent=1 // pred_region
      %109 = dma.done [#allocation6], 256
    $region57: #{tpu_custom_call.1} parent=1 // pred_fallthru
      _
    // Predicated region
    $region58: #{tpu_custom_call.1} parent=1 // pred_check
      _
    $region59: #{tpu_custom_call.1} parent=1 // pred_check_branch
      %111 = sbr.rel (0) target = $region61
    $region60: #{tpu_custom_call.1} parent=1 // pred_region
      %112 = dma.done [#allocation9], 256
    $region61: #{tpu_custom_call.1} parent=1 // pred_fallthru
      _
    // Predicated region
    $region62: #{tpu_custom_call.1} parent=1 // pred_check
      _
    $region63: #{tpu_custom_call.1} parent=1 // pred_check_branch
      %114 = sbr.rel (0) target = $region65
    $region64: #{tpu_custom_call.1} parent=1 // pred_region
      %115 = dma.done [#allocation9], 256
    $region65: #{tpu_custom_call.1} parent=1 // pred_fallthru
      _
    // Predicated region
    $region66: #{tpu_custom_call.1} parent=1 // pred_check
      _
    $region67: #{tpu_custom_call.1} parent=1 // pred_check_branch
      %117 = sbr.rel (0) target = $region69
    $region68: #{tpu_custom_call.1} parent=1 // pred_region
      %118 = dma.done [#allocation12], 16
    $region69: #{tpu_custom_call.1} parent=1 // pred_fallthru
      _
    %v120 = vld [vmem:[#allocation2] sm:$0xff]
    %v121 = vld [vmem:[#allocation2 + $0x8] sm:$0xff]
    %v122 = vpack.c.bf16 %v121, %v120
    %v123 = vld [vmem:[#allocation5] sm:$0xff]
    %v124 = vld [vmem:[#allocation5 + $0x8] sm:$0xff]
    %v125 = vpack.c.bf16 %v124, %v123
    %v126 = vld [vmem:[#allocation7] sm:$0xff]
    %v127 = vld [vmem:[#allocation7 + $0x8] sm:$0xff]
    %v128 = vpack.c.bf16 %v127, %v126
    %v129 = vld [vmem:[#allocation8] sm:$0xf]
    %v130 = vld [vmem:[#allocation8 + $0x4] sm:$0xf]
    %v131 = vld [vmem:[#allocation8 + $0x8] sm:$0xf]
    %v132 = vld [vmem:[#allocation8 + $0xc] sm:$0xf]
    %v133 = vld [vmem:[%s4] sm:$0x1]
    %v135 = vlaneseq
    %v136 = vshrl.u32 %v135, 7
    %v137 = vsub.s32 0, %v136
    %v138 = vrot.slane %v133, %v137
    %v144 = vunpack.c.l.b16 %v129
    %v145 = vunpack.c.l.b16 %v130
    %v146 = vunpack.c.l.b16 %v131
    %v147 = vunpack.c.l.b16 %v132
    %v148 = vpack.c.b16 %v145, %v144
    %v149 = vpack.c.b16 %v147, %v146
    %vm152 = vcmask 261120
    %v154 = vsel %vm152, %v122, 0
    %156 = vmatprep.subr.bf16.mxu0 0
    %157 = vmatpush1.bf16.msra.mxu0 %v148
    %158 = vmatprep.subr.bf16.mxu0 0
    %159 = vmatpush1.bf16.msra.mxu0 %v149
    %160 = vmatprep.subr.bf16.mxu0 0
    %161 = vmatpush1.bf16.msra.mxu0 0
    %162 = vmatprep.subr.bf16.mxu0 0
    %163 = vmatpush1.bf16.msra.mxu0 0
    %164 = vmatprep.subr.bf16.mxu0 0
    %165 = vmatpush1.bf16.msra.mxu0 0
    %166 = vmatprep.subr.bf16.mxu0 0
    %167 = vmatpush1.bf16.msra.mxu0 0
    %168 = vmatprep.subr.bf16.mxu0 0
    %169 = vmatpush1.bf16.msra.mxu0 0
    %170 = vmatprep.subr.bf16.mxu0 0
    %171 = vmatpush1.bf16.msra.mxu0 0
    %172 = vmatprep.subr.bf16.mxu0 0
    %173 = vmatpush1.bf16.msra.mxu0 0
    %174 = vmatprep.subr.bf16.mxu0 0
    %175 = vmatpush1.bf16.msra.mxu0 0
    %176 = vmatprep.subr.bf16.mxu0 0
    %177 = vmatpush1.bf16.msra.mxu0 0
    %178 = vmatprep.subr.bf16.mxu0 0
    %179 = vmatpush1.bf16.msra.mxu0 0
    %180 = vmatprep.subr.bf16.mxu0 0
    %181 = vmatpush1.bf16.msra.mxu0 0
    %182 = vmatprep.subr.bf16.mxu0 0
    %183 = vmatpush1.bf16.msra.mxu0 0
    %184 = vmatprep.subr.bf16.mxu0 0
    %185 = vmatpush1.bf16.msra.mxu0 0
    %186 = vmatprep.subr.bf16.mxu0 0
    %187 = vmatpush1.bf16.msra.mxu0 0
    %188 = vmatprep.mubr.bf16.mxu0 0
    %189 = vmatmul.mubr.bf16.gmra.mrb[0].mxu0 %v154
    %v190 = vpop.f32.mrb[0].mxu0
    %v191 = vadd.f32 %v138, %v190
    %v192 = vpop.f32.mrb[0].mxu0
    %v193 = vpop.f32.mrb[0].mxu0
    %v194 = vadd.f32 %v138, %v193
    %v195 = vpop.f32.mrb[0].mxu0
    %196 = vdwg.mxu0
    %v197 = vld [vmem:[%s5] sm:$0xf]
    %v198 = vld [vmem:[%s5 + $0x4] sm:$0xf]
    %v199 = vld [vmem:[%s5 + $0x8] sm:$0xf]
    %v200 = vld [vmem:[%s5 + $0xc] sm:$0xf]
    %v201 = vld [vmem:[%s6] sm:$0x1]
    %v203 = vlaneseq
    %v204 = vshrl.u32 %v203, 7
    %v205 = vsub.s32 0, %v204
    %v206 = vrot.slane %v201, %v205
    %v212 = vunpack.c.l.b16 %v197
    %v213 = vunpack.c.l.b16 %v198
    %v214 = vunpack.c.l.b16 %v199
    %v215 = vunpack.c.l.b16 %v200
    %v216 = vpack.c.b16 %v213, %v212
    %v217 = vpack.c.b16 %v215, %v214
    %v221 = vsel %vm152, %v125, 0
    %223 = vmatprep.subr.bf16.mxu0 0
    %224 = vmatpush1.bf16.msra.mxu0 %v216
    %225 = vmatprep.subr.bf16.mxu0 0
    %226 = vmatpush1.bf16.msra.mxu0 %v217
    %227 = vmatprep.subr.bf16.mxu0 0
    %228 = vmatpush1.bf16.msra.mxu0 0
    %229 = vmatprep.subr.bf16.mxu0 0
    %230 = vmatpush1.bf16.msra.mxu0 0
    %231 = vmatprep.subr.bf16.mxu0 0
    %232 = vmatpush1.bf16.msra.mxu0 0
    %233 = vmatprep.subr.bf16.mxu0 0
    %234 = vmatpush1.bf16.msra.mxu0 0
    %235 = vmatprep.subr.bf16.mxu0 0
    %236 = vmatpush1.bf16.msra.mxu0 0
    %237 = vmatprep.subr.bf16.mxu0 0
    %238 = vmatpush1.bf16.msra.mxu0 0
    %239 = vmatprep.subr.bf16.mxu0 0
    %240 = vmatpush1.bf16.msra.mxu0 0
    %241 = vmatprep.subr.bf16.mxu0 0
    %242 = vmatpush1.bf16.msra.mxu0 0
    %243 = vmatprep.subr.bf16.mxu0 0
    %244 = vmatpush1.bf16.msra.mxu0 0
    %245 = vmatprep.subr.bf16.mxu0 0
    %246 = vmatpush1.bf16.msra.mxu0 0
    %247 = vmatprep.subr.bf16.mxu0 0
    %248 = vmatpush1.bf16.msra.mxu0 0
    %249 = vmatprep.subr.bf16.mxu0 0
    %250 = vmatpush1.bf16.msra.mxu0 0
    %251 = vmatprep.subr.bf16.mxu0 0
    %252 = vmatpush1.bf16.msra.mxu0 0
    %253 = vmatprep.subr.bf16.mxu0 0
    %254 = vmatpush1.bf16.msra.mxu0 0
    %255 = vmatprep.mubr.bf16.mxu0 0
    %256 = vmatmul.mubr.bf16.gmra.mrb[0].mxu0 %v221
    %v257 = vpop.f32.mrb[0].mxu0
    %v258 = vadd.f32 %v206, %v257
    %v259 = vpop.f32.mrb[0].mxu0
    %v260 = vpop.f32.mrb[0].mxu0
    %v261 = vadd.f32 %v206, %v260
    %v262 = vpop.f32.mrb[0].mxu0
    %263 = vdwg.mxu0
    %v264 = vld [vmem:[#allocation10] sm:$0xf]
    %v265 = vld [vmem:[#allocation10 + $0x4] sm:$0xf]
    %v266 = vld [vmem:[#allocation10 + $0x8] sm:$0xf]
    %v267 = vld [vmem:[#allocation10 + $0xc] sm:$0xf]
    %v268 = vld [vmem:[#allocation11] sm:$0x1]
    %v270 = vlaneseq
    %v271 = vshrl.u32 %v270, 7
    %v272 = vsub.s32 0, %v271
    %v273 = vrot.slane %v268, %v272
    %v279 = vunpack.c.l.b16 %v264
    %v280 = vunpack.c.l.b16 %v265
    %v281 = vunpack.c.l.b16 %v266
    %v282 = vunpack.c.l.b16 %v267
    %v283 = vpack.c.b16 %v280, %v279
    %v284 = vpack.c.b16 %v282, %v281
    %v288 = vsel %vm152, %v128, 0
    %290 = vmatprep.subr.bf16.mxu0 0
    %291 = vmatpush1.bf16.msra.mxu0 %v283
    %292 = vmatprep.subr.bf16.mxu0 0
    %293 = vmatpush1.bf16.msra.mxu0 %v284
    %294 = vmatprep.subr.bf16.mxu0 0
    %295 = vmatpush1.bf16.msra.mxu0 0
    %296 = vmatprep.subr.bf16.mxu0 0
    %297 = vmatpush1.bf16.msra.mxu0 0
    %298 = vmatprep.subr.bf16.mxu0 0
    %299 = vmatpush1.bf16.msra.mxu0 0
    %300 = vmatprep.subr.bf16.mxu0 0
    %301 = vmatpush1.bf16.msra.mxu0 0
    %302 = vmatprep.subr.bf16.mxu0 0
    %303 = vmatpush1.bf16.msra.mxu0 0
    %304 = vmatprep.subr.bf16.mxu0 0
    %305 = vmatpush1.bf16.msra.mxu0 0
    %306 = vmatprep.subr.bf16.mxu0 0
    %307 = vmatpush1.bf16.msra.mxu0 0
    %308 = vmatprep.subr.bf16.mxu0 0
    %309 = vmatpush1.bf16.msra.mxu0 0
    %310 = vmatprep.subr.bf16.mxu0 0
    %311 = vmatpush1.bf16.msra.mxu0 0
    %312 = vmatprep.subr.bf16.mxu0 0
    %313 = vmatpush1.bf16.msra.mxu0 0
    %314 = vmatprep.subr.bf16.mxu0 0
    %315 = vmatpush1.bf16.msra.mxu0 0
    %316 = vmatprep.subr.bf16.mxu0 0
    %317 = vmatpush1.bf16.msra.mxu0 0
    %318 = vmatprep.subr.bf16.mxu0 0
    %319 = vmatpush1.bf16.msra.mxu0 0
    %320 = vmatprep.subr.bf16.mxu0 0
    %321 = vmatpush1.bf16.msra.mxu0 0
    %322 = vmatprep.mubr.bf16.mxu0 0
    %323 = vmatmul.mubr.bf16.gmra.mrb[0].mxu0 %v288
    %v324 = vpop.f32.mrb[0].mxu0
    %v325 = vadd.f32 %v273, %v324
    %v326 = vpop.f32.mrb[0].mxu0
    %v327 = vpop.f32.mrb[0].mxu0
    %v328 = vadd.f32 %v273, %v327
    %v329 = vpop.f32.mrb[0].mxu0
    %330 = vdwg.mxu0
    %v331 = vmul.f32 %v191, 0.17677669
    %v332 = vmul.f32 %v194, 0.17677669
    %v333 = vpack.c.bf16 %v332, %v331
    %v334 = vpack.c.bf16 %v261, %v258
    %v335 = vpack.c.bf16 %v328, %v325
    %v336 = vld [vmem:[%s10] sm:$0x1]
    %vm337 = vcmask 64512
    %v339 = vsel %vm337, %v333, 0
    %v342 = vsel %vm337, %v334, 0
    %344 = vmatprep.subr.bf16.mxu0 0
    %345 = vmatpush1.bf16.xpose.msra.mxu0 %v342
    %346 = vmatprep.subr.bf16.mxu0 0
    %347 = vmatpush1.bf16.xpose.msra.mxu0 0
    %348 = vmatprep.subr.bf16.mxu0 0
    %349 = vmatpush1.bf16.xpose.msra.mxu0 0
    %350 = vmatprep.subr.bf16.mxu0 0
    %351 = vmatpush1.bf16.xpose.msra.mxu0 0
    %352 = vmatprep.subr.bf16.mxu0 0
    %353 = vmatpush1.bf16.xpose.msra.mxu0 0
    %354 = vmatprep.subr.bf16.mxu0 0
    %355 = vmatpush1.bf16.xpose.msra.mxu0 0
    %356 = vmatprep.subr.bf16.mxu0 0
    %357 = vmatpush1.bf16.xpose.msra.mxu0 0
    %358 = vmatprep.subr.bf16.mxu0 0
    %359 = vmatpush1.bf16.xpose.msra.mxu0 0
    %360 = vmatprep.subr.bf16.mxu0 0
    %361 = vmatpush1.bf16.xpose.msra.mxu0 0
    %362 = vmatprep.subr.bf16.mxu0 0
    %363 = vmatpush1.bf16.xpose.msra.mxu0 0
    %364 = vmatprep.subr.bf16.mxu0 0
    %365 = vmatpush1.bf16.xpose.msra.mxu0 0
    %366 = vmatprep.subr.bf16.mxu0 0
    %367 = vmatpush1.bf16.xpose.msra.mxu0 0
    %368 = vmatprep.subr.bf16.mxu0 0
    %369 = vmatpush1.bf16.xpose.msra.mxu0 0
    %370 = vmatprep.subr.bf16.mxu0 0
    %371 = vmatpush1.bf16.xpose.msra.mxu0 0
    %372 = vmatprep.subr.bf16.mxu0 0
    %373 = vmatpush1.bf16.xpose.msra.mxu0 0
    %374 = vmatprep.subr.bf16.mxu0 0
    %375 = vmatpush1.bf16.xpose.msra.mxu0 0
    %376 = vmatprep.mubr.bf16.mxu0 0
    %377 = vmatmul.mubr.bf16.gmra.mrb[0].mxu0 %v339
    %v378 = vpop.f32.mrb[0].mxu0
    %v379 = vadd.f32 0.0, %v378
    %v380 = vpop.f32.mrb[0].mxu0
    %v381 = vpop.f32.mrb[0].mxu0
    %v382 = vpop.f32.mrb[0].mxu0
    %383 = vdwg.mxu0
    %v384 = vsel %vm337, %v379, -inf
    %385 = vmax.xlane.f32.xlu0 %v384
    %v386 = vpop.xlane.xlu0 %385
    %v387 = vsub.f32 %v379, %v386
    %v388 = vmul.f32 %v387, 1.442695
    %v389 = vpow.pop %v388
    %v390 = vsel %vm337, %v389, 0.0
    %391 = vadd.xlane.f32.xlu0 %v390
    %v392 = vpop.xlane.xlu0 %391
    %v393 = vpack.c.bf16 %v389, %v389
    %v395 = vsel %vm337, %v393, 0
    %vm397 = vcmask 1043456
    %v399 = vsel %vm397, %v335, 0
    %401 = vmatprep.subr.bf16.mxu0 0
    %402 = vmatpush1.bf16.msra.mxu0 %v399
    %403 = vmatprep.subr.bf16.mxu0 0
    %404 = vmatpush1.bf16.msra.mxu0 0
    %405 = vmatprep.subr.bf16.mxu0 0
    %406 = vmatpush1.bf16.msra.mxu0 0
    %407 = vmatprep.subr.bf16.mxu0 0
    %408 = vmatpush1.bf16.msra.mxu0 0
    %409 = vmatprep.subr.bf16.mxu0 0
    %410 = vmatpush1.bf16.msra.mxu0 0
    %411 = vmatprep.subr.bf16.mxu0 0
    %412 = vmatpush1.bf16.msra.mxu0 0
    %413 = vmatprep.subr.bf16.mxu0 0
    %414 = vmatpush1.bf16.msra.mxu0 0
    %415 = vmatprep.subr.bf16.mxu0 0
    %416 = vmatpush1.bf16.msra.mxu0 0
    %417 = vmatprep.subr.bf16.mxu0 0
    %418 = vmatpush1.bf16.msra.mxu0 0
    %419 = vmatprep.subr.bf16.mxu0 0
    %420 = vmatpush1.bf16.msra.mxu0 0
    %421 = vmatprep.subr.bf16.mxu0 0
    %422 = vmatpush1.bf16.msra.mxu0 0
    %423 = vmatprep.subr.bf16.mxu0 0
    %424 = vmatpush1.bf16.msra.mxu0 0
    %425 = vmatprep.subr.bf16.mxu0 0
    %426 = vmatpush1.bf16.msra.mxu0 0
    %427 = vmatprep.subr.bf16.mxu0 0
    %428 = vmatpush1.bf16.msra.mxu0 0
    %429 = vmatprep.subr.bf16.mxu0 0
    %430 = vmatpush1.bf16.msra.mxu0 0
    %431 = vmatprep.subr.bf16.mxu0 0
    %432 = vmatpush1.bf16.msra.mxu0 0
    %433 = vmatprep.mubr.bf16.mxu0 0
    %434 = vmatmul.mubr.bf16.gmra.mrb[0].mxu0 %v395
    %v435 = vpop.f32.mrb[0].mxu0
    %v436 = vadd.f32 0.0, %v435
    %v437 = vpop.f32.mrb[0].mxu0
    %v438 = vpop.f32.mrb[0].mxu0
    %v439 = vpop.f32.mrb[0].mxu0
    %440 = vdwg.mxu0
    %v441 = vrcp.pop %v392
    %v442 = vmul.f32 %v436, %v441
    %v443 = vpack.c.bf16 %v442, %v442
    %v444 = vld [vmem:[%s9] sm:$0xf]
    %446 = vrot.lane.b32.xlu0 %v333, 120
    %v447 = vpop.permute.xlu0 %446
    %449 = vrot.lane.b32.xlu0 %v334, 120
    %v450 = vpop.permute.xlu0 %449
    %v452 = vsel %vm337, %v447, 0
    %v455 = vsel %vm337, %v450, 0
    %457 = vmatprep.subr.bf16.mxu0 0
    %458 = vmatpush1.bf16.xpose.msra.mxu0 %v455
    %459 = vmatprep.subr.bf16.mxu0 0
    %460 = vmatpush1.bf16.xpose.msra.mxu0 0
    %461 = vmatprep.subr.bf16.mxu0 0
    %462 = vmatpush1.bf16.xpose.msra.mxu0 0
    %463 = vmatprep.subr.bf16.mxu0 0
    %464 = vmatpush1.bf16.xpose.msra.mxu0 0
    %465 = vmatprep.subr.bf16.mxu0 0
    %466 = vmatpush1.bf16.xpose.msra.mxu0 0
    %467 = vmatprep.subr.bf16.mxu0 0
    %468 = vmatpush1.bf16.xpose.msra.mxu0 0
    %469 = vmatprep.subr.bf16.mxu0 0
    %470 = vmatpush1.bf16.xpose.msra.mxu0 0
    %471 = vmatprep.subr.bf16.mxu0 0
    %472 = vmatpush1.bf16.xpose.msra.mxu0 0
    %473 = vmatprep.subr.bf16.mxu0 0
    %474 = vmatpush1.bf16.xpose.msra.mxu0 0
    %475 = vmatprep.subr.bf16.mxu0 0
    %476 = vmatpush1.bf16.xpose.msra.mxu0 0
    %477 = vmatprep.subr.bf16.mxu0 0
    %478 = vmatpush1.bf16.xpose.msra.mxu0 0
    %479 = vmatprep.subr.bf16.mxu0 0
    %480 = vmatpush1.bf16.xpose.msra.mxu0 0
    %481 = vmatprep.subr.bf16.mxu0 0
    %482 = vmatpush1.bf16.xpose.msra.mxu0 0
    %483 = vmatprep.subr.bf16.mxu0 0
    %484 = vmatpush1.bf16.xpose.msra.mxu0 0
    %485 = vmatprep.subr.bf16.mxu0 0
    %486 = vmatpush1.bf16.xpose.msra.mxu0 0
    %487 = vmatprep.subr.bf16.mxu0 0
    %488 = vmatpush1.bf16.xpose.msra.mxu0 0
    %489 = vmatprep.mubr.bf16.mxu0 0
    %490 = vmatmul.mubr.bf16.gmra.mrb[0].mxu0 %v452
    %v491 = vpop.f32.mrb[0].mxu0
    %v492 = vadd.f32 0.0, %v491
    %v493 = vpop.f32.mrb[0].mxu0
    %v494 = vpop.f32.mrb[0].mxu0
    %v495 = vpop.f32.mrb[0].mxu0
    %496 = vdwg.mxu0
    %v497 = vsel %vm337, %v492, -inf
    %498 = vmax.xlane.f32.xlu0 %v497
    %v499 = vpop.xlane.xlu0 %498
    %v500 = vsub.f32 %v492, %v499
    %v501 = vmul.f32 %v500, 1.442695
    %v502 = vpow.pop %v501
    %v503 = vsel %vm337, %v502, 0.0
    %504 = vadd.xlane.f32.xlu0 %v503
    %v505 = vpop.xlane.xlu0 %504
    %v506 = vpack.c.bf16 %v502, %v502
    %508 = vrot.lane.b32.xlu0 %v335, 120
    %v509 = vpop.permute.xlu0 %508
    %v511 = vsel %vm337, %v506, 0
    %v514 = vsel %vm397, %v509, 0
    %516 = vmatprep.subr.bf16.mxu0 0
    %517 = vmatpush1.bf16.msra.mxu0 %v514
    %518 = vmatprep.subr.bf16.mxu0 0
    %519 = vmatpush1.bf16.msra.mxu0 0
    %520 = vmatprep.subr.bf16.mxu0 0
    %521 = vmatpush1.bf16.msra.mxu0 0
    %522 = vmatprep.subr.bf16.mxu0 0
    %523 = vmatpush1.bf16.msra.mxu0 0
    %524 = vmatprep.subr.bf16.mxu0 0
    %525 = vmatpush1.bf16.msra.mxu0 0
    %526 = vmatprep.subr.bf16.mxu0 0
    %527 = vmatpush1.bf16.msra.mxu0 0
    %528 = vmatprep.subr.bf16.mxu0 0
    %529 = vmatpush1.bf16.msra.mxu0 0
    %530 = vmatprep.subr.bf16.mxu0 0
    %531 = vmatpush1.bf16.msra.mxu0 0
    %532 = vmatprep.subr.bf16.mxu0 0
    %533 = vmatpush1.bf16.msra.mxu0 0
    %534 = vmatprep.subr.bf16.mxu0 0
    %535 = vmatpush1.bf16.msra.mxu0 0
    %536 = vmatprep.subr.bf16.mxu0 0
    %537 = vmatpush1.bf16.msra.mxu0 0
    %538 = vmatprep.subr.bf16.mxu0 0
    %539 = vmatpush1.bf16.msra.mxu0 0
    %540 = vmatprep.subr.bf16.mxu0 0
    %541 = vmatpush1.bf16.msra.mxu0 0
    %542 = vmatprep.subr.bf16.mxu0 0
    %543 = vmatpush1.bf16.msra.mxu0 0
    %544 = vmatprep.subr.bf16.mxu0 0
    %545 = vmatpush1.bf16.msra.mxu0 0
    %546 = vmatprep.subr.bf16.mxu0 0
    %547 = vmatpush1.bf16.msra.mxu0 0
    %548 = vmatprep.mubr.bf16.mxu0 0
    %549 = vmatmul.mubr.bf16.gmra.mrb[0].mxu0 %v511
    %v550 = vpop.f32.mrb[0].mxu0
    %v551 = vadd.f32 0.0, %v550
    %v552 = vpop.f32.mrb[0].mxu0
    %v553 = vpop.f32.mrb[0].mxu0
    %v554 = vpop.f32.mrb[0].mxu0
    %555 = vdwg.mxu0
    %v556 = vrcp.pop %v505
    %v557 = vmul.f32 %v551, %v556
    %v558 = vpack.c.bf16 %v557, %v557
    %v559 = vld [vmem:[%s9 + $0x4] sm:$0xf]
    %v561 = vsel %vm337, %v558, 0
    %v564 = vsel %vm397, %v559, 0
    %566 = vmatprep.subr.bf16.mxu0 0
    %567 = vmatpush1.bf16.msra.mxu0 %v564
    %568 = vmatprep.subr.bf16.mxu0 0
    %569 = vmatpush1.bf16.msra.mxu0 0
    %570 = vmatprep.subr.bf16.mxu0 0
    %571 = vmatpush1.bf16.msra.mxu0 0
    %572 = vmatprep.subr.bf16.mxu0 0
    %573 = vmatpush1.bf16.msra.mxu0 0
    %574 = vmatprep.subr.bf16.mxu0 0
    %575 = vmatpush1.bf16.msra.mxu0 0
    %576 = vmatprep.subr.bf16.mxu0 0
    %577 = vmatpush1.bf16.msra.mxu0 0
    %578 = vmatprep.subr.bf16.mxu0 0
    %579 = vmatpush1.bf16.msra.mxu0 0
    %580 = vmatprep.subr.bf16.mxu0 0
    %581 = vmatpush1.bf16.msra.mxu0 0
    %582 = vmatprep.subr.bf16.mxu0 0
    %583 = vmatpush1.bf16.msra.mxu0 0
    %584 = vmatprep.subr.bf16.mxu0 0
    %585 = vmatpush1.bf16.msra.mxu0 0
    %586 = vmatprep.subr.bf16.mxu0 0
    %587 = vmatpush1.bf16.msra.mxu0 0
    %588 = vmatprep.subr.bf16.mxu0 0
    %589 = vmatpush1.bf16.msra.mxu0 0
    %590 = vmatprep.subr.bf16.mxu0 0
    %591 = vmatpush1.bf16.msra.mxu0 0
    %592 = vmatprep.subr.bf16.mxu0 0
    %593 = vmatpush1.bf16.msra.mxu0 0
    %594 = vmatprep.subr.bf16.mxu0 0
    %595 = vmatpush1.bf16.msra.mxu0 0
    %596 = vmatprep.subr.bf16.mxu0 0
    %597 = vmatpush1.bf16.msra.mxu0 0
    %598 = vmatprep.mubr.bf16.mxu0 0
    %599 = vmatmul.mubr.bf16.gmra.mrb[0].mxu0 %v561
    %v600 = vpop.f32.mrb[0].mxu0
    %v601 = vadd.f32 0.0, %v600
    %v602 = vpop.f32.mrb[0].mxu0
    %v603 = vpop.f32.mrb[0].mxu0
    %v604 = vpop.f32.mrb[0].mxu0
    %605 = vdwg.mxu0
    %v607 = vsel %vm337, %v443, 0
    %v610 = vsel %vm397, %v444, 0
    %612 = vmatprep.subr.bf16.mxu0 0
    %613 = vmatpush1.bf16.msra.mxu0 %v610
    %614 = vmatprep.subr.bf16.mxu0 0
    %615 = vmatpush1.bf16.msra.mxu0 0
    %616 = vmatprep.subr.bf16.mxu0 0
    %617 = vmatpush1.bf16.msra.mxu0 0
    %618 = vmatprep.subr.bf16.mxu0 0
    %619 = vmatpush1.bf16.msra.mxu0 0
    %620 = vmatprep.subr.bf16.mxu0 0
    %621 = vmatpush1.bf16.msra.mxu0 0
    %622 = vmatprep.subr.bf16.mxu0 0
    %623 = vmatpush1.bf16.msra.mxu0 0
    %624 = vmatprep.subr.bf16.mxu0 0
    %625 = vmatpush1.bf16.msra.mxu0 0
    %626 = vmatprep.subr.bf16.mxu0 0
    %627 = vmatpush1.bf16.msra.mxu0 0
    %628 = vmatprep.subr.bf16.mxu0 0
    %629 = vmatpush1.bf16.msra.mxu0 0
    %630 = vmatprep.subr.bf16.mxu0 0
    %631 = vmatpush1.bf16.msra.mxu0 0
    %632 = vmatprep.subr.bf16.mxu0 0
    %633 = vmatpush1.bf16.msra.mxu0 0
    %634 = vmatprep.subr.bf16.mxu0 0
    %635 = vmatpush1.bf16.msra.mxu0 0
    %636 = vmatprep.subr.bf16.mxu0 0
    %637 = vmatpush1.bf16.msra.mxu0 0
    %638 = vmatprep.subr.bf16.mxu0 0
    %639 = vmatpush1.bf16.msra.mxu0 0
    %640 = vmatprep.subr.bf16.mxu0 0
    %641 = vmatpush1.bf16.msra.mxu0 0
    %642 = vmatprep.subr.bf16.mxu0 0
    %643 = vmatpush1.bf16.msra.mxu0 0
    %644 = vmatprep.mubr.bf16.mxu0 0
    %645 = vmatmul.mubr.bf16.gmra.mrb[0].mxu0 %v607
    %v646 = vpop.f32.mrb[0].mxu0
    %v647 = vadd.f32 %v601, %v646
    %v648 = vpop.f32.mrb[0].mxu0
    %v649 = vpop.f32.mrb[0].mxu0
    %v650 = vpop.f32.mrb[0].mxu0
    %651 = vdwg.mxu0
    %652 = vrot.lane.b32.xlu0 %v333, 112
    %v653 = vpop.permute.xlu0 %652
    %654 = vrot.lane.b32.xlu0 %v334, 112
    %v655 = vpop.permute.xlu0 %654
    %v657 = vsel %vm337, %v653, 0
    %v660 = vsel %vm337, %v655, 0
    %662 = vmatprep.subr.bf16.mxu0 0
    %663 = vmatpush1.bf16.xpose.msra.mxu0 %v660
    %664 = vmatprep.subr.bf16.mxu0 0
    %665 = vmatpush1.bf16.xpose.msra.mxu0 0
    %666 = vmatprep.subr.bf16.mxu0 0
    %667 = vmatpush1.bf16.xpose.msra.mxu0 0
    %668 = vmatprep.subr.bf16.mxu0 0
    %669 = vmatpush1.bf16.xpose.msra.mxu0 0
    %670 = vmatprep.subr.bf16.mxu0 0
    %671 = vmatpush1.bf16.xpose.msra.mxu0 0
    %672 = vmatprep.subr.bf16.mxu0 0
    %673 = vmatpush1.bf16.xpose.msra.mxu0 0
    %674 = vmatprep.subr.bf16.mxu0 0
    %675 = vmatpush1.bf16.xpose.msra.mxu0 0
    %676 = vmatprep.subr.bf16.mxu0 0
    %677 = vmatpush1.bf16.xpose.msra.mxu0 0
    %678 = vmatprep.subr.bf16.mxu0 0
    %679 = vmatpush1.bf16.xpose.msra.mxu0 0
    %680 = vmatprep.subr.bf16.mxu0 0
    %681 = vmatpush1.bf16.xpose.msra.mxu0 0
    %682 = vmatprep.subr.bf16.mxu0 0
    %683 = vmatpush1.bf16.xpose.msra.mxu0 0
    %684 = vmatprep.subr.bf16.mxu0 0
    %685 = vmatpush1.bf16.xpose.msra.mxu0 0
    %686 = vmatprep.subr.bf16.mxu0 0
    %687 = vmatpush1.bf16.xpose.msra.mxu0 0
    %688 = vmatprep.subr.bf16.mxu0 0
    %689 = vmatpush1.bf16.xpose.msra.mxu0 0
    %690 = vmatprep.subr.bf16.mxu0 0
    %691 = vmatpush1.bf16.xpose.msra.mxu0 0
    %692 = vmatprep.subr.bf16.mxu0 0
    %693 = vmatpush1.bf16.xpose.msra.mxu0 0
    %694 = vmatprep.mubr.bf16.mxu0 0
    %695 = vmatmul.mubr.bf16.gmra.mrb[0].mxu0 %v657
    %v696 = vpop.f32.mrb[0].mxu0
    %v697 = vadd.f32 0.0, %v696
    %v698 = vpop.f32.mrb[0].mxu0
    %v699 = vpop.f32.mrb[0].mxu0
    %v700 = vpop.f32.mrb[0].mxu0
    %701 = vdwg.mxu0
    %v702 = vsel %vm337, %v697, -inf
    %703 = vmax.xlane.f32.xlu0 %v702
    %v704 = vpop.xlane.xlu0 %703
    %v705 = vsub.f32 %v697, %v704
    %v706 = vmul.f32 %v705, 1.442695
    %v707 = vpow.pop %v706
    %v708 = vsel %vm337, %v707, 0.0
    %709 = vadd.xlane.f32.xlu0 %v708
    %v710 = vpop.xlane.xlu0 %709
    %v711 = vpack.c.bf16 %v707, %v707
    %712 = vrot.lane.b32.xlu0 %v335, 112
    %v713 = vpop.permute.xlu0 %712
    %v715 = vsel %vm337, %v711, 0
    %v718 = vsel %vm397, %v713, 0
    %720 = vmatprep.subr.bf16.mxu0 0
    %721 = vmatpush1.bf16.msra.mxu0 %v718
    %722 = vmatprep.subr.bf16.mxu0 0
    %723 = vmatpush1.bf16.msra.mxu0 0
    %724 = vmatprep.subr.bf16.mxu0 0
    %725 = vmatpush1.bf16.msra.mxu0 0
    %726 = vmatprep.subr.bf16.mxu0 0
    %727 = vmatpush1.bf16.msra.mxu0 0
    %728 = vmatprep.subr.bf16.mxu0 0
    %729 = vmatpush1.bf16.msra.mxu0 0
    %730 = vmatprep.subr.bf16.mxu0 0
    %731 = vmatpush1.bf16.msra.mxu0 0
    %732 = vmatprep.subr.bf16.mxu0 0
    %733 = vmatpush1.bf16.msra.mxu0 0
    %734 = vmatprep.subr.bf16.mxu0 0
    %735 = vmatpush1.bf16.msra.mxu0 0
    %736 = vmatprep.subr.bf16.mxu0 0
    %737 = vmatpush1.bf16.msra.mxu0 0
    %738 = vmatprep.subr.bf16.mxu0 0
    %739 = vmatpush1.bf16.msra.mxu0 0
    %740 = vmatprep.subr.bf16.mxu0 0
    %741 = vmatpush1.bf16.msra.mxu0 0
    %742 = vmatprep.subr.bf16.mxu0 0
    %743 = vmatpush1.bf16.msra.mxu0 0
    %744 = vmatprep.subr.bf16.mxu0 0
    %745 = vmatpush1.bf16.msra.mxu0 0
    %746 = vmatprep.subr.bf16.mxu0 0
    %747 = vmatpush1.bf16.msra.mxu0 0
    %748 = vmatprep.subr.bf16.mxu0 0
    %749 = vmatpush1.bf16.msra.mxu0 0
    %750 = vmatprep.subr.bf16.mxu0 0
    %751 = vmatpush1.bf16.msra.mxu0 0
    %752 = vmatprep.mubr.bf16.mxu0 0
    %753 = vmatmul.mubr.bf16.gmra.mrb[0].mxu0 %v715
    %v754 = vpop.f32.mrb[0].mxu0
    %v755 = vadd.f32 0.0, %v754
    %v756 = vpop.f32.mrb[0].mxu0
    %v757 = vpop.f32.mrb[0].mxu0
    %v758 = vpop.f32.mrb[0].mxu0
    %759 = vdwg.mxu0
    %v760 = vrcp.pop %v710
    %v761 = vmul.f32 %v755, %v760
    %v762 = vpack.c.bf16 %v761, %v761
    %v763 = vld [vmem:[%s9 + $0x8] sm:$0xf]
    %v765 = vsel %vm337, %v762, 0
    %v768 = vsel %vm397, %v763, 0
    %770 = vmatprep.subr.bf16.mxu0 0
    %771 = vmatpush1.bf16.msra.mxu0 %v768
    %772 = vmatprep.subr.bf16.mxu0 0
    %773 = vmatpush1.bf16.msra.mxu0 0
    %774 = vmatprep.subr.bf16.mxu0 0
    %775 = vmatpush1.bf16.msra.mxu0 0
    %776 = vmatprep.subr.bf16.mxu0 0
    %777 = vmatpush1.bf16.msra.mxu0 0
    %778 = vmatprep.subr.bf16.mxu0 0
    %779 = vmatpush1.bf16.msra.mxu0 0
    %780 = vmatprep.subr.bf16.mxu0 0
    %781 = vmatpush1.bf16.msra.mxu0 0
    %782 = vmatprep.subr.bf16.mxu0 0
    %783 = vmatpush1.bf16.msra.mxu0 0
    %784 = vmatprep.subr.bf16.mxu0 0
    %785 = vmatpush1.bf16.msra.mxu0 0
    %786 = vmatprep.subr.bf16.mxu0 0
    %787 = vmatpush1.bf16.msra.mxu0 0
    %788 = vmatprep.subr.bf16.mxu0 0
    %789 = vmatpush1.bf16.msra.mxu0 0
    %790 = vmatprep.subr.bf16.mxu0 0
    %791 = vmatpush1.bf16.msra.mxu0 0
    %792 = vmatprep.subr.bf16.mxu0 0
    %793 = vmatpush1.bf16.msra.mxu0 0
    %794 = vmatprep.subr.bf16.mxu0 0
    %795 = vmatpush1.bf16.msra.mxu0 0
    %796 = vmatprep.subr.bf16.mxu0 0
    %797 = vmatpush1.bf16.msra.mxu0 0
    %798 = vmatprep.subr.bf16.mxu0 0
    %799 = vmatpush1.bf16.msra.mxu0 0
    %800 = vmatprep.subr.bf16.mxu0 0
    %801 = vmatpush1.bf16.msra.mxu0 0
    %802 = vmatprep.mubr.bf16.mxu0 0
    %803 = vmatmul.mubr.bf16.gmra.mrb[0].mxu0 %v765
    %v804 = vpop.f32.mrb[0].mxu0
    %v805 = vadd.f32 0.0, %v804
    %v806 = vpop.f32.mrb[0].mxu0
    %v807 = vpop.f32.mrb[0].mxu0
    %v808 = vpop.f32.mrb[0].mxu0
    %809 = vdwg.mxu0
    %v810 = vadd.f32 %v647, %v805
    %811 = vrot.lane.b32.xlu0 %v333, 104
    %v812 = vpop.permute.xlu0 %811
    %813 = vrot.lane.b32.xlu0 %v334, 104
    %v814 = vpop.permute.xlu0 %813
    %v816 = vsel %vm337, %v812, 0
    %v819 = vsel %vm337, %v814, 0
    %821 = vmatprep.subr.bf16.mxu0 0
    %822 = vmatpush1.bf16.xpose.msra.mxu0 %v819
    %823 = vmatprep.subr.bf16.mxu0 0
    %824 = vmatpush1.bf16.xpose.msra.mxu0 0
    %825 = vmatprep.subr.bf16.mxu0 0
    %826 = vmatpush1.bf16.xpose.msra.mxu0 0
    %827 = vmatprep.subr.bf16.mxu0 0
    %828 = vmatpush1.bf16.xpose.msra.mxu0 0
    %829 = vmatprep.subr.bf16.mxu0 0
    %830 = vmatpush1.bf16.xpose.msra.mxu0 0
    %831 = vmatprep.subr.bf16.mxu0 0
    %832 = vmatpush1.bf16.xpose.msra.mxu0 0
    %833 = vmatprep.subr.bf16.mxu0 0
    %834 = vmatpush1.bf16.xpose.msra.mxu0 0
    %835 = vmatprep.subr.bf16.mxu0 0
    %836 = vmatpush1.bf16.xpose.msra.mxu0 0
    %837 = vmatprep.subr.bf16.mxu0 0
    %838 = vmatpush1.bf16.xpose.msra.mxu0 0
    %839 = vmatprep.subr.bf16.mxu0 0
    %840 = vmatpush1.bf16.xpose.msra.mxu0 0
    %841 = vmatprep.subr.bf16.mxu0 0
    %842 = vmatpush1.bf16.xpose.msra.mxu0 0
    %843 = vmatprep.subr.bf16.mxu0 0
    %844 = vmatpush1.bf16.xpose.msra.mxu0 0
    %845 = vmatprep.subr.bf16.mxu0 0
    %846 = vmatpush1.bf16.xpose.msra.mxu0 0
    %847 = vmatprep.subr.bf16.mxu0 0
    %848 = vmatpush1.bf16.xpose.msra.mxu0 0
    %849 = vmatprep.subr.bf16.mxu0 0
    %850 = vmatpush1.bf16.xpose.msra.mxu0 0
    %851 = vmatprep.subr.bf16.mxu0 0
    %852 = vmatpush1.bf16.xpose.msra.mxu0 0
    %853 = vmatprep.mubr.bf16.mxu0 0
    %854 = vmatmul.mubr.bf16.gmra.mrb[0].mxu0 %v816
    %v855 = vpop.f32.mrb[0].mxu0
    %v856 = vadd.f32 0.0, %v855
    %v857 = vpop.f32.mrb[0].mxu0
    %v858 = vpop.f32.mrb[0].mxu0
    %v859 = vpop.f32.mrb[0].mxu0
    %860 = vdwg.mxu0
    %v861 = vsel %vm337, %v856, -inf
    %862 = vmax.xlane.f32.xlu0 %v861
    %v863 = vpop.xlane.xlu0 %862
    %v864 = vsub.f32 %v856, %v863
    %v865 = vmul.f32 %v864, 1.442695
    %v866 = vpow.pop %v865
    %v867 = vsel %vm337, %v866, 0.0
    %868 = vadd.xlane.f32.xlu0 %v867
    %v869 = vpop.xlane.xlu0 %868
    %v870 = vpack.c.bf16 %v866, %v866
    %871 = vrot.lane.b32.xlu0 %v335, 104
    %v872 = vpop.permute.xlu0 %871
    %v874 = vsel %vm337, %v870, 0
    %v877 = vsel %vm397, %v872, 0
    %879 = vmatprep.subr.bf16.mxu0 0
    %880 = vmatpush1.bf16.msra.mxu0 %v877
    %881 = vmatprep.subr.bf16.mxu0 0
    %882 = vmatpush1.bf16.msra.mxu0 0
    %883 = vmatprep.subr.bf16.mxu0 0
    %884 = vmatpush1.bf16.msra.mxu0 0
    %885 = vmatprep.subr.bf16.mxu0 0
    %886 = vmatpush1.bf16.msra.mxu0 0
    %887 = vmatprep.subr.bf16.mxu0 0
    %888 = vmatpush1.bf16.msra.mxu0 0
    %889 = vmatprep.subr.bf16.mxu0 0
    %890 = vmatpush1.bf16.msra.mxu0 0
    %891 = vmatprep.subr.bf16.mxu0 0
    %892 = vmatpush1.bf16.msra.mxu0 0
    %893 = vmatprep.subr.bf16.mxu0 0
    %894 = vmatpush1.bf16.msra.mxu0 0
    %895 = vmatprep.subr.bf16.mxu0 0
    %896 = vmatpush1.bf16.msra.mxu0 0
    %897 = vmatprep.subr.bf16.mxu0 0
    %898 = vmatpush1.bf16.msra.mxu0 0
    %899 = vmatprep.subr.bf16.mxu0 0
    %900 = vmatpush1.bf16.msra.mxu0 0
    %901 = vmatprep.subr.bf16.mxu0 0
    %902 = vmatpush1.bf16.msra.mxu0 0
    %903 = vmatprep.subr.bf16.mxu0 0
    %904 = vmatpush1.bf16.msra.mxu0 0
    %905 = vmatprep.subr.bf16.mxu0 0
    %906 = vmatpush1.bf16.msra.mxu0 0
    %907 = vmatprep.subr.bf16.mxu0 0
    %908 = vmatpush1.bf16.msra.mxu0 0
    %909 = vmatprep.subr.bf16.mxu0 0
    %910 = vmatpush1.bf16.msra.mxu0 0
    %911 = vmatprep.mubr.bf16.mxu0 0
    %912 = vmatmul.mubr.bf16.gmra.mrb[0].mxu0 %v874
    %v913 = vpop.f32.mrb[0].mxu0
    %v914 = vadd.f32 0.0, %v913
    %v915 = vpop.f32.mrb[0].mxu0
    %v916 = vpop.f32.mrb[0].mxu0
    %v917 = vpop.f32.mrb[0].mxu0
    %918 = vdwg.mxu0
    %v919 = vrcp.pop %v869
    %v920 = vmul.f32 %v914, %v919
    %v921 = vpack.c.bf16 %v920, %v920
    %v922 = vld [vmem:[%s9 + $0xc] sm:$0xf]
    %v924 = vsel %vm337, %v921, 0
    %v927 = vsel %vm397, %v922, 0
    %929 = vmatprep.subr.bf16.mxu0 0
    %930 = vmatpush1.bf16.msra.mxu0 %v927
    %931 = vmatprep.subr.bf16.mxu0 0
    %932 = vmatpush1.bf16.msra.mxu0 0
    %933 = vmatprep.subr.bf16.mxu0 0
    %934 = vmatpush1.bf16.msra.mxu0 0
    %935 = vmatprep.subr.bf16.mxu0 0
    %936 = vmatpush1.bf16.msra.mxu0 0
    %937 = vmatprep.subr.bf16.mxu0 0
    %938 = vmatpush1.bf16.msra.mxu0 0
    %939 = vmatprep.subr.bf16.mxu0 0
    %940 = vmatpush1.bf16.msra.mxu0 0
    %941 = vmatprep.subr.bf16.mxu0 0
    %942 = vmatpush1.bf16.msra.mxu0 0
    %943 = vmatprep.subr.bf16.mxu0 0
    %944 = vmatpush1.bf16.msra.mxu0 0
    %945 = vmatprep.subr.bf16.mxu0 0
    %946 = vmatpush1.bf16.msra.mxu0 0
    %947 = vmatprep.subr.bf16.mxu0 0
    %948 = vmatpush1.bf16.msra.mxu0 0
    %949 = vmatprep.subr.bf16.mxu0 0
    %950 = vmatpush1.bf16.msra.mxu0 0
    %951 = vmatprep.subr.bf16.mxu0 0
    %952 = vmatpush1.bf16.msra.mxu0 0
    %953 = vmatprep.subr.bf16.mxu0 0
    %954 = vmatpush1.bf16.msra.mxu0 0
    %955 = vmatprep.subr.bf16.mxu0 0
    %956 = vmatpush1.bf16.msra.mxu0 0
    %957 = vmatprep.subr.bf16.mxu0 0
    %958 = vmatpush1.bf16.msra.mxu0 0
    %959 = vmatprep.subr.bf16.mxu0 0
    %960 = vmatpush1.bf16.msra.mxu0 0
    %961 = vmatprep.mubr.bf16.mxu0 0
    %962 = vmatmul.mubr.bf16.gmra.mrb[0].mxu0 %v924
    %v963 = vpop.f32.mrb[0].mxu0
    %v964 = vadd.f32 0.0, %v963
    %v965 = vpop.f32.mrb[0].mxu0
    %v966 = vpop.f32.mrb[0].mxu0
    %v967 = vpop.f32.mrb[0].mxu0
    %968 = vdwg.mxu0
    %v969 = vadd.f32 %v810, %v964
    %v971 = vlaneseq
    %v972 = vshrl.u32 %v971, 7
    %v973 = vsub.s32 0, %v972
    %v974 = vrot.slane %v336, %v973
    %v976 = vadd.f32 %v969, %v974
    %977 = vst.msk [vmem:[#allocation13] sm:$0xff] %vm152, %v976
    %v978 = vrot.slane %v333, 4
    %v979 = vrot.slane %v334, 4
    %v981 = vsel %vm337, %v978, 0
    %v984 = vsel %vm337, %v979, 0
    %986 = vmatprep.subr.bf16.mxu0 0
    %987 = vmatpush1.bf16.xpose.msra.mxu0 %v984
    %988 = vmatprep.subr.bf16.mxu0 0
    %989 = vmatpush1.bf16.xpose.msra.mxu0 0
    %990 = vmatprep.subr.bf16.mxu0 0
    %991 = vmatpush1.bf16.xpose.msra.mxu0 0
    %992 = vmatprep.subr.bf16.mxu0 0
    %993 = vmatpush1.bf16.xpose.msra.mxu0 0
    %994 = vmatprep.subr.bf16.mxu0 0
    %995 = vmatpush1.bf16.xpose.msra.mxu0 0
    %996 = vmatprep.subr.bf16.mxu0 0
    %997 = vmatpush1.bf16.xpose.msra.mxu0 0
    %998 = vmatprep.subr.bf16.mxu0 0
    %999 = vmatpush1.bf16.xpose.msra.mxu0 0
    %1000 = vmatprep.subr.bf16.mxu0 0
    %1001 = vmatpush1.bf16.xpose.msra.mxu0 0
    %1002 = vmatprep.subr.bf16.mxu0 0
    %1003 = vmatpush1.bf16.xpose.msra.mxu0 0
    %1004 = vmatprep.subr.bf16.mxu0 0
    %1005 = vmatpush1.bf16.xpose.msra.mxu0 0
    %1006 = vmatprep.subr.bf16.mxu0 0
    %1007 = vmatpush1.bf16.xpose.msra.mxu0 0
    %1008 = vmatprep.subr.bf16.mxu0 0
    %1009 = vmatpush1.bf16.xpose.msra.mxu0 0
    %1010 = vmatprep.subr.bf16.mxu0 0
    %1011 = vmatpush1.bf16.xpose.msra.mxu0 0
    %1012 = vmatprep.subr.bf16.mxu0 0
    %1013 = vmatpush1.bf16.xpose.msra.mxu0 0
    %1014 = vmatprep.subr.bf16.mxu0 0
    %1015 = vmatpush1.bf16.xpose.msra.mxu0 0
    %1016 = vmatprep.subr.bf16.mxu0 0
    %1017 = vmatpush1.bf16.xpose.msra.mxu0 0
    %1018 = vmatprep.mubr.bf16.mxu0 0
    %1019 = vmatmul.mubr.bf16.gmra.mrb[0].mxu0 %v981
    %v1020 = vpop.f32.mrb[0].mxu0
    %v1021 = vadd.f32 0.0, %v1020
    %v1022 = vpop.f32.mrb[0].mxu0
    %v1023 = vpop.f32.mrb[0].mxu0
    %v1024 = vpop.f32.mrb[0].mxu0
    %1025 = vdwg.mxu0
    %v1026 = vsel %vm337, %v1021, -inf
    %1027 = vmax.xlane.f32.xlu0 %v1026
    %v1028 = vpop.xlane.xlu0 %1027
    %v1029 = vsub.f32 %v1021, %v1028
    %v1030 = vmul.f32 %v1029, 1.442695
    %v1031 = vpow.pop %v1030
    %v1032 = vsel %vm337, %v1031, 0.0
    %1033 = vadd.xlane.f32.xlu0 %v1032
    %v1034 = vpop.xlane.xlu0 %1033
    %v1035 = vpack.c.bf16 %v1031, %v1031
    %v1036 = vrot.slane %v335, 4
    %v1038 = vsel %vm337, %v1035, 0
    %v1041 = vsel %vm397, %v1036, 0
    %1043 = vmatprep.subr.bf16.mxu0 0
    %1044 = vmatpush1.bf16.msra.mxu0 %v1041
    %1045 = vmatprep.subr.bf16.mxu0 0
    %1046 = vmatpush1.bf16.msra.mxu0 0
    %1047 = vmatprep.subr.bf16.mxu0 0
    %1048 = vmatpush1.bf16.msra.mxu0 0
    %1049 = vmatprep.subr.bf16.mxu0 0
    %1050 = vmatpush1.bf16.msra.mxu0 0
    %1051 = vmatprep.subr.bf16.mxu0 0
    %1052 = vmatpush1.bf16.msra.mxu0 0
    %1053 = vmatprep.subr.bf16.mxu0 0
    %1054 = vmatpush1.bf16.msra.mxu0 0
    %1055 = vmatprep.subr.bf16.mxu0 0
    %1056 = vmatpush1.bf16.msra.mxu0 0
    %1057 = vmatprep.subr.bf16.mxu0 0
    %1058 = vmatpush1.bf16.msra.mxu0 0
    %1059 = vmatprep.subr.bf16.mxu0 0
    %1060 = vmatpush1.bf16.msra.mxu0 0
    %1061 = vmatprep.subr.bf16.mxu0 0
    %1062 = vmatpush1.bf16.msra.mxu0 0
    %1063 = vmatprep.subr.bf16.mxu0 0
    %1064 = vmatpush1.bf16.msra.mxu0 0
    %1065 = vmatprep.subr.bf16.mxu0 0
    %1066 = vmatpush1.bf16.msra.mxu0 0
    %1067 = vmatprep.subr.bf16.mxu0 0
    %1068 = vmatpush1.bf16.msra.mxu0 0
    %1069 = vmatprep.subr.bf16.mxu0 0
    %1070 = vmatpush1.bf16.msra.mxu0 0
    %1071 = vmatprep.subr.bf16.mxu0 0
    %1072 = vmatpush1.bf16.msra.mxu0 0
    %1073 = vmatprep.subr.bf16.mxu0 0
    %1074 = vmatpush1.bf16.msra.mxu0 0
    %1075 = vmatprep.mubr.bf16.mxu0 0
    %1076 = vmatmul.mubr.bf16.gmra.mrb[0].mxu0 %v1038
    %v1077 = vpop.f32.mrb[0].mxu0
    %v1078 = vadd.f32 0.0, %v1077
    %v1079 = vpop.f32.mrb[0].mxu0
    %v1080 = vpop.f32.mrb[0].mxu0
    %v1081 = vpop.f32.mrb[0].mxu0
    %1082 = vdwg.mxu0
    %v1083 = vrcp.pop %v1034
    %v1084 = vmul.f32 %v1078, %v1083
    %v1085 = vpack.c.bf16 %v1084, %v1084
    %v1086 = vld [vmem:[%s9] sm:$0xf]
    %1087 = vrot.lane.b32.xlu0 %v978, 120
    %v1088 = vpop.permute.xlu0 %1087
    %1089 = vrot.lane.b32.xlu0 %v979, 120
    %v1090 = vpop.permute.xlu0 %1089
    %v1092 = vsel %vm337, %v1088, 0
    %v1095 = vsel %vm337, %v1090, 0
    %1097 = vmatprep.subr.bf16.mxu0 0
    %1098 = vmatpush1.bf16.xpose.msra.mxu0 %v1095
    %1099 = vmatprep.subr.bf16.mxu0 0
    %1100 = vmatpush1.bf16.xpose.msra.mxu0 0
    %1101 = vmatprep.subr.bf16.mxu0 0
    %1102 = vmatpush1.bf16.xpose.msra.mxu0 0
    %1103 = vmatprep.subr.bf16.mxu0 0
    %1104 = vmatpush1.bf16.xpose.msra.mxu0 0
    %1105 = vmatprep.subr.bf16.mxu0 0
    %1106 = vmatpush1.bf16.xpose.msra.mxu0 0
    %1107 = vmatprep.subr.bf16.mxu0 0
    %1108 = vmatpush1.bf16.xpose.msra.mxu0 0
    %1109 = vmatprep.subr.bf16.mxu0 0
    %1110 = vmatpush1.bf16.xpose.msra.mxu0 0
    %1111 = vmatprep.subr.bf16.mxu0 0
    %1112 = vmatpush1.bf16.xpose.msra.mxu0 0
    %1113 = vmatprep.subr.bf16.mxu0 0
    %1114 = vmatpush1.bf16.xpose.msra.mxu0 0
    %1115 = vmatprep.subr.bf16.mxu0 0
    %1116 = vmatpush1.bf16.xpose.msra.mxu0 0
    %1117 = vmatprep.subr.bf16.mxu0 0
    %1118 = vmatpush1.bf16.xpose.msra.mxu0 0
    %1119 = vmatprep.subr.bf16.mxu0 0
    %1120 = vmatpush1.bf16.xpose.msra.mxu0 0
    %1121 = vmatprep.subr.bf16.mxu0 0
    %1122 = vmatpush1.bf16.xpose.msra.mxu0 0
    %1123 = vmatprep.subr.bf16.mxu0 0
    %1124 = vmatpush1.bf16.xpose.msra.mxu0 0
    %1125 = vmatprep.subr.bf16.mxu0 0
    %1126 = vmatpush1.bf16.xpose.msra.mxu0 0
    %1127 = vmatprep.subr.bf16.mxu0 0
    %1128 = vmatpush1.bf16.xpose.msra.mxu0 0
    %1129 = vmatprep.mubr.bf16.mxu0 0
    %1130 = vmatmul.mubr.bf16.gmra.mrb[0].mxu0 %v1092
    %v1131 = vpop.f32.mrb[0].mxu0
    %v1132 = vadd.f32 0.0, %v1131
    %v1133 = vpop.f32.mrb[0].mxu0
    %v1134 = vpop.f32.mrb[0].mxu0
    %v1135 = vpop.f32.mrb[0].mxu0
    %1136 = vdwg.mxu0
    %v1137 = vsel %vm337, %v1132, -inf
    %1138 = vmax.xlane.f32.xlu0 %v1137
    %v1139 = vpop.xlane.xlu0 %1138
    %v1140 = vsub.f32 %v1132, %v1139
    %v1141 = vmul.f32 %v1140, 1.442695
    %v1142 = vpow.pop %v1141
    %v1143 = vsel %vm337, %v1142, 0.0
    %1144 = vadd.xlane.f32.xlu0 %v1143
    %v1145 = vpop.xlane.xlu0 %1144
    %v1146 = vpack.c.bf16 %v1142, %v1142
    %1147 = vrot.lane.b32.xlu0 %v1036, 120
    %v1148 = vpop.permute.xlu0 %1147
    %v1150 = vsel %vm337, %v1146, 0
    %v1153 = vsel %vm397, %v1148, 0
    %1155 = vmatprep.subr.bf16.mxu0 0
    %1156 = vmatpush1.bf16.msra.mxu0 %v1153
    %1157 = vmatprep.subr.bf16.mxu0 0
    %1158 = vmatpush1.bf16.msra.mxu0 0
    %1159 = vmatprep.subr.bf16.mxu0 0
    %1160 = vmatpush1.bf16.msra.mxu0 0
    %1161 = vmatprep.subr.bf16.mxu0 0
    %1162 = vmatpush1.bf16.msra.mxu0 0
    %1163 = vmatprep.subr.bf16.mxu0 0
    %1164 = vmatpush1.bf16.msra.mxu0 0
    %1165 = vmatprep.subr.bf16.mxu0 0
    %1166 = vmatpush1.bf16.msra.mxu0 0
    %1167 = vmatprep.subr.bf16.mxu0 0
    %1168 = vmatpush1.bf16.msra.mxu0 0
    %1169 = vmatprep.subr.bf16.mxu0 0
    %1170 = vmatpush1.bf16.msra.mxu0 0
    %1171 = vmatprep.subr.bf16.mxu0 0
    %1172 = vmatpush1.bf16.msra.mxu0 0
    %1173 = vmatprep.subr.bf16.mxu0 0
    %1174 = vmatpush1.bf16.msra.mxu0 0
    %1175 = vmatprep.subr.bf16.mxu0 0
    %1176 = vmatpush1.bf16.msra.mxu0 0
    %1177 = vmatprep.subr.bf16.mxu0 0
    %1178 = vmatpush1.bf16.msra.mxu0 0
    %1179 = vmatprep.subr.bf16.mxu0 0
    %1180 = vmatpush1.bf16.msra.mxu0 0
    %1181 = vmatprep.subr.bf16.mxu0 0
    %1182 = vmatpush1.bf16.msra.mxu0 0
    %1183 = vmatprep.subr.bf16.mxu0 0
    %1184 = vmatpush1.bf16.msra.mxu0 0
    %1185 = vmatprep.subr.bf16.mxu0 0
    %1186 = vmatpush1.bf16.msra.mxu0 0
    %1187 = vmatprep.mubr.bf16.mxu0 0
    %1188 = vmatmul.mubr.bf16.gmra.mrb[0].mxu0 %v1150
    %v1189 = vpop.f32.mrb[0].mxu0
    %v1190 = vadd.f32 0.0, %v1189
    %v1191 = vpop.f32.mrb[0].mxu0
    %v1192 = vpop.f32.mrb[0].mxu0
    %v1193 = vpop.f32.mrb[0].mxu0
    %1194 = vdwg.mxu0
    %v1195 = vrcp.pop %v1145
    %v1196 = vmul.f32 %v1190, %v1195
    %v1197 = vpack.c.bf16 %v1196, %v1196
    %v1198 = vld [vmem:[%s9 + $0x4] sm:$0xf]
    %v1200 = vsel %vm337, %v1197, 0
    %v1203 = vsel %vm397, %v1198, 0
    %1205 = vmatprep.subr.bf16.mxu0 0
    %1206 = vmatpush1.bf16.msra.mxu0 %v1203
    %1207 = vmatprep.subr.bf16.mxu0 0
    %1208 = vmatpush1.bf16.msra.mxu0 0
    %1209 = vmatprep.subr.bf16.mxu0 0
    %1210 = vmatpush1.bf16.msra.mxu0 0
    %1211 = vmatprep.subr.bf16.mxu0 0
    %1212 = vmatpush1.bf16.msra.mxu0 0
    %1213 = vmatprep.subr.bf16.mxu0 0
    %1214 = vmatpush1.bf16.msra.mxu0 0
    %1215 = vmatprep.subr.bf16.mxu0 0
    %1216 = vmatpush1.bf16.msra.mxu0 0
    %1217 = vmatprep.subr.bf16.mxu0 0
    %1218 = vmatpush1.bf16.msra.mxu0 0
    %1219 = vmatprep.subr.bf16.mxu0 0
    %1220 = vmatpush1.bf16.msra.mxu0 0
    %1221 = vmatprep.subr.bf16.mxu0 0
    %1222 = vmatpush1.bf16.msra.mxu0 0
    %1223 = vmatprep.subr.bf16.mxu0 0
    %1224 = vmatpush1.bf16.msra.mxu0 0
    %1225 = vmatprep.subr.bf16.mxu0 0
    %1226 = vmatpush1.bf16.msra.mxu0 0
    %1227 = vmatprep.subr.bf16.mxu0 0
    %1228 = vmatpush1.bf16.msra.mxu0 0
    %1229 = vmatprep.subr.bf16.mxu0 0
    %1230 = vmatpush1.bf16.msra.mxu0 0
    %1231 = vmatprep.subr.bf16.mxu0 0
    %1232 = vmatpush1.bf16.msra.mxu0 0
    %1233 = vmatprep.subr.bf16.mxu0 0
    %1234 = vmatpush1.bf16.msra.mxu0 0
    %1235 = vmatprep.subr.bf16.mxu0 0
    %1236 = vmatpush1.bf16.msra.mxu0 0
    %1237 = vmatprep.mubr.bf16.mxu0 0
    %1238 = vmatmul.mubr.bf16.gmra.mrb[0].mxu0 %v1200
    %v1239 = vpop.f32.mrb[0].mxu0
    %v1240 = vadd.f32 0.0, %v1239
    %v1241 = vpop.f32.mrb[0].mxu0
    %v1242 = vpop.f32.mrb[0].mxu0
    %v1243 = vpop.f32.mrb[0].mxu0
    %1244 = vdwg.mxu0
    %v1246 = vsel %vm337, %v1085, 0
    %v1249 = vsel %vm397, %v1086, 0
    %1251 = vmatprep.subr.bf16.mxu0 0
    %1252 = vmatpush1.bf16.msra.mxu0 %v1249
    %1253 = vmatprep.subr.bf16.mxu0 0
    %1254 = vmatpush1.bf16.msra.mxu0 0
    %1255 = vmatprep.subr.bf16.mxu0 0
    %1256 = vmatpush1.bf16.msra.mxu0 0
    %1257 = vmatprep.subr.bf16.mxu0 0
    %1258 = vmatpush1.bf16.msra.mxu0 0
    %1259 = vmatprep.subr.bf16.mxu0 0
    %1260 = vmatpush1.bf16.msra.mxu0 0
    %1261 = vmatprep.subr.bf16.mxu0 0
    %1262 = vmatpush1.bf16.msra.mxu0 0
    %1263 = vmatprep.subr.bf16.mxu0 0
    %1264 = vmatpush1.bf16.msra.mxu0 0
    %1265 = vmatprep.subr.bf16.mxu0 0
    %1266 = vmatpush1.bf16.msra.mxu0 0
    %1267 = vmatprep.subr.bf16.mxu0 0
    %1268 = vmatpush1.bf16.msra.mxu0 0
    %1269 = vmatprep.subr.bf16.mxu0 0
    %1270 = vmatpush1.bf16.msra.mxu0 0
    %1271 = vmatprep.subr.bf16.mxu0 0
    %1272 = vmatpush1.bf16.msra.mxu0 0
    %1273 = vmatprep.subr.bf16.mxu0 0
    %1274 = vmatpush1.bf16.msra.mxu0 0
    %1275 = vmatprep.subr.bf16.mxu0 0
    %1276 = vmatpush1.bf16.msra.mxu0 0
    %1277 = vmatprep.subr.bf16.mxu0 0
    %1278 = vmatpush1.bf16.msra.mxu0 0
    %1279 = vmatprep.subr.bf16.mxu0 0
    %1280 = vmatpush1.bf16.msra.mxu0 0
    %1281 = vmatprep.subr.bf16.mxu0 0
    %1282 = vmatpush1.bf16.msra.mxu0 0
    %1283 = vmatprep.mubr.bf16.mxu0 0
    %1284 = vmatmul.mubr.bf16.gmra.mrb[0].mxu0 %v1246
    %v1285 = vpop.f32.mrb[0].mxu0
    %v1286 = vadd.f32 %v1240, %v1285
    %v1287 = vpop.f32.mrb[0].mxu0
    %v1288 = vpop.f32.mrb[0].mxu0
    %v1289 = vpop.f32.mrb[0].mxu0
    %1290 = vdwg.mxu0
    %1291 = vrot.lane.b32.xlu0 %v978, 112
    %v1292 = vpop.permute.xlu0 %1291
    %1293 = vrot.lane.b32.xlu0 %v979, 112
    %v1294 = vpop.permute.xlu0 %1293
    %v1296 = vsel %vm337, %v1292, 0
    %v1299 = vsel %vm337, %v1294, 0
    %1301 = vmatprep.subr.bf16.mxu0 0
    %1302 = vmatpush1.bf16.xpose.msra.mxu0 %v1299
    %1303 = vmatprep.subr.bf16.mxu0 0
    %1304 = vmatpush1.bf16.xpose.msra.mxu0 0
    %1305 = vmatprep.subr.bf16.mxu0 0
    %1306 = vmatpush1.bf16.xpose.msra.mxu0 0
    %1307 = vmatprep.subr.bf16.mxu0 0
    %1308 = vmatpush1.bf16.xpose.msra.mxu0 0
    %1309 = vmatprep.subr.bf16.mxu0 0
    %1310 = vmatpush1.bf16.xpose.msra.mxu0 0
    %1311 = vmatprep.subr.bf16.mxu0 0
    %1312 = vmatpush1.bf16.xpose.msra.mxu0 0
    %1313 = vmatprep.subr.bf16.mxu0 0
    %1314 = vmatpush1.bf16.xpose.msra.mxu0 0
    %1315 = vmatprep.subr.bf16.mxu0 0
    %1316 = vmatpush1.bf16.xpose.msra.mxu0 0
    %1317 = vmatprep.subr.bf16.mxu0 0
    %1318 = vmatpush1.bf16.xpose.msra.mxu0 0
    %1319 = vmatprep.subr.bf16.mxu0 0
    %1320 = vmatpush1.bf16.xpose.msra.mxu0 0
    %1321 = vmatprep.subr.bf16.mxu0 0
    %1322 = vmatpush1.bf16.xpose.msra.mxu0 0
    %1323 = vmatprep.subr.bf16.mxu0 0
    %1324 = vmatpush1.bf16.xpose.msra.mxu0 0
    %1325 = vmatprep.subr.bf16.mxu0 0
    %1326 = vmatpush1.bf16.xpose.msra.mxu0 0
    %1327 = vmatprep.subr.bf16.mxu0 0
    %1328 = vmatpush1.bf16.xpose.msra.mxu0 0
    %1329 = vmatprep.subr.bf16.mxu0 0
    %1330 = vmatpush1.bf16.xpose.msra.mxu0 0
    %1331 = vmatprep.subr.bf16.mxu0 0
    %1332 = vmatpush1.bf16.xpose.msra.mxu0 0
    %1333 = vmatprep.mubr.bf16.mxu0 0
    %1334 = vmatmul.mubr.bf16.gmra.mrb[0].mxu0 %v1296
    %v1335 = vpop.f32.mrb[0].mxu0
    %v1336 = vadd.f32 0.0, %v1335
    %v1337 = vpop.f32.mrb[0].mxu0
    %v1338 = vpop.f32.mrb[0].mxu0
    %v1339 = vpop.f32.mrb[0].mxu0
    %1340 = vdwg.mxu0
    %v1341 = vsel %vm337, %v1336, -inf
    %1342 = vmax.xlane.f32.xlu0 %v1341
    %v1343 = vpop.xlane.xlu0 %1342
    %v1344 = vsub.f32 %v1336, %v1343
    %v1345 = vmul.f32 %v1344, 1.442695
    %v1346 = vpow.pop %v1345
    %v1347 = vsel %vm337, %v1346, 0.0
    %1348 = vadd.xlane.f32.xlu0 %v1347
    %v1349 = vpop.xlane.xlu0 %1348
    %v1350 = vpack.c.bf16 %v1346, %v1346
    %1351 = vrot.lane.b32.xlu0 %v1036, 112
    %v1352 = vpop.permute.xlu0 %1351
    %v1354 = vsel %vm337, %v1350, 0
    %v1357 = vsel %vm397, %v1352, 0
    %1359 = vmatprep.subr.bf16.mxu0 0
    %1360 = vmatpush1.bf16.msra.mxu0 %v1357
    %1361 = vmatprep.subr.bf16.mxu0 0
    %1362 = vmatpush1.bf16.msra.mxu0 0
    %1363 = vmatprep.subr.bf16.mxu0 0
    %1364 = vmatpush1.bf16.msra.mxu0 0
    %1365 = vmatprep.subr.bf16.mxu0 0
    %1366 = vmatpush1.bf16.msra.mxu0 0
    %1367 = vmatprep.subr.bf16.mxu0 0
    %1368 = vmatpush1.bf16.msra.mxu0 0
    %1369 = vmatprep.subr.bf16.mxu0 0
    %1370 = vmatpush1.bf16.msra.mxu0 0
    %1371 = vmatprep.subr.bf16.mxu0 0
    %1372 = vmatpush1.bf16.msra.mxu0 0
    %1373 = vmatprep.subr.bf16.mxu0 0
    %1374 = vmatpush1.bf16.msra.mxu0 0
    %1375 = vmatprep.subr.bf16.mxu0 0
    %1376 = vmatpush1.bf16.msra.mxu0 0
    %1377 = vmatprep.subr.bf16.mxu0 0
    %1378 = vmatpush1.bf16.msra.mxu0 0
    %1379 = vmatprep.subr.bf16.mxu0 0
    %1380 = vmatpush1.bf16.msra.mxu0 0
    %1381 = vmatprep.subr.bf16.mxu0 0
    %1382 = vmatpush1.bf16.msra.mxu0 0
    %1383 = vmatprep.subr.bf16.mxu0 0
    %1384 = vmatpush1.bf16.msra.mxu0 0
    %1385 = vmatprep.subr.bf16.mxu0 0
    %1386 = vmatpush1.bf16.msra.mxu0 0
    %1387 = vmatprep.subr.bf16.mxu0 0
    %1388 = vmatpush1.bf16.msra.mxu0 0
    %1389 = vmatprep.subr.bf16.mxu0 0
    %1390 = vmatpush1.bf16.msra.mxu0 0
    %1391 = vmatprep.mubr.bf16.mxu0 0
    %1392 = vmatmul.mubr.bf16.gmra.mrb[0].mxu0 %v1354
    %v1393 = vpop.f32.mrb[0].mxu0
    %v1394 = vadd.f32 0.0, %v1393
    %v1395 = vpop.f32.mrb[0].mxu0
    %v1396 = vpop.f32.mrb[0].mxu0
    %v1397 = vpop.f32.mrb[0].mxu0
    %1398 = vdwg.mxu0
    %v1399 = vrcp.pop %v1349
    %v1400 = vmul.f32 %v1394, %v1399
    %v1401 = vpack.c.bf16 %v1400, %v1400
    %v1402 = vld [vmem:[%s9 + $0x8] sm:$0xf]
    %v1404 = vsel %vm337, %v1401, 0
    %v1407 = vsel %vm397, %v1402, 0
    %1409 = vmatprep.subr.bf16.mxu0 0
    %1410 = vmatpush1.bf16.msra.mxu0 %v1407
    %1411 = vmatprep.subr.bf16.mxu0 0
    %1412 = vmatpush1.bf16.msra.mxu0 0
    %1413 = vmatprep.subr.bf16.mxu0 0
    %1414 = vmatpush1.bf16.msra.mxu0 0
    %1415 = vmatprep.subr.bf16.mxu0 0
    %1416 = vmatpush1.bf16.msra.mxu0 0
    %1417 = vmatprep.subr.bf16.mxu0 0
    %1418 = vmatpush1.bf16.msra.mxu0 0
    %1419 = vmatprep.subr.bf16.mxu0 0
    %1420 = vmatpush1.bf16.msra.mxu0 0
    %1421 = vmatprep.subr.bf16.mxu0 0
    %1422 = vmatpush1.bf16.msra.mxu0 0
    %1423 = vmatprep.subr.bf16.mxu0 0
    %1424 = vmatpush1.bf16.msra.mxu0 0
    %1425 = vmatprep.subr.bf16.mxu0 0
    %1426 = vmatpush1.bf16.msra.mxu0 0
    %1427 = vmatprep.subr.bf16.mxu0 0
    %1428 = vmatpush1.bf16.msra.mxu0 0
    %1429 = vmatprep.subr.bf16.mxu0 0
    %1430 = vmatpush1.bf16.msra.mxu0 0
    %1431 = vmatprep.subr.bf16.mxu0 0
    %1432 = vmatpush1.bf16.msra.mxu0 0
    %1433 = vmatprep.subr.bf16.mxu0 0
    %1434 = vmatpush1.bf16.msra.mxu0 0
    %1435 = vmatprep.subr.bf16.mxu0 0
    %1436 = vmatpush1.bf16.msra.mxu0 0
    %1437 = vmatprep.subr.bf16.mxu0 0
    %1438 = vmatpush1.bf16.msra.mxu0 0
    %1439 = vmatprep.subr.bf16.mxu0 0
    %1440 = vmatpush1.bf16.msra.mxu0 0
    %1441 = vmatprep.mubr.bf16.mxu0 0
    %1442 = vmatmul.mubr.bf16.gmra.mrb[0].mxu0 %v1404
    %v1443 = vpop.f32.mrb[0].mxu0
    %v1444 = vadd.f32 0.0, %v1443
    %v1445 = vpop.f32.mrb[0].mxu0
    %v1446 = vpop.f32.mrb[0].mxu0
    %v1447 = vpop.f32.mrb[0].mxu0
    %1448 = vdwg.mxu0
    %v1449 = vadd.f32 %v1286, %v1444
    %1450 = vrot.lane.b32.xlu0 %v978, 104
    %v1451 = vpop.permute.xlu0 %1450
    %1452 = vrot.lane.b32.xlu0 %v979, 104
    %v1453 = vpop.permute.xlu0 %1452
    %v1455 = vsel %vm337, %v1451, 0
    %v1458 = vsel %vm337, %v1453, 0
    %1460 = vmatprep.subr.bf16.mxu0 0
    %1461 = vmatpush1.bf16.xpose.msra.mxu0 %v1458
    %1462 = vmatprep.subr.bf16.mxu0 0
    %1463 = vmatpush1.bf16.xpose.msra.mxu0 0
    %1464 = vmatprep.subr.bf16.mxu0 0
    %1465 = vmatpush1.bf16.xpose.msra.mxu0 0
    %1466 = vmatprep.subr.bf16.mxu0 0
    %1467 = vmatpush1.bf16.xpose.msra.mxu0 0
    %1468 = vmatprep.subr.bf16.mxu0 0
    %1469 = vmatpush1.bf16.xpose.msra.mxu0 0
    %1470 = vmatprep.subr.bf16.mxu0 0
    %1471 = vmatpush1.bf16.xpose.msra.mxu0 0
    %1472 = vmatprep.subr.bf16.mxu0 0
    %1473 = vmatpush1.bf16.xpose.msra.mxu0 0
    %1474 = vmatprep.subr.bf16.mxu0 0
    %1475 = vmatpush1.bf16.xpose.msra.mxu0 0
    %1476 = vmatprep.subr.bf16.mxu0 0
    %1477 = vmatpush1.bf16.xpose.msra.mxu0 0
    %1478 = vmatprep.subr.bf16.mxu0 0
    %1479 = vmatpush1.bf16.xpose.msra.mxu0 0
    %1480 = vmatprep.subr.bf16.mxu0 0
    %1481 = vmatpush1.bf16.xpose.msra.mxu0 0
    %1482 = vmatprep.subr.bf16.mxu0 0
    %1483 = vmatpush1.bf16.xpose.msra.mxu0 0
    %1484 = vmatprep.subr.bf16.mxu0 0
    %1485 = vmatpush1.bf16.xpose.msra.mxu0 0
    %1486 = vmatprep.subr.bf16.mxu0 0
    %1487 = vmatpush1.bf16.xpose.msra.mxu0 0
    %1488 = vmatprep.subr.bf16.mxu0 0
    %1489 = vmatpush1.bf16.xpose.msra.mxu0 0
    %1490 = vmatprep.subr.bf16.mxu0 0
    %1491 = vmatpush1.bf16.xpose.msra.mxu0 0
    %1492 = vmatprep.mubr.bf16.mxu0 0
    %1493 = vmatmul.mubr.bf16.gmra.mrb[0].mxu0 %v1455
    %v1494 = vpop.f32.mrb[0].mxu0
    %v1495 = vadd.f32 0.0, %v1494
    %v1496 = vpop.f32.mrb[0].mxu0
    %v1497 = vpop.f32.mrb[0].mxu0
    %v1498 = vpop.f32.mrb[0].mxu0
    %1499 = vdwg.mxu0
    %v1500 = vsel %vm337, %v1495, -inf
    %1501 = vmax.xlane.f32.xlu0 %v1500
    %v1502 = vpop.xlane.xlu0 %1501
    %v1503 = vsub.f32 %v1495, %v1502
    %v1504 = vmul.f32 %v1503, 1.442695
    %v1505 = vpow.pop %v1504
    %v1506 = vsel %vm337, %v1505, 0.0
    %1507 = vadd.xlane.f32.xlu0 %v1506
    %v1508 = vpop.xlane.xlu0 %1507
    %v1509 = vpack.c.bf16 %v1505, %v1505
    %1510 = vrot.lane.b32.xlu0 %v1036, 104
    %v1511 = vpop.permute.xlu0 %1510
    %v1513 = vsel %vm337, %v1509, 0
    %v1516 = vsel %vm397, %v1511, 0
    %1518 = vmatprep.subr.bf16.mxu0 0
    %1519 = vmatpush1.bf16.msra.mxu0 %v1516
    %1520 = vmatprep.subr.bf16.mxu0 0
    %1521 = vmatpush1.bf16.msra.mxu0 0
    %1522 = vmatprep.subr.bf16.mxu0 0
    %1523 = vmatpush1.bf16.msra.mxu0 0
    %1524 = vmatprep.subr.bf16.mxu0 0
    %1525 = vmatpush1.bf16.msra.mxu0 0
    %1526 = vmatprep.subr.bf16.mxu0 0
    %1527 = vmatpush1.bf16.msra.mxu0 0
    %1528 = vmatprep.subr.bf16.mxu0 0
    %1529 = vmatpush1.bf16.msra.mxu0 0
    %1530 = vmatprep.subr.bf16.mxu0 0
    %1531 = vmatpush1.bf16.msra.mxu0 0
    %1532 = vmatprep.subr.bf16.mxu0 0
    %1533 = vmatpush1.bf16.msra.mxu0 0
    %1534 = vmatprep.subr.bf16.mxu0 0
    %1535 = vmatpush1.bf16.msra.mxu0 0
    %1536 = vmatprep.subr.bf16.mxu0 0
    %1537 = vmatpush1.bf16.msra.mxu0 0
    %1538 = vmatprep.subr.bf16.mxu0 0
    %1539 = vmatpush1.bf16.msra.mxu0 0
    %1540 = vmatprep.subr.bf16.mxu0 0
    %1541 = vmatpush1.bf16.msra.mxu0 0
    %1542 = vmatprep.subr.bf16.mxu0 0
    %1543 = vmatpush1.bf16.msra.mxu0 0
    %1544 = vmatprep.subr.bf16.mxu0 0
    %1545 = vmatpush1.bf16.msra.mxu0 0
    %1546 = vmatprep.subr.bf16.mxu0 0
    %1547 = vmatpush1.bf16.msra.mxu0 0
    %1548 = vmatprep.subr.bf16.mxu0 0
    %1549 = vmatpush1.bf16.msra.mxu0 0
    %1550 = vmatprep.mubr.bf16.mxu0 0
    %1551 = vmatmul.mubr.bf16.gmra.mrb[0].mxu0 %v1513
    %v1552 = vpop.f32.mrb[0].mxu0
    %v1553 = vadd.f32 0.0, %v1552
    %v1554 = vpop.f32.mrb[0].mxu0
    %v1555 = vpop.f32.mrb[0].mxu0
    %v1556 = vpop.f32.mrb[0].mxu0
    %1557 = vdwg.mxu0
    %v1558 = vrcp.pop %v1508
    %v1559 = vmul.f32 %v1553, %v1558
    %v1560 = vpack.c.bf16 %v1559, %v1559
    %v1561 = vld [vmem:[%s9 + $0xc] sm:$0xf]
    %v1563 = vsel %vm337, %v1560, 0
    %v1566 = vsel %vm397, %v1561, 0
    %1568 = vmatprep.subr.bf16.mxu0 0
    %1569 = vmatpush1.bf16.msra.mxu0 %v1566
    %1570 = vmatprep.subr.bf16.mxu0 0
    %1571 = vmatpush1.bf16.msra.mxu0 0
    %1572 = vmatprep.subr.bf16.mxu0 0
    %1573 = vmatpush1.bf16.msra.mxu0 0
    %1574 = vmatprep.subr.bf16.mxu0 0
    %1575 = vmatpush1.bf16.msra.mxu0 0
    %1576 = vmatprep.subr.bf16.mxu0 0
    %1577 = vmatpush1.bf16.msra.mxu0 0
    %1578 = vmatprep.subr.bf16.mxu0 0
    %1579 = vmatpush1.bf16.msra.mxu0 0
    %1580 = vmatprep.subr.bf16.mxu0 0
    %1581 = vmatpush1.bf16.msra.mxu0 0
    %1582 = vmatprep.subr.bf16.mxu0 0
    %1583 = vmatpush1.bf16.msra.mxu0 0
    %1584 = vmatprep.subr.bf16.mxu0 0
    %1585 = vmatpush1.bf16.msra.mxu0 0
    %1586 = vmatprep.subr.bf16.mxu0 0
    %1587 = vmatpush1.bf16.msra.mxu0 0
    %1588 = vmatprep.subr.bf16.mxu0 0
    %1589 = vmatpush1.bf16.msra.mxu0 0
    %1590 = vmatprep.subr.bf16.mxu0 0
    %1591 = vmatpush1.bf16.msra.mxu0 0
    %1592 = vmatprep.subr.bf16.mxu0 0
    %1593 = vmatpush1.bf16.msra.mxu0 0
    %1594 = vmatprep.subr.bf16.mxu0 0
    %1595 = vmatpush1.bf16.msra.mxu0 0
    %1596 = vmatprep.subr.bf16.mxu0 0
    %1597 = vmatpush1.bf16.msra.mxu0 0
    %1598 = vmatprep.subr.bf16.mxu0 0
    %1599 = vmatpush1.bf16.msra.mxu0 0
    %1600 = vmatprep.mubr.bf16.mxu0 0
    %1601 = vmatmul.mubr.bf16.gmra.mrb[0].mxu0 %v1563
    %v1602 = vpop.f32.mrb[0].mxu0
    %v1603 = vadd.f32 0.0, %v1602
    %v1604 = vpop.f32.mrb[0].mxu0
    %v1605 = vpop.f32.mrb[0].mxu0
    %v1606 = vpop.f32.mrb[0].mxu0
    %1607 = vdwg.mxu0
    %v1608 = vadd.f32 %v1449, %v1603
    %v1609 = vadd.f32 %v1608, %v974
    %1610 = vst.msk [vmem:[#allocation13 + $0x8] sm:$0xff] %vm152, %v1609
    // Predicated region
    $region70: #{tpu_custom_call.1} parent=1 // pred_check
      _
    $region71: #{tpu_custom_call.1} parent=1 // pred_check_branch
      %1612 = sbr.rel (0) target = $region73
    $region72: #{tpu_custom_call.1} parent=1 // pred_region
      %s1614 = ssub.s32 256, 256
      %1615 = vsyncadd [#allocation4], %s1614
      %s1616 = sshll.u32 [#allocation13], 4
      %s1617 = int_to_ptr.vmem [resolvable:$true] %s1616
      %1622 = dma.vmem_to_hbm [thread:$0]  %s1617, 256, %s11, [#allocation4], 128, 128, 8
    $region73: #{tpu_custom_call.1} parent=1 // pred_fallthru
      _
    // Predicated region
    $region74: #{tpu_custom_call.1} parent=1 // pred_check
      _
    $region75: #{tpu_custom_call.1} parent=1 // pred_check_branch
      %1624 = sbr.rel (0) target = $region77
    $region76: #{tpu_custom_call.1} parent=1 // pred_region
      %1625 = dma.done [#allocation4], 256
    $region77: #{tpu_custom_call.1} parent=1 // pred_fallthru
      _
    %1626 = vsyncpa [#allocation3], 1
    %1627 = vsyncpa [#allocation6], 1
    %1628 = vsyncpa [#allocation9], 1
    %1629 = vsyncpa [#allocation12], 1
    %1630 = vsyncpa [#allocation4], 1

// kernel: tpu_custom_call.1
$region0: #{tpu_custom_call.1}
  #allocation0 [shape = 'u32[]', space=smem, size = 0x4, offset = 0x4, fixed_abs, tag = 'smem constant byte address 0x4 - core index']
  #allocation1 [shape = 'u32[144,128]{1,0:T(1,128)}', space=vmem, size = 0x12000, scoped, tag = 'internal scratch']
  %s0 = inlined_call_operand.hbm [shape: f32[16,32], index: 0, kind: input, shape index: {}]
  %s1 = inlined_call_operand.hbm [shape: f32[16,32], index: 1, kind: input, shape index: {}]
  %s2 = inlined_call_operand.hbm [shape: f32[16,32], index: 2, kind: input, shape index: {}]
  %s3 = inlined_call_operand.hbm [shape: bf16[32,32], index: 3, kind: input, shape index: {}]
  %s4 = inlined_call_operand.vmem [shape: f32[1,32], index: 4, kind: input, shape index: {}]
  %s5 = inlined_call_operand.vmem [shape: bf16[32,32], index: 5, kind: input, shape index: {}]
  %s6 = inlined_call_operand.vmem [shape: f32[1,32], index: 6, kind: input, shape index: {}]
  %s7 = inlined_call_operand.hbm [shape: bf16[32,32], index: 7, kind: input, shape index: {}]
  %s8 = inlined_call_operand.hbm [shape: f32[1,32], index: 8, kind: input, shape index: {}]
  %s9 = inlined_call_operand.vmem [shape: bf16[32,32], index: 9, kind: input, shape index: {}]
  %s10 = inlined_call_operand.vmem [shape: f32[1,32], index: 10, kind: input, shape index: {}]
  %s11 = inlined_call_operand.hbm [shape: f32[16,32], index: 11, kind: output, shape index: {}]
  %s12 = sld [smem:[#allocation0]]
  $region78: #{tpu_custom_call.1} parent=0
    _
  %s14 = ssub.s32 1, %s12
  %s15 = scalar_select 0, %s14, %s12
  $region1: #{tpu_custom_call.1} parent=0
    #allocation2 [shape = 'u8[8192]{0}', space=vmem, size = 0x2000, scoped, tag = 'input window, operand 0, single buffered']
    #allocation3 [shape = 's32[1]{0}', space=sflag, size = 0x4, scoped, tag = 'scoped memory for tpu_custom_call.1']
    #allocation4 [shape = 's32[1]{0}', space=sflag, size = 0x4, scoped, tag = 'scoped memory for tpu_custom_call.1']
    #allocation5 [shape = 'u8[8192]{0}', space=vmem, size = 0x2000, scoped, tag = 'input window, operand 1, single buffered']
    #allocation6 [shape = 's32[1]{0}', space=sflag, size = 0x4, scoped, tag = 'scoped memory for tpu_custom_call.1']
    #allocation7 [shape = 'u8[8192]{0}', space=vmem, size = 0x2000, scoped, tag = 'input window, operand 2, single buffered']
    #allocation8 [shape = 'u8[8192]{0}', space=vmem, size = 0x2000, scoped, tag = 'input window, operand 3, single buffered']
    #allocation9 [shape = 's32[1]{0}', space=sflag, size = 0x4, scoped, tag = 'scoped memory for tpu_custom_call.1']
    #allocation10 [shape = 'u8[8192]{0}', space=vmem, size = 0x2000, scoped, tag = 'input window, operand 7, single buffered']
    #allocation11 [shape = 'u8[512]{0}', space=vmem, size = 0x400, scoped, tag = 'input window, operand 8, single buffered']
    #allocation12 [shape = 's32[1]{0}', space=sflag, size = 0x4, scoped, tag = 'scoped memory for tpu_custom_call.1']
    #allocation13 [shape = 'u8[8192]{0}', space=vmem, size = 0x2000, scoped, tag = 'output window, operand 0, single buffered']
    %16 = vsyncpa [#allocation3], 0
    %17 = vsyncpa [#allocation6], 0
    %18 = vsyncpa [#allocation9], 0
    %19 = vsyncpa [#allocation12], 0
    %20 = vsyncpa [#allocation4], 0
    // Predicated region
    $region2: #{tpu_custom_call.1} parent=1 // pred_check
      _
    $region3: #{tpu_custom_call.1} parent=1 // pred_check_branch
      %22 = sbr.rel (0) target = $region5
    $region4: #{tpu_custom_call.1} parent=1 // pred_region
      %s24 = ssub.s32 256, 256
      %25 = vsyncadd [#allocation3], %s24
      %s26 = sshll.u32 [#allocation2], 4
      %s27 = int_to_ptr.vmem [resolvable:$true] %s26
      %32 = dma.hbm_to_vmem [thread:$0]  %s0, 256, %s27, [#allocation3], 128, 128, 8
    $region5: #{tpu_custom_call.1} parent=1 // pred_fallthru
      _
    // Predicated region
    $region6: #{tpu_custom_call.1} parent=1 // pred_check
      _
    $region7: #{tpu_custom_call.1} parent=1 // pred_check_branch
      %34 = sbr.rel (0) target = $region9
    $region8: #{tpu_custom_call.1} parent=1 // pred_region
      %s36 = ssub.s32 256, 256
      %37 = vsyncadd [#allocation6], %s36
      %s38 = sshll.u32 [#allocation5], 4
      %s39 = int_to_ptr.vmem [resolvable:$true] %s38
      %44 = dma.hbm_to_vmem [thread:$0]  %s1, 256, %s39, [#allocation6], 128, 128, 8
    $region9: #{tpu_custom_call.1} parent=1 // pred_fallthru
      _
    // Predicated region
    $region10: #{tpu_custom_call.1} parent=1 // pred_check
      _
    $region11: #{tpu_custom_call.1} parent=1 // pred_check_branch
      %46 = sbr.rel (0) target = $region13
    $region12: #{tpu_custom_call.1} parent=1 // pred_region
      %s48 = ssub.s32 256, 256
      %49 = vsyncadd [#allocation6], %s48
      %s50 = sshll.u32 [#allocation7], 4
      %s51 = int_to_ptr.vmem [resolvable:$true] %s50
      %56 = dma.hbm_to_vmem [thread:$0]  %s2, 256, %s51, [#allocation6], 128, 128, 8
    $region13: #{tpu_custom_call.1} parent=1 // pred_fallthru
      _
    // Predicated region
    $region14: #{tpu_custom_call.1} parent=1 // pred_check
      _
    $region15: #{tpu_custom_call.1} parent=1 // pred_check_branch
      %58 = sbr.rel (0) target = $region17
    $region16: #{tpu_custom_call.1} parent=1 // pred_region
      %s60 = ssub.s32 256, 256
      %61 = vsyncadd [#allocation9], %s60
      %s62 = sshll.u32 [#allocation8], 4
      %s63 = int_to_ptr.vmem [resolvable:$true] %s62
      %68 = dma.hbm_to_vmem [thread:$0]  %s3, 256, %s63, [#allocation9], 64, 64, 4
    $region17: #{tpu_custom_call.1} parent=1 // pred_fallthru
      _
    // Predicated region
    $region18: #{tpu_custom_call.1} parent=1 // pred_check
      _
    $region19: #{tpu_custom_call.1} parent=1 // pred_check_branch
      %70 = sbr.rel (0) target = $region21
    $region20: #{tpu_custom_call.1} parent=1 // pred_region
      _
    $region21: #{tpu_custom_call.1} parent=1 // pred_fallthru
      _
    // Predicated region
    $region22: #{tpu_custom_call.1} parent=1 // pred_check
      _
    $region23: #{tpu_custom_call.1} parent=1 // pred_check_branch
      %72 = sbr.rel (0) target = $region25
    $region24: #{tpu_custom_call.1} parent=1 // pred_region
      _
    $region25: #{tpu_custom_call.1} parent=1 // pred_fallthru
      _
    // Predicated region
    $region26: #{tpu_custom_call.1} parent=1 // pred_check
      _
    $region27: #{tpu_custom_call.1} parent=1 // pred_check_branch
      %74 = sbr.rel (0) target = $region29
    $region28: #{tpu_custom_call.1} parent=1 // pred_region
      _
    $region29: #{tpu_custom_call.1} parent=1 // pred_fallthru
      _
    // Predicated region
    $region30: #{tpu_custom_call.1} parent=1 // pred_check
      _
    $region31: #{tpu_custom_call.1} parent=1 // pred_check_branch
      %76 = sbr.rel (0) target = $region33
    $region32: #{tpu_custom_call.1} parent=1 // pred_region
      %s78 = ssub.s32 256, 256
      %79 = vsyncadd [#allocation9], %s78
      %s80 = sshll.u32 [#allocation10], 4
      %s81 = int_to_ptr.vmem [resolvable:$true] %s80
      %86 = dma.hbm_to_vmem [thread:$0]  %s7, 256, %s81, [#allocation9], 64, 64, 4
    $region33: #{tpu_custom_call.1} parent=1 // pred_fallthru
      _
    // Predicated region
    $region34: #{tpu_custom_call.1} parent=1 // pred_check
      _
    $region35: #{tpu_custom_call.1} parent=1 // pred_check_branch
      %88 = sbr.rel (0) target = $region37
    $region36: #{tpu_custom_call.1} parent=1 // pred_region
      %s90 = ssub.s32 16, 16
      %91 = vsyncadd [#allocation12], %s90
      %s93 = sshll.u32 [#allocation11], 4
      %s94 = int_to_ptr.vmem [resolvable:$true] %s93
      %96 = dma.hbm_to_vmem [thread:$0]  %s8, 16, %s94, [#allocation12]
    $region37: #{tpu_custom_call.1} parent=1 // pred_fallthru
      _
    // Predicated region
    $region38: #{tpu_custom_call.1} parent=1 // pred_check
      _
    $region39: #{tpu_custom_call.1} parent=1 // pred_check_branch
      %98 = sbr.rel (0) target = $region41
    $region40: #{tpu_custom_call.1} parent=1 // pred_region
      _
    $region41: #{tpu_custom_call.1} parent=1 // pred_fallthru
      _
    // Predicated region
    $region42: #{tpu_custom_call.1} parent=1 // pred_check
      _
    $region43: #{tpu_custom_call.1} parent=1 // pred_check_branch
      %100 = sbr.rel (0) target = $region45
    $region44: #{tpu_custom_call.1} parent=1 // pred_region
      _
    $region45: #{tpu_custom_call.1} parent=1 // pred_fallthru
      _
    // Predicated region
    $region46: #{tpu_custom_call.1} parent=1 // pred_check
      _
    $region47: #{tpu_custom_call.1} parent=1 // pred_check_branch
      %102 = sbr.rel (0) target = $region49
    $region48: #{tpu_custom_call.1} parent=1 // pred_region
      %103 = dma.done [#allocation3], 256
    $region49: #{tpu_custom_call.1} parent=1 // pred_fallthru
      _
    // Predicated region
    $region50: #{tpu_custom_call.1} parent=1 // pred_check
      _
    $region51: #{tpu_custom_call.1} parent=1 // pred_check_branch
      %105 = sbr.rel (0) target = $region53
    $region52: #{tpu_custom_call.1} parent=1 // pred_region
      %106 = dma.done [#allocation6], 256
    $region53: #{tpu_custom_call.1} parent=1 // pred_fallthru
      _
    // Predicated region
    $region54: #{tpu_custom_call.1} parent=1 // pred_check
      _
    $region55: #{tpu_custom_call.1} parent=1 // pred_check_branch
      %108 = sbr.rel (0) target = $region57
    $region56: #{tpu_custom_call.1} parent=1 // pred_region
      %109 = dma.done [#allocation6], 256
    $region57: #{tpu_custom_call.1} parent=1 // pred_fallthru
      _
    // Predicated region
    $region58: #{tpu_custom_call.1} parent=1 // pred_check
      _
    $region59: #{tpu_custom_call.1} parent=1 // pred_check_branch
      %111 = sbr.rel (0) target = $region61
    $region60: #{tpu_custom_call.1} parent=1 // pred_region
      %112 = dma.done [#allocation9], 256
    $region61: #{tpu_custom_call.1} parent=1 // pred_fallthru
      _
    // Predicated region
    $region62: #{tpu_custom_call.1} parent=1 // pred_check
      _
    $region63: #{tpu_custom_call.1} parent=1 // pred_check_branch
      %114 = sbr.rel (0) target = $region65
    $region64: #{tpu_custom_call.1} parent=1 // pred_region
      %115 = dma.done [#allocation9], 256
    $region65: #{tpu_custom_call.1} parent=1 // pred_fallthru
      _
    // Predicated region
    $region66: #{tpu_custom_call.1} parent=1 // pred_check
      _
    $region67: #{tpu_custom_call.1} parent=1 // pred_check_branch
      %117 = sbr.rel (0) target = $region69
    $region68: #{tpu_custom_call.1} parent=1 // pred_region
      %118 = dma.done [#allocation12], 16
    $region69: #{tpu_custom_call.1} parent=1 // pred_fallthru
      _
    %v120 = vld [vmem:[#allocation2] sm:$0xff]
    %v121 = vld [vmem:[#allocation2 + $0x8] sm:$0xff]
    %v122 = vpack.c.bf16 %v121, %v120
    %v123 = vld [vmem:[#allocation5] sm:$0xff]
    %v124 = vld [vmem:[#allocation5 + $0x8] sm:$0xff]
    %v125 = vpack.c.bf16 %v124, %v123
    %v126 = vld [vmem:[#allocation7] sm:$0xff]
    %v127 = vld [vmem:[#allocation7 + $0x8] sm:$0xff]
    %v128 = vpack.c.bf16 %v127, %v126
    %v129 = vld [vmem:[#allocation8] sm:$0xf]
    %v130 = vld [vmem:[#allocation8 + $0x4] sm:$0xf]
    %v131 = vld [vmem:[#allocation8 + $0x8] sm:$0xf]
    %v132 = vld [vmem:[#allocation8 + $0xc] sm:$0xf]
    %v133 = vld [vmem:[%s4] sm:$0x1]
    %v135 = vlaneseq
    %v136 = vshrl.u32 %v135, 7
    %v137 = vsub.s32 0, %v136
    %v138 = vrot.slane %v133, %v137
    %v144 = vunpack.c.l.b16 %v129
    %v145 = vunpack.c.l.b16 %v130
    %v146 = vunpack.c.l.b16 %v131
    %v147 = vunpack.c.l.b16 %v132
    %v148 = vpack.c.b16 %v145, %v144
    %v149 = vpack.c.b16 %v147, %v146
    %vm152 = vcmask 261120
    %v154 = vsel %vm152, %v122, 0
    %156 = vmatprep.subr.bf16.mxu0 0
    %157 = vmatpush1.bf16.msra.mxu0 %v148
    %158 = vmatprep.subr.bf16.mxu0 0
    %159 = vmatpush1.bf16.msra.mxu0 %v149
    %160 = vmatprep.subr.bf16.mxu0 0
    %161 = vmatpush1.bf16.msra.mxu0 0
    %162 = vmatprep.subr.bf16.mxu0 0
    %163 = vmatpush1.bf16.msra.mxu0 0
    %164 = vmatprep.subr.bf16.mxu0 0
    %165 = vmatpush1.bf16.msra.mxu0 0
    %166 = vmatprep.subr.bf16.mxu0 0
    %167 = vmatpush1.bf16.msra.mxu0 0
    %168 = vmatprep.subr.bf16.mxu0 0
    %169 = vmatpush1.bf16.msra.mxu0 0
    %170 = vmatprep.subr.bf16.mxu0 0
    %171 = vmatpush1.bf16.msra.mxu0 0
    %172 = vmatprep.subr.bf16.mxu0 0
    %173 = vmatpush1.bf16.msra.mxu0 0
    %174 = vmatprep.subr.bf16.mxu0 0
    %175 = vmatpush1.bf16.msra.mxu0 0
    %176 = vmatprep.subr.bf16.mxu0 0
    %177 = vmatpush1.bf16.msra.mxu0 0
    %178 = vmatprep.subr.bf16.mxu0 0
    %179 = vmatpush1.bf16.msra.mxu0 0
    %180 = vmatprep.subr.bf16.mxu0 0
    %181 = vmatpush1.bf16.msra.mxu0 0
    %182 = vmatprep.subr.bf16.mxu0 0
    %183 = vmatpush1.bf16.msra.mxu0 0
    %184 = vmatprep.subr.bf16.mxu0 0
    %185 = vmatpush1.bf16.msra.mxu0 0
    %186 = vmatprep.subr.bf16.mxu0 0
    %187 = vmatpush1.bf16.msra.mxu0 0
    %188 = vmatprep.mubr.bf16.mxu0 0
    %189 = vmatmul.mubr.bf16.gmra.mrb[0].mxu0 %v154
    %v190 = vpop.f32.mrb[0].mxu0
    %v191 = vadd.f32 %v138, %v190
    %v192 = vpop.f32.mrb[0].mxu0
    %v193 = vpop.f32.mrb[0].mxu0
    %v194 = vadd.f32 %v138, %v193
    %v195 = vpop.f32.mrb[0].mxu0
    %196 = vdwg.mxu0
    %v197 = vld [vmem:[%s5] sm:$0xf]
    %v198 = vld [vmem:[%s5 + $0x4] sm:$0xf]
    %v199 = vld [vmem:[%s5 + $0x8] sm:$0xf]
    %v200 = vld [vmem:[%s5 + $0xc] sm:$0xf]
    %v201 = vld [vmem:[%s6] sm:$0x1]
    %v203 = vlaneseq
    %v204 = vshrl.u32 %v203, 7
    %v205 = vsub.s32 0, %v204
    %v206 = vrot.slane %v201, %v205
    %v212 = vunpack.c.l.b16 %v197
    %v213 = vunpack.c.l.b16 %v198
    %v214 = vunpack.c.l.b16 %v199
    %v215 = vunpack.c.l.b16 %v200
    %v216 = vpack.c.b16 %v213, %v212
    %v217 = vpack.c.b16 %v215, %v214
    %v221 = vsel %vm152, %v125, 0
    %223 = vmatprep.subr.bf16.mxu0 0
    %224 = vmatpush1.bf16.msra.mxu0 %v216
    %225 = vmatprep.subr.bf16.mxu0 0
    %226 = vmatpush1.bf16.msra.mxu0 %v217
    %227 = vmatprep.subr.bf16.mxu0 0
    %228 = vmatpush1.bf16.msra.mxu0 0
    %229 = vmatprep.subr.bf16.mxu0 0
    %230 = vmatpush1.bf16.msra.mxu0 0
    %231 = vmatprep.subr.bf16.mxu0 0
    %232 = vmatpush1.bf16.msra.mxu0 0
    %233 = vmatprep.subr.bf16.mxu0 0
    %234 = vmatpush1.bf16.msra.mxu0 0
    %235 = vmatprep.subr.bf16.mxu0 0
    %236 = vmatpush1.bf16.msra.mxu0 0
    %237 = vmatprep.subr.bf16.mxu0 0
    %238 = vmatpush1.bf16.msra.mxu0 0
    %239 = vmatprep.subr.bf16.mxu0 0
    %240 = vmatpush1.bf16.msra.mxu0 0
    %241 = vmatprep.subr.bf16.mxu0 0
    %242 = vmatpush1.bf16.msra.mxu0 0
    %243 = vmatprep.subr.bf16.mxu0 0
    %244 = vmatpush1.bf16.msra.mxu0 0
    %245 = vmatprep.subr.bf16.mxu0 0
    %246 = vmatpush1.bf16.msra.mxu0 0
    %247 = vmatprep.subr.bf16.mxu0 0
    %248 = vmatpush1.bf16.msra.mxu0 0
    %249 = vmatprep.subr.bf16.mxu0 0
    %250 = vmatpush1.bf16.msra.mxu0 0
    %251 = vmatprep.subr.bf16.mxu0 0
    %252 = vmatpush1.bf16.msra.mxu0 0
    %253 = vmatprep.subr.bf16.mxu0 0
    %254 = vmatpush1.bf16.msra.mxu0 0
    %255 = vmatprep.mubr.bf16.mxu0 0
    %256 = vmatmul.mubr.bf16.gmra.mrb[0].mxu0 %v221
    %v257 = vpop.f32.mrb[0].mxu0
    %v258 = vadd.f32 %v206, %v257
    %v259 = vpop.f32.mrb[0].mxu0
    %v260 = vpop.f32.mrb[0].mxu0
    %v261 = vadd.f32 %v206, %v260
    %v262 = vpop.f32.mrb[0].mxu0
    %263 = vdwg.mxu0
    %v264 = vld [vmem:[#allocation10] sm:$0xf]
    %v265 = vld [vmem:[#allocation10 + $0x4] sm:$0xf]
    %v266 = vld [vmem:[#allocation10 + $0x8] sm:$0xf]
    %v267 = vld [vmem:[#allocation10 + $0xc] sm:$0xf]
    %v268 = vld [vmem:[#allocation11] sm:$0x1]
    %v270 = vlaneseq
    %v271 = vshrl.u32 %v270, 7
    %v272 = vsub.s32 0, %v271
    %v273 = vrot.slane %v268, %v272
    %v279 = vunpack.c.l.b16 %v264
    %v280 = vunpack.c.l.b16 %v265
    %v281 = vunpack.c.l.b16 %v266
    %v282 = vunpack.c.l.b16 %v267
    %v283 = vpack.c.b16 %v280, %v279
    %v284 = vpack.c.b16 %v282, %v281
    %v288 = vsel %vm152, %v128, 0
    %290 = vmatprep.subr.bf16.mxu0 0
    %291 = vmatpush1.bf16.msra.mxu0 %v283
    %292 = vmatprep.subr.bf16.mxu0 0
    %293 = vmatpush1.bf16.msra.mxu0 %v284
    %294 = vmatprep.subr.bf16.mxu0 0
    %295 = vmatpush1.bf16.msra.mxu0 0
    %296 = vmatprep.subr.bf16.mxu0 0
    %297 = vmatpush1.bf16.msra.mxu0 0
    %298 = vmatprep.subr.bf16.mxu0 0
    %299 = vmatpush1.bf16.msra.mxu0 0
    %300 = vmatprep.subr.bf16.mxu0 0
    %301 = vmatpush1.bf16.msra.mxu0 0
    %302 = vmatprep.subr.bf16.mxu0 0
    %303 = vmatpush1.bf16.msra.mxu0 0
    %304 = vmatprep.subr.bf16.mxu0 0
    %305 = vmatpush1.bf16.msra.mxu0 0
    %306 = vmatprep.subr.bf16.mxu0 0
    %307 = vmatpush1.bf16.msra.mxu0 0
    %308 = vmatprep.subr.bf16.mxu0 0
    %309 = vmatpush1.bf16.msra.mxu0 0
    %310 = vmatprep.subr.bf16.mxu0 0
    %311 = vmatpush1.bf16.msra.mxu0 0
    %312 = vmatprep.subr.bf16.mxu0 0
    %313 = vmatpush1.bf16.msra.mxu0 0
    %314 = vmatprep.subr.bf16.mxu0 0
    %315 = vmatpush1.bf16.msra.mxu0 0
    %316 = vmatprep.subr.bf16.mxu0 0
    %317 = vmatpush1.bf16.msra.mxu0 0
    %318 = vmatprep.subr.bf16.mxu0 0
    %319 = vmatpush1.bf16.msra.mxu0 0
    %320 = vmatprep.subr.bf16.mxu0 0
    %321 = vmatpush1.bf16.msra.mxu0 0
    %322 = vmatprep.mubr.bf16.mxu0 0
    %323 = vmatmul.mubr.bf16.gmra.mrb[0].mxu0 %v288
    %v324 = vpop.f32.mrb[0].mxu0
    %v325 = vadd.f32 %v273, %v324
    %v326 = vpop.f32.mrb[0].mxu0
    %v327 = vpop.f32.mrb[0].mxu0
    %v328 = vadd.f32 %v273, %v327
    %v329 = vpop.f32.mrb[0].mxu0
    %330 = vdwg.mxu0
    %v331 = vmul.f32 %v191, 0.17677669
    %v332 = vmul.f32 %v194, 0.17677669
    %v333 = vpack.c.bf16 %v332, %v331
    %v334 = vpack.c.bf16 %v261, %v258
    %v335 = vpack.c.bf16 %v328, %v325
    %v336 = vld [vmem:[%s10] sm:$0x1]
    %vm337 = vcmask 64512
    %v339 = vsel %vm337, %v333, 0
    %v342 = vsel %vm337, %v334, 0
    %344 = vmatprep.subr.bf16.mxu0 0
    %345 = vmatpush1.bf16.xpose.msra.mxu0 %v342
    %346 = vmatprep.subr.bf16.mxu0 0
    %347 = vmatpush1.bf16.xpose.msra.mxu0 0
    %348 = vmatprep.subr.bf16.mxu0 0
    %349 = vmatpush1.bf16.xpose.msra.mxu0 0
    %350 = vmatprep.subr.bf16.mxu0 0
    %351 = vmatpush1.bf16.xpose.msra.mxu0 0
    %352 = vmatprep.subr.bf16.mxu0 0
    %353 = vmatpush1.bf16.xpose.msra.mxu0 0
    %354 = vmatprep.subr.bf16.mxu0 0
    %355 = vmatpush1.bf16.xpose.msra.mxu0 0
    %356 = vmatprep.subr.bf16.mxu0 0
    %357 = vmatpush1.bf16.xpose.msra.mxu0 0
    %358 = vmatprep.subr.bf16.mxu0 0
    %359 = vmatpush1.bf16.xpose.msra.mxu0 0
    %360 = vmatprep.subr.bf16.mxu0 0
    %361 = vmatpush1.bf16.xpose.msra.mxu0 0
    %362 = vmatprep.subr.bf16.mxu0 0
    %363 = vmatpush1.bf16.xpose.msra.mxu0 0
    %364 = vmatprep.subr.bf16.mxu0 0
    %365 = vmatpush1.bf16.xpose.msra.mxu0 0
    %366 = vmatprep.subr.bf16.mxu0 0
    %367 = vmatpush1.bf16.xpose.msra.mxu0 0
    %368 = vmatprep.subr.bf16.mxu0 0
    %369 = vmatpush1.bf16.xpose.msra.mxu0 0
    %370 = vmatprep.subr.bf16.mxu0 0
    %371 = vmatpush1.bf16.xpose.msra.mxu0 0
    %372 = vmatprep.subr.bf16.mxu0 0
    %373 = vmatpush1.bf16.xpose.msra.mxu0 0
    %374 = vmatprep.subr.bf16.mxu0 0
    %375 = vmatpush1.bf16.xpose.msra.mxu0 0
    %376 = vmatprep.mubr.bf16.mxu0 0
    %377 = vmatmul.mubr.bf16.gmra.mrb[0].mxu0 %v339
    %v378 = vpop.f32.mrb[0].mxu0
    %v379 = vadd.f32 0.0, %v378
    %v380 = vpop.f32.mrb[0].mxu0
    %v381 = vpop.f32.mrb[0].mxu0
    %v382 = vpop.f32.mrb[0].mxu0
    %383 = vdwg.mxu0
    %v384 = vsel %vm337, %v379, -inf
    %385 = vmax.xlane.f32.xlu0 %v384
    %v386 = vpop.xlane.xlu0 %385
    %v387 = vsub.f32 %v379, %v386
    %v388 = vmul.f32 %v387, 1.442695
    %v389 = vpow.pop %v388
    %v390 = vsel %vm337, %v389, 0.0
    %391 = vadd.xlane.f32.xlu0 %v390
    %v392 = vpop.xlane.xlu0 %391
    %v393 = vpack.c.bf16 %v389, %v389
    %v395 = vsel %vm337, %v393, 0
    %vm397 = vcmask 1043456
    %v399 = vsel %vm397, %v335, 0
    %401 = vmatprep.subr.bf16.mxu0 0
    %402 = vmatpush1.bf16.msra.mxu0 %v399
    %403 = vmatprep.subr.bf16.mxu0 0
    %404 = vmatpush1.bf16.msra.mxu0 0
    %405 = vmatprep.subr.bf16.mxu0 0
    %406 = vmatpush1.bf16.msra.mxu0 0
    %407 = vmatprep.subr.bf16.mxu0 0
    %408 = vmatpush1.bf16.msra.mxu0 0
    %409 = vmatprep.subr.bf16.mxu0 0
    %410 = vmatpush1.bf16.msra.mxu0 0
    %411 = vmatprep.subr.bf16.mxu0 0
    %412 = vmatpush1.bf16.msra.mxu0 0
    %413 = vmatprep.subr.bf16.mxu0 0
    %414 = vmatpush1.bf16.msra.mxu0 0
    %415 = vmatprep.subr.bf16.mxu0 0
    %416 = vmatpush1.bf16.msra.mxu0 0
    %417 = vmatprep.subr.bf16.mxu0 0
    %418 = vmatpush1.bf16.msra.mxu0 0
    %419 = vmatprep.subr.bf16.mxu0 0
    %420 = vmatpush1.bf16.msra.mxu0 0
    %421 = vmatprep.subr.bf16.mxu0 0
    %422 = vmatpush1.bf16.msra.mxu0 0
    %423 = vmatprep.subr.bf16.mxu0 0
    %424 = vmatpush1.bf16.msra.mxu0 0
    %425 = vmatprep.subr.bf16.mxu0 0
    %426 = vmatpush1.bf16.msra.mxu0 0
    %427 = vmatprep.subr.bf16.mxu0 0
    %428 = vmatpush1.bf16.msra.mxu0 0
    %429 = vmatprep.subr.bf16.mxu0 0
    %430 = vmatpush1.bf16.msra.mxu0 0
    %431 = vmatprep.subr.bf16.mxu0 0
    %432 = vmatpush1.bf16.msra.mxu0 0
    %433 = vmatprep.mubr.bf16.mxu0 0
    %434 = vmatmul.mubr.bf16.gmra.mrb[0].mxu0 %v395
    %v435 = vpop.f32.mrb[0].mxu0
    %v436 = vadd.f32 0.0, %v435
    %v437 = vpop.f32.mrb[0].mxu0
    %v438 = vpop.f32.mrb[0].mxu0
    %v439 = vpop.f32.mrb[0].mxu0
    %440 = vdwg.mxu0
    %v441 = vrcp.pop %v392
    %v442 = vmul.f32 %v436, %v441
    %v443 = vpack.c.bf16 %v442, %v442
    %v444 = vld [vmem:[%s9] sm:$0xf]
    %446 = vrot.lane.b32.xlu0 %v333, 120
    %v447 = vpop.permute.xlu0 %446
    %449 = vrot.lane.b32.xlu0 %v334, 120
    %v450 = vpop.permute.xlu0 %449
    %v452 = vsel %vm337, %v447, 0
    %v455 = vsel %vm337, %v450, 0
    %457 = vmatprep.subr.bf16.mxu0 0
    %458 = vmatpush1.bf16.xpose.msra.mxu0 %v455
    %459 = vmatprep.subr.bf16.mxu0 0
    %460 = vmatpush1.bf16.xpose.msra.mxu0 0
    %461 = vmatprep.subr.bf16.mxu0 0
    %462 = vmatpush1.bf16.xpose.msra.mxu0 0
    %463 = vmatprep.subr.bf16.mxu0 0
    %464 = vmatpush1.bf16.xpose.msra.mxu0 0
    %465 = vmatprep.subr.bf16.mxu0 0
    %466 = vmatpush1.bf16.xpose.msra.mxu0 0
    %467 = vmatprep.subr.bf16.mxu0 0
    %468 = vmatpush1.bf16.xpose.msra.mxu0 0
    %469 = vmatprep.subr.bf16.mxu0 0
    %470 = vmatpush1.bf16.xpose.msra.mxu0 0
    %471 = vmatprep.subr.bf16.mxu0 0
    %472 = vmatpush1.bf16.xpose.msra.mxu0 0
    %473 = vmatprep.subr.bf16.mxu0 0
    %474 = vmatpush1.bf16.xpose.msra.mxu0 0
    %475 = vmatprep.subr.bf16.mxu0 0
    %476 = vmatpush1.bf16.xpose.msra.mxu0 0
    %477 = vmatprep.subr.bf16.mxu0 0
    %478 = vmatpush1.bf16.xpose.msra.mxu0 0
    %479 = vmatprep.subr.bf16.mxu0 0
    %480 = vmatpush1.bf16.xpose.msra.mxu0 0
    %481 = vmatprep.subr.bf16.mxu0 0
    %482 = vmatpush1.bf16.xpose.msra.mxu0 0
    %483 = vmatprep.subr.bf16.mxu0 0
    %484 = vmatpush1.bf16.xpose.msra.mxu0 0
    %485 = vmatprep.subr.bf16.mxu0 0
    %486 = vmatpush1.bf16.xpose.msra.mxu0 0
    %487 = vmatprep.subr.bf16.mxu0 0
    %488 = vmatpush1.bf16.xpose.msra.mxu0 0
    %489 = vmatprep.mubr.bf16.mxu0 0
    %490 = vmatmul.mubr.bf16.gmra.mrb[0].mxu0 %v452
    %v491 = vpop.f32.mrb[0].mxu0
    %v492 = vadd.f32 0.0, %v491
    %v493 = vpop.f32.mrb[0].mxu0
    %v494 = vpop.f32.mrb[0].mxu0
    %v495 = vpop.f32.mrb[0].mxu0
    %496 = vdwg.mxu0
    %v497 = vsel %vm337, %v492, -inf
    %498 = vmax.xlane.f32.xlu0 %v497
    %v499 = vpop.xlane.xlu0 %498
    %v500 = vsub.f32 %v492, %v499
    %v501 = vmul.f32 %v500, 1.442695
    %v502 = vpow.pop %v501
    %v503 = vsel %vm337, %v502, 0.0
    %504 = vadd.xlane.f32.xlu0 %v503
    %v505 = vpop.xlane.xlu0 %504
    %v506 = vpack.c.bf16 %v502, %v502
    %508 = vrot.lane.b32.xlu0 %v335, 120
    %v509 = vpop.permute.xlu0 %508
    %v511 = vsel %vm337, %v506, 0
    %v514 = vsel %vm397, %v509, 0
    %516 = vmatprep.subr.bf16.mxu0 0
    %517 = vmatpush1.bf16.msra.mxu0 %v514
    %518 = vmatprep.subr.bf16.mxu0 0
    %519 = vmatpush1.bf16.msra.mxu0 0
    %520 = vmatprep.subr.bf16.mxu0 0
    %521 = vmatpush1.bf16.msra.mxu0 0
    %522 = vmatprep.subr.bf16.mxu0 0
    %523 = vmatpush1.bf16.msra.mxu0 0
    %524 = vmatprep.subr.bf16.mxu0 0
    %525 = vmatpush1.bf16.msra.mxu0 0
    %526 = vmatprep.subr.bf16.mxu0 0
    %527 = vmatpush1.bf16.msra.mxu0 0
    %528 = vmatprep.subr.bf16.mxu0 0
    %529 = vmatpush1.bf16.msra.mxu0 0
    %530 = vmatprep.subr.bf16.mxu0 0
    %531 = vmatpush1.bf16.msra.mxu0 0
    %532 = vmatprep.subr.bf16.mxu0 0
    %533 = vmatpush1.bf16.msra.mxu0 0
    %534 = vmatprep.subr.bf16.mxu0 0
    %535 = vmatpush1.bf16.msra.mxu0 0
    %536 = vmatprep.subr.bf16.mxu0 0
    %537 = vmatpush1.bf16.msra.mxu0 0
    %538 = vmatprep.subr.bf16.mxu0 0
    %539 = vmatpush1.bf16.msra.mxu0 0
    %540 = vmatprep.subr.bf16.mxu0 0
    %541 = vmatpush1.bf16.msra.mxu0 0
    %542 = vmatprep.subr.bf16.mxu0 0
    %543 = vmatpush1.bf16.msra.mxu0 0
    %544 = vmatprep.subr.bf16.mxu0 0
    %545 = vmatpush1.bf16.msra.mxu0 0
    %546 = vmatprep.subr.bf16.mxu0 0
    %547 = vmatpush1.bf16.msra.mxu0 0
    %548 = vmatprep.mubr.bf16.mxu0 0
    %549 = vmatmul.mubr.bf16.gmra.mrb[0].mxu0 %v511
    %v550 = vpop.f32.mrb[0].mxu0
    %v551 = vadd.f32 0.0, %v550
    %v552 = vpop.f32.mrb[0].mxu0
    %v553 = vpop.f32.mrb[0].mxu0
    %v554 = vpop.f32.mrb[0].mxu0
    %555 = vdwg.mxu0
    %v556 = vrcp.pop %v505
    %v557 = vmul.f32 %v551, %v556
    %v558 = vpack.c.bf16 %v557, %v557
    %v559 = vld [vmem:[%s9 + $0x4] sm:$0xf]
    %v561 = vsel %vm337, %v558, 0
    %v564 = vsel %vm397, %v559, 0
    %566 = vmatprep.subr.bf16.mxu0 0
    %567 = vmatpush1.bf16.msra.mxu0 %v564
    %568 = vmatprep.subr.bf16.mxu0 0
    %569 = vmatpush1.bf16.msra.mxu0 0
    %570 = vmatprep.subr.bf16.mxu0 0
    %571 = vmatpush1.bf16.msra.mxu0 0
    %572 = vmatprep.subr.bf16.mxu0 0
    %573 = vmatpush1.bf16.msra.mxu0 0
    %574 = vmatprep.subr.bf16.mxu0 0
    %575 = vmatpush1.bf16.msra.mxu0 0
    %576 = vmatprep.subr.bf16.mxu0 0
    %577 = vmatpush1.bf16.msra.mxu0 0
    %578 = vmatprep.subr.bf16.mxu0 0
    %579 = vmatpush1.bf16.msra.mxu0 0
    %580 = vmatprep.subr.bf16.mxu0 0
    %581 = vmatpush1.bf16.msra.mxu0 0
    %582 = vmatprep.subr.bf16.mxu0 0
    %583 = vmatpush1.bf16.msra.mxu0 0
    %584 = vmatprep.subr.bf16.mxu0 0
    %585 = vmatpush1.bf16.msra.mxu0 0
    %586 = vmatprep.subr.bf16.mxu0 0
    %587 = vmatpush1.bf16.msra.mxu0 0
    %588 = vmatprep.subr.bf16.mxu0 0
    %589 = vmatpush1.bf16.msra.mxu0 0
    %590 = vmatprep.subr.bf16.mxu0 0
    %591 = vmatpush1.bf16.msra.mxu0 0
    %592 = vmatprep.subr.bf16.mxu0 0
    %593 = vmatpush1.bf16.msra.mxu0 0
    %594 = vmatprep.subr.bf16.mxu0 0
    %595 = vmatpush1.bf16.msra.mxu0 0
    %596 = vmatprep.subr.bf16.mxu0 0
    %597 = vmatpush1.bf16.msra.mxu0 0
    %598 = vmatprep.mubr.bf16.mxu0 0
    %599 = vmatmul.mubr.bf16.gmra.mrb[0].mxu0 %v561
    %v600 = vpop.f32.mrb[0].mxu0
    %v601 = vadd.f32 0.0, %v600
    %v602 = vpop.f32.mrb[0].mxu0
    %v603 = vpop.f32.mrb[0].mxu0
    %v604 = vpop.f32.mrb[0].mxu0
    %605 = vdwg.mxu0
    %v607 = vsel %vm337, %v443, 0
    %v610 = vsel %vm397, %v444, 0
    %612 = vmatprep.subr.bf16.mxu0 0
    %613 = vmatpush1.bf16.msra.mxu0 %v610
    %614 = vmatprep.subr.bf16.mxu0 0
    %615 = vmatpush1.bf16.msra.mxu0 0
    %616 = vmatprep.subr.bf16.mxu0 0
    %617 = vmatpush1.bf16.msra.mxu0 0
    %618 = vmatprep.subr.bf16.mxu0 0
    %619 = vmatpush1.bf16.msra.mxu0 0
    %620 = vmatprep.subr.bf16.mxu0 0
    %621 = vmatpush1.bf16.msra.mxu0 0
    %622 = vmatprep.subr.bf16.mxu0 0
    %623 = vmatpush1.bf16.msra.mxu0 0
    %624 = vmatprep.subr.bf16.mxu0 0
    %625 = vmatpush1.bf16.msra.mxu0 0
    %626 = vmatprep.subr.bf16.mxu0 0
    %627 = vmatpush1.bf16.msra.mxu0 0
    %628 = vmatprep.subr.bf16.mxu0 0
    %629 = vmatpush1.bf16.msra.mxu0 0
    %630 = vmatprep.subr.bf16.mxu0 0
    %631 = vmatpush1.bf16.msra.mxu0 0
    %632 = vmatprep.subr.bf16.mxu0 0
    %633 = vmatpush1.bf16.msra.mxu0 0
    %634 = vmatprep.subr.bf16.mxu0 0
    %635 = vmatpush1.bf16.msra.mxu0 0
    %636 = vmatprep.subr.bf16.mxu0 0
    %637 = vmatpush1.bf16.msra.mxu0 0
    %638 = vmatprep.subr.bf16.mxu0 0
    %639 = vmatpush1.bf16.msra.mxu0 0
    %640 = vmatprep.subr.bf16.mxu0 0
    %641 = vmatpush1.bf16.msra.mxu0 0
    %642 = vmatprep.subr.bf16.mxu0 0
    %643 = vmatpush1.bf16.msra.mxu0 0
    %644 = vmatprep.mubr.bf16.mxu0 0
    %645 = vmatmul.mubr.bf16.gmra.mrb[0].mxu0 %v607
    %v646 = vpop.f32.mrb[0].mxu0
    %v647 = vadd.f32 %v601, %v646
    %v648 = vpop.f32.mrb[0].mxu0
    %v649 = vpop.f32.mrb[0].mxu0
    %v650 = vpop.f32.mrb[0].mxu0
    %651 = vdwg.mxu0
    %652 = vrot.lane.b32.xlu0 %v333, 112
    %v653 = vpop.permute.xlu0 %652
    %654 = vrot.lane.b32.xlu0 %v334, 112
    %v655 = vpop.permute.xlu0 %654
    %v657 = vsel %vm337, %v653, 0
    %v660 = vsel %vm337, %v655, 0
    %662 = vmatprep.subr.bf16.mxu0 0
    %663 = vmatpush1.bf16.xpose.msra.mxu0 %v660
    %664 = vmatprep.subr.bf16.mxu0 0
    %665 = vmatpush1.bf16.xpose.msra.mxu0 0
    %666 = vmatprep.subr.bf16.mxu0 0
    %667 = vmatpush1.bf16.xpose.msra.mxu0 0
    %668 = vmatprep.subr.bf16.mxu0 0
    %669 = vmatpush1.bf16.xpose.msra.mxu0 0
    %670 = vmatprep.subr.bf16.mxu0 0
    %671 = vmatpush1.bf16.xpose.msra.mxu0 0
    %672 = vmatprep.subr.bf16.mxu0 0
    %673 = vmatpush1.bf16.xpose.msra.mxu0 0
    %674 = vmatprep.subr.bf16.mxu0 0
    %675 = vmatpush1.bf16.xpose.msra.mxu0 0
    %676 = vmatprep.subr.bf16.mxu0 0
    %677 = vmatpush1.bf16.xpose.msra.mxu0 0
    %678 = vmatprep.subr.bf16.mxu0 0
    %679 = vmatpush1.bf16.xpose.msra.mxu0 0
    %680 = vmatprep.subr.bf16.mxu0 0
    %681 = vmatpush1.bf16.xpose.msra.mxu0 0
    %682 = vmatprep.subr.bf16.mxu0 0
    %683 = vmatpush1.bf16.xpose.msra.mxu0 0
    %684 = vmatprep.subr.bf16.mxu0 0
    %685 = vmatpush1.bf16.xpose.msra.mxu0 0
    %686 = vmatprep.subr.bf16.mxu0 0
    %687 = vmatpush1.bf16.xpose.msra.mxu0 0
    %688 = vmatprep.subr.bf16.mxu0 0
    %689 = vmatpush1.bf16.xpose.msra.mxu0 0
    %690 = vmatprep.subr.bf16.mxu0 0
    %691 = vmatpush1.bf16.xpose.msra.mxu0 0
    %692 = vmatprep.subr.bf16.mxu0 0
    %693 = vmatpush1.bf16.xpose.msra.mxu0 0
    %694 = vmatprep.mubr.bf16.mxu0 0
    %695 = vmatmul.mubr.bf16.gmra.mrb[0].mxu0 %v657
    %v696 = vpop.f32.mrb[0].mxu0
    %v697 = vadd.f32 0.0, %v696
    %v698 = vpop.f32.mrb[0].mxu0
    %v699 = vpop.f32.mrb[0].mxu0
    %v700 = vpop.f32.mrb[0].mxu0
    %701 = vdwg.mxu0
    %v702 = vsel %vm337, %v697, -inf
    %703 = vmax.xlane.f32.xlu0 %v702
    %v704 = vpop.xlane.xlu0 %703
    %v705 = vsub.f32 %v697, %v704
    %v706 = vmul.f32 %v705, 1.442695
    %v707 = vpow.pop %v706
    %v708 = vsel %vm337, %v707, 0.0
    %709 = vadd.xlane.f32.xlu0 %v708
    %v710 = vpop.xlane.xlu0 %709
    %v711 = vpack.c.bf16 %v707, %v707
    %712 = vrot.lane.b32.xlu0 %v335, 112
    %v713 = vpop.permute.xlu0 %712
    %v715 = vsel %vm337, %v711, 0
    %v718 = vsel %vm397, %v713, 0
    %720 = vmatprep.subr.bf16.mxu0 0
    %721 = vmatpush1.bf16.msra.mxu0 %v718
    %722 = vmatprep.subr.bf16.mxu0 0
    %723 = vmatpush1.bf16.msra.mxu0 0
    %724 = vmatprep.subr.bf16.mxu0 0
    %725 = vmatpush1.bf16.msra.mxu0 0
    %726 = vmatprep.subr.bf16.mxu0 0
    %727 = vmatpush1.bf16.msra.mxu0 0
    %728 = vmatprep.subr.bf16.mxu0 0
    %729 = vmatpush1.bf16.msra.mxu0 0
    %730 = vmatprep.subr.bf16.mxu0 0
    %731 = vmatpush1.bf16.msra.mxu0 0
    %732 = vmatprep.subr.bf16.mxu0 0
    %733 = vmatpush1.bf16.msra.mxu0 0
    %734 = vmatprep.subr.bf16.mxu0 0
    %735 = vmatpush1.bf16.msra.mxu0 0
    %736 = vmatprep.subr.bf16.mxu0 0
    %737 = vmatpush1.bf16.msra.mxu0 0
    %738 = vmatprep.subr.bf16.mxu0 0
    %739 = vmatpush1.bf16.msra.mxu0 0
    %740 = vmatprep.subr.bf16.mxu0 0
    %741 = vmatpush1.bf16.msra.mxu0 0
    %742 = vmatprep.subr.bf16.mxu0 0
    %743 = vmatpush1.bf16.msra.mxu0 0
    %744 = vmatprep.subr.bf16.mxu0 0
    %745 = vmatpush1.bf16.msra.mxu0 0
    %746 = vmatprep.subr.bf16.mxu0 0
    %747 = vmatpush1.bf16.msra.mxu0 0
    %748 = vmatprep.subr.bf16.mxu0 0
    %749 = vmatpush1.bf16.msra.mxu0 0
    %750 = vmatprep.subr.bf16.mxu0 0
    %751 = vmatpush1.bf16.msra.mxu0 0
    %752 = vmatprep.mubr.bf16.mxu0 0
    %753 = vmatmul.mubr.bf16.gmra.mrb[0].mxu0 %v715
    %v754 = vpop.f32.mrb[0].mxu0
    %v755 = vadd.f32 0.0, %v754
    %v756 = vpop.f32.mrb[0].mxu0
    %v757 = vpop.f32.mrb[0].mxu0
    %v758 = vpop.f32.mrb[0].mxu0
    %759 = vdwg.mxu0
    %v760 = vrcp.pop %v710
    %v761 = vmul.f32 %v755, %v760
    %v762 = vpack.c.bf16 %v761, %v761
    %v763 = vld [vmem:[%s9 + $0x8] sm:$0xf]
    %v765 = vsel %vm337, %v762, 0
    %v768 = vsel %vm397, %v763, 0
    %770 = vmatprep.subr.bf16.mxu0 0
    %771 = vmatpush1.bf16.msra.mxu0 %v768
    %772 = vmatprep.subr.bf16.mxu0 0
    %773 = vmatpush1.bf16.msra.mxu0 0
    %774 = vmatprep.subr.bf16.mxu0 0
    %775 = vmatpush1.bf16.msra.mxu0 0
    %776 = vmatprep.subr.bf16.mxu0 0
    %777 = vmatpush1.bf16.msra.mxu0 0
    %778 = vmatprep.subr.bf16.mxu0 0
    %779 = vmatpush1.bf16.msra.mxu0 0
    %780 = vmatprep.subr.bf16.mxu0 0
    %781 = vmatpush1.bf16.msra.mxu0 0
    %782 = vmatprep.subr.bf16.mxu0 0
    %783 = vmatpush1.bf16.msra.mxu0 0
    %784 = vmatprep.subr.bf16.mxu0 0
    %785 = vmatpush1.bf16.msra.mxu0 0
    %786 = vmatprep.subr.bf16.mxu0 0
    %787 = vmatpush1.bf16.msra.mxu0 0
    %788 = vmatprep.subr.bf16.mxu0 0
    %789 = vmatpush1.bf16.msra.mxu0 0
    %790 = vmatprep.subr.bf16.mxu0 0
    %791 = vmatpush1.bf16.msra.mxu0 0
    %792 = vmatprep.subr.bf16.mxu0 0
    %793 = vmatpush1.bf16.msra.mxu0 0
    %794 = vmatprep.subr.bf16.mxu0 0
    %795 = vmatpush1.bf16.msra.mxu0 0
    %796 = vmatprep.subr.bf16.mxu0 0
    %797 = vmatpush1.bf16.msra.mxu0 0
    %798 = vmatprep.subr.bf16.mxu0 0
    %799 = vmatpush1.bf16.msra.mxu0 0
    %800 = vmatprep.subr.bf16.mxu0 0
    %801 = vmatpush1.bf16.msra.mxu0 0
    %802 = vmatprep.mubr.bf16.mxu0 0
    %803 = vmatmul.mubr.bf16.gmra.mrb[0].mxu0 %v765
    %v804 = vpop.f32.mrb[0].mxu0
    %v805 = vadd.f32 0.0, %v804
    %v806 = vpop.f32.mrb[0].mxu0
    %v807 = vpop.f32.mrb[0].mxu0
    %v808 = vpop.f32.mrb[0].mxu0
    %809 = vdwg.mxu0
    %v810 = vadd.f32 %v647, %v805
    %811 = vrot.lane.b32.xlu0 %v333, 104
    %v812 = vpop.permute.xlu0 %811
    %813 = vrot.lane.b32.xlu0 %v334, 104
    %v814 = vpop.permute.xlu0 %813
    %v816 = vsel %vm337, %v812, 0
    %v819 = vsel %vm337, %v814, 0
    %821 = vmatprep.subr.bf16.mxu0 0
    %822 = vmatpush1.bf16.xpose.msra.mxu0 %v819
    %823 = vmatprep.subr.bf16.mxu0 0
    %824 = vmatpush1.bf16.xpose.msra.mxu0 0
    %825 = vmatprep.subr.bf16.mxu0 0
    %826 = vmatpush1.bf16.xpose.msra.mxu0 0
    %827 = vmatprep.subr.bf16.mxu0 0
    %828 = vmatpush1.bf16.xpose.msra.mxu0 0
    %829 = vmatprep.subr.bf16.mxu0 0
    %830 = vmatpush1.bf16.xpose.msra.mxu0 0
    %831 = vmatprep.subr.bf16.mxu0 0
    %832 = vmatpush1.bf16.xpose.msra.mxu0 0
    %833 = vmatprep.subr.bf16.mxu0 0
    %834 = vmatpush1.bf16.xpose.msra.mxu0 0
    %835 = vmatprep.subr.bf16.mxu0 0
    %836 = vmatpush1.bf16.xpose.msra.mxu0 0
    %837 = vmatprep.subr.bf16.mxu0 0
    %838 = vmatpush1.bf16.xpose.msra.mxu0 0
    %839 = vmatprep.subr.bf16.mxu0 0
    %840 = vmatpush1.bf16.xpose.msra.mxu0 0
    %841 = vmatprep.subr.bf16.mxu0 0
    %842 = vmatpush1.bf16.xpose.msra.mxu0 0
    %843 = vmatprep.subr.bf16.mxu0 0
    %844 = vmatpush1.bf16.xpose.msra.mxu0 0
    %845 = vmatprep.subr.bf16.mxu0 0
    %846 = vmatpush1.bf16.xpose.msra.mxu0 0
    %847 = vmatprep.subr.bf16.mxu0 0
    %848 = vmatpush1.bf16.xpose.msra.mxu0 0
    %849 = vmatprep.subr.bf16.mxu0 0
    %850 = vmatpush1.bf16.xpose.msra.mxu0 0
    %851 = vmatprep.subr.bf16.mxu0 0
    %852 = vmatpush1.bf16.xpose.msra.mxu0 0
    %853 = vmatprep.mubr.bf16.mxu0 0
    %854 = vmatmul.mubr.bf16.gmra.mrb[0].mxu0 %v816
    %v855 = vpop.f32.mrb[0].mxu0
    %v856 = vadd.f32 0.0, %v855
    %v857 = vpop.f32.mrb[0].mxu0
    %v858 = vpop.f32.mrb[0].mxu0
    %v859 = vpop.f32.mrb[0].mxu0
    %860 = vdwg.mxu0
    %v861 = vsel %vm337, %v856, -inf
    %862 = vmax.xlane.f32.xlu0 %v861
    %v863 = vpop.xlane.xlu0 %862
    %v864 = vsub.f32 %v856, %v863
    %v865 = vmul.f32 %v864, 1.442695
    %v866 = vpow.pop %v865
    %v867 = vsel %vm337, %v866, 0.0
    %868 = vadd.xlane.f32.xlu0 %v867
    %v869 = vpop.xlane.xlu0 %868
    %v870 = vpack.c.bf16 %v866, %v866
    %871 = vrot.lane.b32.xlu0 %v335, 104
    %v872 = vpop.permute.xlu0 %871
    %v874 = vsel %vm337, %v870, 0
    %v877 = vsel %vm397, %v872, 0
    %879 = vmatprep.subr.bf16.mxu0 0
    %880 = vmatpush1.bf16.msra.mxu0 %v877
    %881 = vmatprep.subr.bf16.mxu0 0
    %882 = vmatpush1.bf16.msra.mxu0 0
    %883 = vmatprep.subr.bf16.mxu0 0
    %884 = vmatpush1.bf16.msra.mxu0 0
    %885 = vmatprep.subr.bf16.mxu0 0
    %886 = vmatpush1.bf16.msra.mxu0 0
    %887 = vmatprep.subr.bf16.mxu0 0
    %888 = vmatpush1.bf16.msra.mxu0 0
    %889 = vmatprep.subr.bf16.mxu0 0
    %890 = vmatpush1.bf16.msra.mxu0 0
    %891 = vmatprep.subr.bf16.mxu0 0
    %892 = vmatpush1.bf16.msra.mxu0 0
    %893 = vmatprep.subr.bf16.mxu0 0
    %894 = vmatpush1.bf16.msra.mxu0 0
    %895 = vmatprep.subr.bf16.mxu0 0
    %896 = vmatpush1.bf16.msra.mxu0 0
    %897 = vmatprep.subr.bf16.mxu0 0
    %898 = vmatpush1.bf16.msra.mxu0 0
    %899 = vmatprep.subr.bf16.mxu0 0
    %900 = vmatpush1.bf16.msra.mxu0 0
    %901 = vmatprep.subr.bf16.mxu0 0
    %902 = vmatpush1.bf16.msra.mxu0 0
    %903 = vmatprep.subr.bf16.mxu0 0
    %904 = vmatpush1.bf16.msra.mxu0 0
    %905 = vmatprep.subr.bf16.mxu0 0
    %906 = vmatpush1.bf16.msra.mxu0 0
    %907 = vmatprep.subr.bf16.mxu0 0
    %908 = vmatpush1.bf16.msra.mxu0 0
    %909 = vmatprep.subr.bf16.mxu0 0
    %910 = vmatpush1.bf16.msra.mxu0 0
    %911 = vmatprep.mubr.bf16.mxu0 0
    %912 = vmatmul.mubr.bf16.gmra.mrb[0].mxu0 %v874
    %v913 = vpop.f32.mrb[0].mxu0
    %v914 = vadd.f32 0.0, %v913
    %v915 = vpop.f32.mrb[0].mxu0
    %v916 = vpop.f32.mrb[0].mxu0
    %v917 = vpop.f32.mrb[0].mxu0
    %918 = vdwg.mxu0
    %v919 = vrcp.pop %v869
    %v920 = vmul.f32 %v914, %v919
    %v921 = vpack.c.bf16 %v920, %v920
    %v922 = vld [vmem:[%s9 + $0xc] sm:$0xf]
    %v924 = vsel %vm337, %v921, 0
    %v927 = vsel %vm397, %v922, 0
    %929 = vmatprep.subr.bf16.mxu0 0
    %930 = vmatpush1.bf16.msra.mxu0 %v927
    %931 = vmatprep.subr.bf16.mxu0 0
    %932 = vmatpush1.bf16.msra.mxu0 0
    %933 = vmatprep.subr.bf16.mxu0 0
    %934 = vmatpush1.bf16.msra.mxu0 0
    %935 = vmatprep.subr.bf16.mxu0 0
    %936 = vmatpush1.bf16.msra.mxu0 0
    %937 = vmatprep.subr.bf16.mxu0 0
    %938 = vmatpush1.bf16.msra.mxu0 0
    %939 = vmatprep.subr.bf16.mxu0 0
    %940 = vmatpush1.bf16.msra.mxu0 0
    %941 = vmatprep.subr.bf16.mxu0 0
    %942 = vmatpush1.bf16.msra.mxu0 0
    %943 = vmatprep.subr.bf16.mxu0 0
    %944 = vmatpush1.bf16.msra.mxu0 0
    %945 = vmatprep.subr.bf16.mxu0 0
    %946 = vmatpush1.bf16.msra.mxu0 0
    %947 = vmatprep.subr.bf16.mxu0 0
    %948 = vmatpush1.bf16.msra.mxu0 0
    %949 = vmatprep.subr.bf16.mxu0 0
    %950 = vmatpush1.bf16.msra.mxu0 0
    %951 = vmatprep.subr.bf16.mxu0 0
    %952 = vmatpush1.bf16.msra.mxu0 0
    %953 = vmatprep.subr.bf16.mxu0 0
    %954 = vmatpush1.bf16.msra.mxu0 0
    %955 = vmatprep.subr.bf16.mxu0 0
    %956 = vmatpush1.bf16.msra.mxu0 0
    %957 = vmatprep.subr.bf16.mxu0 0
    %958 = vmatpush1.bf16.msra.mxu0 0
    %959 = vmatprep.subr.bf16.mxu0 0
    %960 = vmatpush1.bf16.msra.mxu0 0
    %961 = vmatprep.mubr.bf16.mxu0 0
    %962 = vmatmul.mubr.bf16.gmra.mrb[0].mxu0 %v924
    %v963 = vpop.f32.mrb[0].mxu0
    %v964 = vadd.f32 0.0, %v963
    %v965 = vpop.f32.mrb[0].mxu0
    %v966 = vpop.f32.mrb[0].mxu0
    %v967 = vpop.f32.mrb[0].mxu0
    %968 = vdwg.mxu0
    %v969 = vadd.f32 %v810, %v964
    %v971 = vlaneseq
    %v972 = vshrl.u32 %v971, 7
    %v973 = vsub.s32 0, %v972
    %v974 = vrot.slane %v336, %v973
    %v976 = vadd.f32 %v969, %v974
    %977 = vst.msk [vmem:[#allocation13] sm:$0xff] %vm152, %v976
    %v978 = vrot.slane %v333, 4
    %v979 = vrot.slane %v334, 4
    %v981 = vsel %vm337, %v978, 0
    %v984 = vsel %vm337, %v979, 0
    %986 = vmatprep.subr.bf16.mxu0 0
    %987 = vmatpush1.bf16.xpose.msra.mxu0 %v984
    %988 = vmatprep.subr.bf16.mxu0 0
    %989 = vmatpush1.bf16.xpose.msra.mxu0 0
    %990 = vmatprep.subr.bf16.mxu0 0
    %991 = vmatpush1.bf16.xpose.msra.mxu0 0
    %992 = vmatprep.subr.bf16.mxu0 0
    %993 = vmatpush1.bf16.xpose.msra.mxu0 0
    %994 = vmatprep.subr.bf16.mxu0 0
    %995 = vmatpush1.bf16.xpose.msra.mxu0 0
    %996 = vmatprep.subr.bf16.mxu0 0
    %997 = vmatpush1.bf16.xpose.msra.mxu0 0
    %998 = vmatprep.subr.bf16.mxu0 0
    %999 = vmatpush1.bf16.xpose.msra.mxu0 0
    %1000 = vmatprep.subr.bf16.mxu0 0
    %1001 = vmatpush1.bf16.xpose.msra.mxu0 0
    %1002 = vmatprep.subr.bf16.mxu0 0
    %1003 = vmatpush1.bf16.xpose.msra.mxu0 0
    %1004 = vmatprep.subr.bf16.mxu0 0
    %1005 = vmatpush1.bf16.xpose.msra.mxu0 0
    %1006 = vmatprep.subr.bf16.mxu0 0
    %1007 = vmatpush1.bf16.xpose.msra.mxu0 0
    %1008 = vmatprep.subr.bf16.mxu0 0
    %1009 = vmatpush1.bf16.xpose.msra.mxu0 0
    %1010 = vmatprep.subr.bf16.mxu0 0
    %1011 = vmatpush1.bf16.xpose.msra.mxu0 0
    %1012 = vmatprep.subr.bf16.mxu0 0
    %1013 = vmatpush1.bf16.xpose.msra.mxu0 0
    %1014 = vmatprep.subr.bf16.mxu0 0
    %1015 = vmatpush1.bf16.xpose.msra.mxu0 0
    %1016 = vmatprep.subr.bf16.mxu0 0
    %1017 = vmatpush1.bf16.xpose.msra.mxu0 0
    %1018 = vmatprep.mubr.bf16.mxu0 0
    %1019 = vmatmul.mubr.bf16.gmra.mrb[0].mxu0 %v981
    %v1020 = vpop.f32.mrb[0].mxu0
    %v1021 = vadd.f32 0.0, %v1020
    %v1022 = vpop.f32.mrb[0].mxu0
    %v1023 = vpop.f32.mrb[0].mxu0
    %v1024 = vpop.f32.mrb[0].mxu0
    %1025 = vdwg.mxu0
    %v1026 = vsel %vm337, %v1021, -inf
    %1027 = vmax.xlane.f32.xlu0 %v1026
    %v1028 = vpop.xlane.xlu0 %1027
    %v1029 = vsub.f32 %v1021, %v1028
    %v1030 = vmul.f32 %v1029, 1.442695
    %v1031 = vpow.pop %v1030
    %v1032 = vsel %vm337, %v1031, 0.0
    %1033 = vadd.xlane.f32.xlu0 %v1032
    %v1034 = vpop.xlane.xlu0 %1033
    %v1035 = vpack.c.bf16 %v1031, %v1031
    %v1036 = vrot.slane %v335, 4
    %v1038 = vsel %vm337, %v1035, 0
    %v1041 = vsel %vm397, %v1036, 0
    %1043 = vmatprep.subr.bf16.mxu0 0
    %1044 = vmatpush1.bf16.msra.mxu0 %v1041
    %1045 = vmatprep.subr.bf16.mxu0 0
    %1046 = vmatpush1.bf16.msra.mxu0 0
    %1047 = vmatprep.subr.bf16.mxu0 0
    %1048 = vmatpush1.bf16.msra.mxu0 0
    %1049 = vmatprep.subr.bf16.mxu0 0
    %1050 = vmatpush1.bf16.msra.mxu0 0
    %1051 = vmatprep.subr.bf16.mxu0 0
    %1052 = vmatpush1.bf16.msra.mxu0 0
    %1053 = vmatprep.subr.bf16.mxu0 0
    %1054 = vmatpush1.bf16.msra.mxu0 0
    %1055 = vmatprep.subr.bf16.mxu0 0
    %1056 = vmatpush1.bf16.msra.mxu0 0
    %1057 = vmatprep.subr.bf16.mxu0 0
    %1058 = vmatpush1.bf16.msra.mxu0 0
    %1059 = vmatprep.subr.bf16.mxu0 0
    %1060 = vmatpush1.bf16.msra.mxu0 0
    %1061 = vmatprep.subr.bf16.mxu0 0
    %1062 = vmatpush1.bf16.msra.mxu0 0
    %1063 = vmatprep.subr.bf16.mxu0 0
    %1064 = vmatpush1.bf16.msra.mxu0 0
    %1065 = vmatprep.subr.bf16.mxu0 0
    %1066 = vmatpush1.bf16.msra.mxu0 0
    %1067 = vmatprep.subr.bf16.mxu0 0
    %1068 = vmatpush1.bf16.msra.mxu0 0
    %1069 = vmatprep.subr.bf16.mxu0 0
    %1070 = vmatpush1.bf16.msra.mxu0 0
    %1071 = vmatprep.subr.bf16.mxu0 0
    %1072 = vmatpush1.bf16.msra.mxu0 0
    %1073 = vmatprep.subr.bf16.mxu0 0
    %1074 = vmatpush1.bf16.msra.mxu0 0
    %1075 = vmatprep.mubr.bf16.mxu0 0
    %1076 = vmatmul.mubr.bf16.gmra.mrb[0].mxu0 %v1038
    %v1077 = vpop.f32.mrb[0].mxu0
    %v1078 = vadd.f32 0.0, %v1077
    %v1079 = vpop.f32.mrb[0].mxu0
    %v1080 = vpop.f32.mrb[0].mxu0
    %v1081 = vpop.f32.mrb[0].mxu0
    %1082 = vdwg.mxu0
    %v1083 = vrcp.pop %v1034
    %v1084 = vmul.f32 %v1078, %v1083
    %v1085 = vpack.c.bf16 %v1084, %v1084
    %v1086 = vld [vmem:[%s9] sm:$0xf]
    %1087 = vrot.lane.b32.xlu0 %v978, 120
    %v1088 = vpop.permute.xlu0 %1087
    %1089 = vrot.lane.b32.xlu0 %v979, 120
    %v1090 = vpop.permute.xlu0 %1089
    %v1092 = vsel %vm337, %v1088, 0
    %v1095 = vsel %vm337, %v1090, 0
    %1097 = vmatprep.subr.bf16.mxu0 0
    %1098 = vmatpush1.bf16.xpose.msra.mxu0 %v1095
    %1099 = vmatprep.subr.bf16.mxu0 0
    %1100 = vmatpush1.bf16.xpose.msra.mxu0 0
    %1101 = vmatprep.subr.bf16.mxu0 0
    %1102 = vmatpush1.bf16.xpose.msra.mxu0 0
    %1103 = vmatprep.subr.bf16.mxu0 0
    %1104 = vmatpush1.bf16.xpose.msra.mxu0 0
    %1105 = vmatprep.subr.bf16.mxu0 0
    %1106 = vmatpush1.bf16.xpose.msra.mxu0 0
    %1107 = vmatprep.subr.bf16.mxu0 0
    %1108 = vmatpush1.bf16.xpose.msra.mxu0 0
    %1109 = vmatprep.subr.bf16.mxu0 0
    %1110 = vmatpush1.bf16.xpose.msra.mxu0 0
    %1111 = vmatprep.subr.bf16.mxu0 0
    %1112 = vmatpush1.bf16.xpose.msra.mxu0 0
    %1113 = vmatprep.subr.bf16.mxu0 0
    %1114 = vmatpush1.bf16.xpose.msra.mxu0 0
    %1115 = vmatprep.subr.bf16.mxu0 0
    %1116 = vmatpush1.bf16.xpose.msra.mxu0 0
    %1117 = vmatprep.subr.bf16.mxu0 0
    %1118 = vmatpush1.bf16.xpose.msra.mxu0 0
    %1119 = vmatprep.subr.bf16.mxu0 0
    %1120 = vmatpush1.bf16.xpose.msra.mxu0 0
    %1121 = vmatprep.subr.bf16.mxu0 0
    %1122 = vmatpush1.bf16.xpose.msra.mxu0 0
    %1123 = vmatprep.subr.bf16.mxu0 0
    %1124 = vmatpush1.bf16.xpose.msra.mxu0 0
    %1125 = vmatprep.subr.bf16.mxu0 0
    %1126 = vmatpush1.bf16.xpose.msra.mxu0 0
    %1127 = vmatprep.subr.bf16.mxu0 0
    %1128 = vmatpush1.bf16.xpose.msra.mxu0 0
    %1129 = vmatprep.mubr.bf16.mxu0 0
    %1130 = vmatmul.mubr.bf16.gmra.mrb[0].mxu0 %v1092
    %v1131 = vpop.f32.mrb[0].mxu0
    %v1132 = vadd.f32 0.0, %v1131
    %v1133 = vpop.f32.mrb[0].mxu0
    %v1134 = vpop.f32.mrb[0].mxu0
    %v1135 = vpop.f32.mrb[0].mxu0
    %1136 = vdwg.mxu0
    %v1137 = vsel %vm337, %v1132, -inf
    %1138 = vmax.xlane.f32.xlu0 %v1137
    %v1139 = vpop.xlane.xlu0 %1138
    %v1140 = vsub.f32 %v1132, %v1139
    %v1141 = vmul.f32 %v1140, 1.442695
    %v1142 = vpow.pop %v1141
    %v1143 = vsel %vm337, %v1142, 0.0
    %1144 = vadd.xlane.f32.xlu0 %v1143
    %v1145 = vpop.xlane.xlu0 %1144
    %v1146 = vpack.c.bf16 %v1142, %v1142
    %1147 = vrot.lane.b32.xlu0 %v1036, 120
    %v1148 = vpop.permute.xlu0 %1147
    %v1150 = vsel %vm337, %v1146, 0
    %v1153 = vsel %vm397, %v1148, 0
    %1155 = vmatprep.subr.bf16.mxu0 0
    %1156 = vmatpush1.bf16.msra.mxu0 %v1153
    %1157 = vmatprep.subr.bf16.mxu0 0
    %1158 = vmatpush1.bf16.msra.mxu0 0
    %1159 = vmatprep.subr.bf16.mxu0 0
    %1160 = vmatpush1.bf16.msra.mxu0 0
    %1161 = vmatprep.subr.bf16.mxu0 0
    %1162 = vmatpush1.bf16.msra.mxu0 0
    %1163 = vmatprep.subr.bf16.mxu0 0
    %1164 = vmatpush1.bf16.msra.mxu0 0
    %1165 = vmatprep.subr.bf16.mxu0 0
    %1166 = vmatpush1.bf16.msra.mxu0 0
    %1167 = vmatprep.subr.bf16.mxu0 0
    %1168 = vmatpush1.bf16.msra.mxu0 0
    %1169 = vmatprep.subr.bf16.mxu0 0
    %1170 = vmatpush1.bf16.msra.mxu0 0
    %1171 = vmatprep.subr.bf16.mxu0 0
    %1172 = vmatpush1.bf16.msra.mxu0 0
    %1173 = vmatprep.subr.bf16.mxu0 0
    %1174 = vmatpush1.bf16.msra.mxu0 0
    %1175 = vmatprep.subr.bf16.mxu0 0
    %1176 = vmatpush1.bf16.msra.mxu0 0
    %1177 = vmatprep.subr.bf16.mxu0 0
    %1178 = vmatpush1.bf16.msra.mxu0 0
    %1179 = vmatprep.subr.bf16.mxu0 0
    %1180 = vmatpush1.bf16.msra.mxu0 0
    %1181 = vmatprep.subr.bf16.mxu0 0
    %1182 = vmatpush1.bf16.msra.mxu0 0
    %1183 = vmatprep.subr.bf16.mxu0 0
    %1184 = vmatpush1.bf16.msra.mxu0 0
    %1185 = vmatprep.subr.bf16.mxu0 0
    %1186 = vmatpush1.bf16.msra.mxu0 0
    %1187 = vmatprep.mubr.bf16.mxu0 0
    %1188 = vmatmul.mubr.bf16.gmra.mrb[0].mxu0 %v1150
    %v1189 = vpop.f32.mrb[0].mxu0
    %v1190 = vadd.f32 0.0, %v1189
    %v1191 = vpop.f32.mrb[0].mxu0
    %v1192 = vpop.f32.mrb[0].mxu0
    %v1193 = vpop.f32.mrb[0].mxu0
    %1194 = vdwg.mxu0
    %v1195 = vrcp.pop %v1145
    %v1196 = vmul.f32 %v1190, %v1195
    %v1197 = vpack.c.bf16 %v1196, %v1196
    %v1198 = vld [vmem:[%s9 + $0x4] sm:$0xf]
    %v1200 = vsel %vm337, %v1197, 0
    %v1203 = vsel %vm397, %v1198, 0
    %1205 = vmatprep.subr.bf16.mxu0 0
    %1206 = vmatpush1.bf16.msra.mxu0 %v1203
    %1207 = vmatprep.subr.bf16.mxu0 0
    %1208 = vmatpush1.bf16.msra.mxu0 0
    %1209 = vmatprep.subr.bf16.mxu0 0
    %1210 = vmatpush1.bf16.msra.mxu0 0
    %1211 = vmatprep.subr.bf16.mxu0 0
    %1212 = vmatpush1.bf16.msra.mxu0 0
    %1213 = vmatprep.subr.bf16.mxu0 0
    %1214 = vmatpush1.bf16.msra.mxu0 0
    %1215 = vmatprep.subr.bf16.mxu0 0
    %1216 = vmatpush1.bf16.msra.mxu0 0
    %1217 = vmatprep.subr.bf16.mxu0 0
    %1218 = vmatpush1.bf16.msra.mxu0 0
    %1219 = vmatprep.subr.bf16.mxu0 0
    %1220 = vmatpush1.bf16.msra.mxu0 0
    %1221 = vmatprep.subr.bf16.mxu0 0
    %1222 = vmatpush1.bf16.msra.mxu0 0
    %1223 = vmatprep.subr.bf16.mxu0 0
    %1224 = vmatpush1.bf16.msra.mxu0 0
    %1225 = vmatprep.subr.bf16.mxu0 0
    %1226 = vmatpush1.bf16.msra.mxu0 0
    %1227 = vmatprep.subr.bf16.mxu0 0
    %1228 = vmatpush1.bf16.msra.mxu0 0
    %1229 = vmatprep.subr.bf16.mxu0 0
    %1230 = vmatpush1.bf16.msra.mxu0 0
    %1231 = vmatprep.subr.bf16.mxu0 0
    %1232 = vmatpush1.bf16.msra.mxu0 0
    %1233 = vmatprep.subr.bf16.mxu0 0
    %1234 = vmatpush1.bf16.msra.mxu0 0
    %1235 = vmatprep.subr.bf16.mxu0 0
    %1236 = vmatpush1.bf16.msra.mxu0 0
    %1237 = vmatprep.mubr.bf16.mxu0 0
    %1238 = vmatmul.mubr.bf16.gmra.mrb[0].mxu0 %v1200
    %v1239 = vpop.f32.mrb[0].mxu0
    %v1240 = vadd.f32 0.0, %v1239
    %v1241 = vpop.f32.mrb[0].mxu0
    %v1242 = vpop.f32.mrb[0].mxu0
    %v1243 = vpop.f32.mrb[0].mxu0
    %1244 = vdwg.mxu0
    %v1246 = vsel %vm337, %v1085, 0
    %v1249 = vsel %vm397, %v1086, 0
    %1251 = vmatprep.subr.bf16.mxu0 0
    %1252 = vmatpush1.bf16.msra.mxu0 %v1249
    %1253 = vmatprep.subr.bf16.mxu0 0
    %1254 = vmatpush1.bf16.msra.mxu0 0
    %1255 = vmatprep.subr.bf16.mxu0 0
    %1256 = vmatpush1.bf16.msra.mxu0 0
    %1257 = vmatprep.subr.bf16.mxu0 0
    %1258 = vmatpush1.bf16.msra.mxu0 0
    %1259 = vmatprep.subr.bf16.mxu0 0
    %1260 = vmatpush1.bf16.msra.mxu0 0
    %1261 = vmatprep.subr.bf16.mxu0 0
    %1262 = vmatpush1.bf16.msra.mxu0 0
    %1263 = vmatprep.subr.bf16.mxu0 0
    %1264 = vmatpush1.bf16.msra.mxu0 0
    %1265 = vmatprep.subr.bf16.mxu0 0
    %1266 = vmatpush1.bf16.msra.mxu0 0
    %1267 = vmatprep.subr.bf16.mxu0 0
    %1268 = vmatpush1.bf16.msra.mxu0 0
    %1269 = vmatprep.subr.bf16.mxu0 0
    %1270 = vmatpush1.bf16.msra.mxu0 0
    %1271 = vmatprep.subr.bf16.mxu0 0
    %1272 = vmatpush1.bf16.msra.mxu0 0
    %1273 = vmatprep.subr.bf16.mxu0 0
    %1274 = vmatpush1.bf16.msra.mxu0 0
    %1275 = vmatprep.subr.bf16.mxu0 0
    %1276 = vmatpush1.bf16.msra.mxu0 0
    %1277 = vmatprep.subr.bf16.mxu0 0
    %1278 = vmatpush1.bf16.msra.mxu0 0
    %1279 = vmatprep.subr.bf16.mxu0 0
    %1280 = vmatpush1.bf16.msra.mxu0 0
    %1281 = vmatprep.subr.bf16.mxu0 0
    %1282 = vmatpush1.bf16.msra.mxu0 0
    %1283 = vmatprep.mubr.bf16.mxu0 0
    %1284 = vmatmul.mubr.bf16.gmra.mrb[0].mxu0 %v1246
    %v1285 = vpop.f32.mrb[0].mxu0
    %v1286 = vadd.f32 %v1240, %v1285
    %v1287 = vpop.f32.mrb[0].mxu0
    %v1288 = vpop.f32.mrb[0].mxu0
    %v1289 = vpop.f32.mrb[0].mxu0
    %1290 = vdwg.mxu0
    %1291 = vrot.lane.b32.xlu0 %v978, 112
    %v1292 = vpop.permute.xlu0 %1291
    %1293 = vrot.lane.b32.xlu0 %v979, 112
    %v1294 = vpop.permute.xlu0 %1293
    %v1296 = vsel %vm337, %v1292, 0
    %v1299 = vsel %vm337, %v1294, 0
    %1301 = vmatprep.subr.bf16.mxu0 0
    %1302 = vmatpush1.bf16.xpose.msra.mxu0 %v1299
    %1303 = vmatprep.subr.bf16.mxu0 0
    %1304 = vmatpush1.bf16.xpose.msra.mxu0 0
    %1305 = vmatprep.subr.bf16.mxu0 0
    %1306 = vmatpush1.bf16.xpose.msra.mxu0 0
    %1307 = vmatprep.subr.bf16.mxu0 0
    %1308 = vmatpush1.bf16.xpose.msra.mxu0 0
    %1309 = vmatprep.subr.bf16.mxu0 0
    %1310 = vmatpush1.bf16.xpose.msra.mxu0 0
    %1311 = vmatprep.subr.bf16.mxu0 0
    %1312 = vmatpush1.bf16.xpose.msra.mxu0 0
    %1313 = vmatprep.subr.bf16.mxu0 0
    %1314 = vmatpush1.bf16.xpose.msra.mxu0 0
    %1315 = vmatprep.subr.bf16.mxu0 0
    %1316 = vmatpush1.bf16.xpose.msra.mxu0 0
    %1317 = vmatprep.subr.bf16.mxu0 0
    %1318 = vmatpush1.bf16.xpose.msra.mxu0 0
    %1319 = vmatprep.subr.bf16.mxu0 0
    %1320 = vmatpush1.bf16.xpose.msra.mxu0 0
    %1321 = vmatprep.subr.bf16.mxu0 0
    %1322 = vmatpush1.bf16.xpose.msra.mxu0 0
    %1323 = vmatprep.subr.bf16.mxu0 0
    %1324 = vmatpush1.bf16.xpose.msra.mxu0 0
    %1325 = vmatprep.subr.bf16.mxu0 0
    %1326 = vmatpush1.bf16.xpose.msra.mxu0 0
    %1327 = vmatprep.subr.bf16.mxu0 0
    %1328 = vmatpush1.bf16.xpose.msra.mxu0 0
    %1329 = vmatprep.subr.bf16.mxu0 0
    %1330 = vmatpush1.bf16.xpose.msra.mxu0 0
    %1331 = vmatprep.subr.bf16.mxu0 0
    %1332 = vmatpush1.bf16.xpose.msra.mxu0 0
    %1333 = vmatprep.mubr.bf16.mxu0 0
    %1334 = vmatmul.mubr.bf16.gmra.mrb[0].mxu0 %v1296
    %v1335 = vpop.f32.mrb[0].mxu0
    %v1336 = vadd.f32 0.0, %v1335
    %v1337 = vpop.f32.mrb[0].mxu0
    %v1338 = vpop.f32.mrb[0].mxu0
    %v1339 = vpop.f32.mrb[0].mxu0
    %1340 = vdwg.mxu0
    %v1341 = vsel %vm337, %v1336, -inf
    %1342 = vmax.xlane.f32.xlu0 %v1341
    %v1343 = vpop.xlane.xlu0 %1342
    %v1344 = vsub.f32 %v1336, %v1343
    %v1345 = vmul.f32 %v1344, 1.442695
    %v1346 = vpow.pop %v1345
    %v1347 = vsel %vm337, %v1346, 0.0
    %1348 = vadd.xlane.f32.xlu0 %v1347
    %v1349 = vpop.xlane.xlu0 %1348
    %v1350 = vpack.c.bf16 %v1346, %v1346
    %1351 = vrot.lane.b32.xlu0 %v1036, 112
    %v1352 = vpop.permute.xlu0 %1351
    %v1354 = vsel %vm337, %v1350, 0
    %v1357 = vsel %vm397, %v1352, 0
    %1359 = vmatprep.subr.bf16.mxu0 0
    %1360 = vmatpush1.bf16.msra.mxu0 %v1357
    %1361 = vmatprep.subr.bf16.mxu0 0
    %1362 = vmatpush1.bf16.msra.mxu0 0
    %1363 = vmatprep.subr.bf16.mxu0 0
    %1364 = vmatpush1.bf16.msra.mxu0 0
    %1365 = vmatprep.subr.bf16.mxu0 0
    %1366 = vmatpush1.bf16.msra.mxu0 0
    %1367 = vmatprep.subr.bf16.mxu0 0
    %1368 = vmatpush1.bf16.msra.mxu0 0
    %1369 = vmatprep.subr.bf16.mxu0 0
    %1370 = vmatpush1.bf16.msra.mxu0 0
    %1371 = vmatprep.subr.bf16.mxu0 0
    %1372 = vmatpush1.bf16.msra.mxu0 0
    %1373 = vmatprep.subr.bf16.mxu0 0
    %1374 = vmatpush1.bf16.msra.mxu0 0
    %1375 = vmatprep.subr.bf16.mxu0 0
    %1376 = vmatpush1.bf16.msra.mxu0 0
    %1377 = vmatprep.subr.bf16.mxu0 0
    %1378 = vmatpush1.bf16.msra.mxu0 0
    %1379 = vmatprep.subr.bf16.mxu0 0
    %1380 = vmatpush1.bf16.msra.mxu0 0
    %1381 = vmatprep.subr.bf16.mxu0 0
    %1382 = vmatpush1.bf16.msra.mxu0 0
    %1383 = vmatprep.subr.bf16.mxu0 0
    %1384 = vmatpush1.bf16.msra.mxu0 0
    %1385 = vmatprep.subr.bf16.mxu0 0
    %1386 = vmatpush1.bf16.msra.mxu0 0
    %1387 = vmatprep.subr.bf16.mxu0 0
    %1388 = vmatpush1.bf16.msra.mxu0 0
    %1389 = vmatprep.subr.bf16.mxu0 0
    %1390 = vmatpush1.bf16.msra.mxu0 0
    %1391 = vmatprep.mubr.bf16.mxu0 0
    %1392 = vmatmul.mubr.bf16.gmra.mrb[0].mxu0 %v1354
    %v1393 = vpop.f32.mrb[0].mxu0
    %v1394 = vadd.f32 0.0, %v1393
    %v1395 = vpop.f32.mrb[0].mxu0
    %v1396 = vpop.f32.mrb[0].mxu0
    %v1397 = vpop.f32.mrb[0].mxu0
    %1398 = vdwg.mxu0
    %v1399 = vrcp.pop %v1349
    %v1400 = vmul.f32 %v1394, %v1399
    %v1401 = vpack.c.bf16 %v1400, %v1400
    %v1402 = vld [vmem:[%s9 + $0x8] sm:$0xf]
    %v1404 = vsel %vm337, %v1401, 0
    %v1407 = vsel %vm397, %v1402, 0
    %1409 = vmatprep.subr.bf16.mxu0 0
    %1410 = vmatpush1.bf16.msra.mxu0 %v1407
    %1411 = vmatprep.subr.bf16.mxu0 0
    %1412 = vmatpush1.bf16.msra.mxu0 0
    %1413 = vmatprep.subr.bf16.mxu0 0
    %1414 = vmatpush1.bf16.msra.mxu0 0
    %1415 = vmatprep.subr.bf16.mxu0 0
    %1416 = vmatpush1.bf16.msra.mxu0 0
    %1417 = vmatprep.subr.bf16.mxu0 0
    %1418 = vmatpush1.bf16.msra.mxu0 0
    %1419 = vmatprep.subr.bf16.mxu0 0
    %1420 = vmatpush1.bf16.msra.mxu0 0
    %1421 = vmatprep.subr.bf16.mxu0 0
    %1422 = vmatpush1.bf16.msra.mxu0 0
    %1423 = vmatprep.subr.bf16.mxu0 0
    %1424 = vmatpush1.bf16.msra.mxu0 0
    %1425 = vmatprep.subr.bf16.mxu0 0
    %1426 = vmatpush1.bf16.msra.mxu0 0
    %1427 = vmatprep.subr.bf16.mxu0 0
    %1428 = vmatpush1.bf16.msra.mxu0 0
    %1429 = vmatprep.subr.bf16.mxu0 0
    %1430 = vmatpush1.bf16.msra.mxu0 0
    %1431 = vmatprep.subr.bf16.mxu0 0
    %1432 = vmatpush1.bf16.msra.mxu0 0
    %1433 = vmatprep.subr.bf16.mxu0 0
    %1434 = vmatpush1.bf16.msra.mxu0 0
    %1435 = vmatprep.subr.bf16.mxu0 0
    %1436 = vmatpush1.bf16.msra.mxu0 0
    %1437 = vmatprep.subr.bf16.mxu0 0
    %1438 = vmatpush1.bf16.msra.mxu0 0
    %1439 = vmatprep.subr.bf16.mxu0 0
    %1440 = vmatpush1.bf16.msra.mxu0 0
    %1441 = vmatprep.mubr.bf16.mxu0 0
    %1442 = vmatmul.mubr.bf16.gmra.mrb[0].mxu0 %v1404
    %v1443 = vpop.f32.mrb[0].mxu0
    %v1444 = vadd.f32 0.0, %v1443
    %v1445 = vpop.f32.mrb[0].mxu0
    %v1446 = vpop.f32.mrb[0].mxu0
    %v1447 = vpop.f32.mrb[0].mxu0
    %1448 = vdwg.mxu0
    %v1449 = vadd.f32 %v1286, %v1444
    %1450 = vrot.lane.b32.xlu0 %v978, 104
    %v1451 = vpop.permute.xlu0 %1450
    %1452 = vrot.lane.b32.xlu0 %v979, 104
    %v1453 = vpop.permute.xlu0 %1452
    %v1455 = vsel %vm337, %v1451, 0
    %v1458 = vsel %vm337, %v1453, 0
    %1460 = vmatprep.subr.bf16.mxu0 0
    %1461 = vmatpush1.bf16.xpose.msra.mxu0 %v1458
    %1462 = vmatprep.subr.bf16.mxu0 0
    %1463 = vmatpush1.bf16.xpose.msra.mxu0 0
    %1464 = vmatprep.subr.bf16.mxu0 0
    %1465 = vmatpush1.bf16.xpose.msra.mxu0 0
    %1466 = vmatprep.subr.bf16.mxu0 0
    %1467 = vmatpush1.bf16.xpose.msra.mxu0 0
    %1468 = vmatprep.subr.bf16.mxu0 0
    %1469 = vmatpush1.bf16.xpose.msra.mxu0 0
    %1470 = vmatprep.subr.bf16.mxu0 0
    %1471 = vmatpush1.bf16.xpose.msra.mxu0 0
    %1472 = vmatprep.subr.bf16.mxu0 0
    %1473 = vmatpush1.bf16.xpose.msra.mxu0 0
    %1474 = vmatprep.subr.bf16.mxu0 0
    %1475 = vmatpush1.bf16.xpose.msra.mxu0 0
    %1476 = vmatprep.subr.bf16.mxu0 0
    %1477 = vmatpush1.bf16.xpose.msra.mxu0 0
    %1478 = vmatprep.subr.bf16.mxu0 0
    %1479 = vmatpush1.bf16.xpose.msra.mxu0 0
    %1480 = vmatprep.subr.bf16.mxu0 0
    %1481 = vmatpush1.bf16.xpose.msra.mxu0 0
    %1482 = vmatprep.subr.bf16.mxu0 0
    %1483 = vmatpush1.bf16.xpose.msra.mxu0 0
    %1484 = vmatprep.subr.bf16.mxu0 0
    %1485 = vmatpush1.bf16.xpose.msra.mxu0 0
    %1486 = vmatprep.subr.bf16.mxu0 0
    %1487 = vmatpush1.bf16.xpose.msra.mxu0 0
    %1488 = vmatprep.subr.bf16.mxu0 0
    %1489 = vmatpush1.bf16.xpose.msra.mxu0 0
    %1490 = vmatprep.subr.bf16.mxu0 0
    %1491 = vmatpush1.bf16.xpose.msra.mxu0 0
    %1492 = vmatprep.mubr.bf16.mxu0 0
    %1493 = vmatmul.mubr.bf16.gmra.mrb[0].mxu0 %v1455
    %v1494 = vpop.f32.mrb[0].mxu0
    %v1495 = vadd.f32 0.0, %v1494
    %v1496 = vpop.f32.mrb[0].mxu0
    %v1497 = vpop.f32.mrb[0].mxu0
    %v1498 = vpop.f32.mrb[0].mxu0
    %1499 = vdwg.mxu0
    %v1500 = vsel %vm337, %v1495, -inf
    %1501 = vmax.xlane.f32.xlu0 %v1500
    %v1502 = vpop.xlane.xlu0 %1501
    %v1503 = vsub.f32 %v1495, %v1502
    %v1504 = vmul.f32 %v1503, 1.442695
    %v1505 = vpow.pop %v1504
    %v1506 = vsel %vm337, %v1505, 0.0
    %1507 = vadd.xlane.f32.xlu0 %v1506
    %v1508 = vpop.xlane.xlu0 %1507
    %v1509 = vpack.c.bf16 %v1505, %v1505
    %1510 = vrot.lane.b32.xlu0 %v1036, 104
    %v1511 = vpop.permute.xlu0 %1510
    %v1513 = vsel %vm337, %v1509, 0
    %v1516 = vsel %vm397, %v1511, 0
    %1518 = vmatprep.subr.bf16.mxu0 0
    %1519 = vmatpush1.bf16.msra.mxu0 %v1516
    %1520 = vmatprep.subr.bf16.mxu0 0
    %1521 = vmatpush1.bf16.msra.mxu0 0
    %1522 = vmatprep.subr.bf16.mxu0 0
    %1523 = vmatpush1.bf16.msra.mxu0 0
    %1524 = vmatprep.subr.bf16.mxu0 0
    %1525 = vmatpush1.bf16.msra.mxu0 0
    %1526 = vmatprep.subr.bf16.mxu0 0
    %1527 = vmatpush1.bf16.msra.mxu0 0
    %1528 = vmatprep.subr.bf16.mxu0 0
    %1529 = vmatpush1.bf16.msra.mxu0 0
    %1530 = vmatprep.subr.bf16.mxu0 0
    %1531 = vmatpush1.bf16.msra.mxu0 0
    %1532 = vmatprep.subr.bf16.mxu0 0
    %1533 = vmatpush1.bf16.msra.mxu0 0
    %1534 = vmatprep.subr.bf16.mxu0 0
    %1535 = vmatpush1.bf16.msra.mxu0 0
    %1536 = vmatprep.subr.bf16.mxu0 0
    %1537 = vmatpush1.bf16.msra.mxu0 0
    %1538 = vmatprep.subr.bf16.mxu0 0
    %1539 = vmatpush1.bf16.msra.mxu0 0
    %1540 = vmatprep.subr.bf16.mxu0 0
    %1541 = vmatpush1.bf16.msra.mxu0 0
    %1542 = vmatprep.subr.bf16.mxu0 0
    %1543 = vmatpush1.bf16.msra.mxu0 0
    %1544 = vmatprep.subr.bf16.mxu0 0
    %1545 = vmatpush1.bf16.msra.mxu0 0
    %1546 = vmatprep.subr.bf16.mxu0 0
    %1547 = vmatpush1.bf16.msra.mxu0 0
    %1548 = vmatprep.subr.bf16.mxu0 0
    %1549 = vmatpush1.bf16.msra.mxu0 0
    %1550 = vmatprep.mubr.bf16.mxu0 0
    %1551 = vmatmul.mubr.bf16.gmra.mrb[0].mxu0 %v1513
    %v1552 = vpop.f32.mrb[0].mxu0
    %v1553 = vadd.f32 0.0, %v1552
    %v1554 = vpop.f32.mrb[0].mxu0
    %v1555 = vpop.f32.mrb[0].mxu0
    %v1556 = vpop.f32.mrb[0].mxu0
    %1557 = vdwg.mxu0
    %v1558 = vrcp.pop %v1508
    %v1559 = vmul.f32 %v1553, %v1558
    %v1560 = vpack.c.bf16 %v1559, %v1559
    %v1561 = vld [vmem:[%s9 + $0xc] sm:$0xf]
    %v1563 = vsel %vm337, %v1560, 0
    %v1566 = vsel %vm397, %v1561, 0
    %1568 = vmatprep.subr.bf16.mxu0 0
    %1569 = vmatpush1.bf16.msra.mxu0 %v1566
    %1570 = vmatprep.subr.bf16.mxu0 0
    %1571 = vmatpush1.bf16.msra.mxu0 0
    %1572 = vmatprep.subr.bf16.mxu0 0
    %1573 = vmatpush1.bf16.msra.mxu0 0
    %1574 = vmatprep.subr.bf16.mxu0 0
    %1575 = vmatpush1.bf16.msra.mxu0 0
    %1576 = vmatprep.subr.bf16.mxu0 0
    %1577 = vmatpush1.bf16.msra.mxu0 0
    %1578 = vmatprep.subr.bf16.mxu0 0
    %1579 = vmatpush1.bf16.msra.mxu0 0
    %1580 = vmatprep.subr.bf16.mxu0 0
    %1581 = vmatpush1.bf16.msra.mxu0 0
    %1582 = vmatprep.subr.bf16.mxu0 0
    %1583 = vmatpush1.bf16.msra.mxu0 0
    %1584 = vmatprep.subr.bf16.mxu0 0
    %1585 = vmatpush1.bf16.msra.mxu0 0
    %1586 = vmatprep.subr.bf16.mxu0 0
    %1587 = vmatpush1.bf16.msra.mxu0 0
    %1588 = vmatprep.subr.bf16.mxu0 0
    %1589 = vmatpush1.bf16.msra.mxu0 0
    %1590 = vmatprep.subr.bf16.mxu0 0
    %1591 = vmatpush1.bf16.msra.mxu0 0
    %1592 = vmatprep.subr.bf16.mxu0 0
    %1593 = vmatpush1.bf16.msra.mxu0 0
    %1594 = vmatprep.subr.bf16.mxu0 0
    %1595 = vmatpush1.bf16.msra.mxu0 0
    %1596 = vmatprep.subr.bf16.mxu0 0
    %1597 = vmatpush1.bf16.msra.mxu0 0
    %1598 = vmatprep.subr.bf16.mxu0 0
    %1599 = vmatpush1.bf16.msra.mxu0 0
    %1600 = vmatprep.mubr.bf16.mxu0 0
    %1601 = vmatmul.mubr.bf16.gmra.mrb[0].mxu0 %v1563
    %v1602 = vpop.f32.mrb[0].mxu0
    %v1603 = vadd.f32 0.0, %v1602
    %v1604 = vpop.f32.mrb[0].mxu0
    %v1605 = vpop.f32.mrb[0].mxu0
    %v1606 = vpop.f32.mrb[0].mxu0
    %1607 = vdwg.mxu0
    %v1608 = vadd.f32 %v1449, %v1603
    %v1609 = vadd.f32 %v1608, %v974
    %1610 = vst.msk [vmem:[#allocation13 + $0x8] sm:$0xff] %vm152, %v1609
    // Predicated region
    $region70: #{tpu_custom_call.1} parent=1 // pred_check
      _
    $region71: #{tpu_custom_call.1} parent=1 // pred_check_branch
      %1612 = sbr.rel (0) target = $region73
    $region72: #{tpu_custom_call.1} parent=1 // pred_region
      %s1614 = ssub.s32 256, 256
      %1615 = vsyncadd [#allocation4], %s1614
      %s1616 = sshll.u32 [#allocation13], 4
      %s1617 = int_to_ptr.vmem [resolvable:$true] %s1616
      %1622 = dma.vmem_to_hbm [thread:$0]  %s1617, 256, %s11, [#allocation4], 128, 128, 8
    $region73: #{tpu_custom_call.1} parent=1 // pred_fallthru
      _
    // Predicated region
    $region74: #{tpu_custom_call.1} parent=1 // pred_check
      _
    $region75: #{tpu_custom_call.1} parent=1 // pred_check_branch
      %1624 = sbr.rel (0) target = $region77
    $region76: #{tpu_custom_call.1} parent=1 // pred_region
      %1625 = dma.done [#allocation4], 256
    $region77: #{tpu_custom_call.1} parent=1 // pred_fallthru
      _
    %1626 = vsyncpa [#allocation3], 1
    %1627 = vsyncpa [#allocation6], 1
    %1628 = vsyncpa [#allocation9], 1
    %1629 = vsyncpa [#allocation12], 1
    %1630 = vsyncpa [#allocation4], 1

</llo_original>
